<compile_context>
chip_gen: v7x
topology: tpu7x:2x2x1
jax: 0.10.0
libtpu: 0.0.40
codegen_flags: <defaults>
</compile_context>

<pallas_src>
import functools
import math

import jax
import jax.numpy as jnp
from jax.experimental import pallas as pl
from jax.experimental.pallas import tpu as pltpu

# ----------------------------- config -----------------------------
D_MODEL = 32
NHEAD = 4
L_IMG = 16
L_TXT = 8
BATCH = 2
OUT_SIZE = 400
OUT_PAD = 512          # lane-dense padded score width (4x128 / 2x256)
ALPHA = 0.5
SIGMA = 1.0
EPS_NORM = 1e-8


def _kvt_layout(d, nhead):
    """Column layout of the fused projection weight:
       [ K (d) | zeros | V'_0..V'_{H-1} (H*d) | txt_proj padded to 128 ]"""
    v_off = ((d + 127) // 128) * 128           # V' block starts vreg-aligned
    t_off = v_off + nhead * d                  # txt slab starts vreg-aligned (d=32,H=4 -> 256)
    t_w = ((d + 127) // 128) * 128             # lane-dense txt slab width
    return v_off, t_off, t_w, t_off + t_w


# ----------------------------- kernel -----------------------------
def score_kernel(
    img_ref, pos_ref, valid_ref, txt_ref, bias_ref,
    wq_ref, bq_ref, wkvt_ref, bkvt_ref, bvo_ref,
    alpha_ref, sigma_ref, winterp_ref,
    score_ref, txtslab_ref,
    *, nb, li, lt, d, nhead, v_off, t_off,
):
    dh = d // nhead
    eps = EPS_NORM

    img_all = img_ref[...]                                     # [nb*li, d]
    pos_all = pos_ref[...]                                     # [nb*li, d]
    txt_all = txt_ref[...]                                     # [nb*lt, d]

    # ---- txt_kv: per-batch row 0 replaced by arg_emb (pure VPU select) ----
    row_idx = jax.lax.broadcasted_iota(jnp.int32, (nb * lt, d), 0)
    txt_kv = txt_all
    for bi in range(nb):                                       # tiny static batch loop
        img_b = img_all[bi * li:(bi + 1) * li, :]              # raw img (no pos), as in reference
        n_valid = jnp.sum(valid_ref[pl.ds(bi, 1), :], axis=-1, keepdims=True)   # [1, 1]
        arg_b = jnp.sum(img_b, axis=0, keepdims=True) / n_valid                 # [1, d]
        txt_kv = jnp.where(row_idx == bi * lt, arg_b, txt_kv)

    # ---- batched projections: batch folded into the MXU M dimension ----
    # q scale (1/sqrt(dh)) is pre-folded into wq/bq.
    q_all = jnp.dot(img_all + pos_all, wq_ref[...],
                    preferred_element_type=jnp.float32) + bq_ref[...]           # [nb*li, d]
    kvt = jnp.dot(txt_kv, wkvt_ref[...],
                  preferred_element_type=jnp.float32) + bkvt_ref[...]           # [nb*lt, kvt_w]

    # lane-dense txt_proj slab (lanes 0..d-1 real, rest zeros) -> unmasked store
    txtslab_ref[...] = kvt[:, t_off:].astype(txtslab_ref.dtype)                 # [nb*lt, 128]
    txt_proj = kvt[:, t_off:t_off + d]                                          # [nb*lt, d]

    # txt normalization (row-wise, batch-stacked), exact F.normalize semantics
    txt_nrm = jnp.sqrt(jnp.sum(txt_proj * txt_proj, axis=-1, keepdims=True))
    txt_n = txt_proj / jnp.maximum(txt_nrm, eps)

    bvo = bvo_ref[...]                                          # [1, d]  (= bv@Wo + bo)
    alpha = alpha_ref[...]                                      # [1, 1]
    sig = sigma_ref[...]                                        # [1, 1]
    sig2 = sig * sig

    # ---- per-batch attention core + cosine / gaussian ----
    g_blocks = []
    for bi in range(nb):
        bias_b = bias_ref[pl.ds(bi, 1), :]                      # [1, lt]
        q_b = q_all[bi * li:(bi + 1) * li, :]                   # [li, d]
        kvt_b = kvt[bi * lt:(bi + 1) * lt, :]                   # [lt, kvt_w]

        ctx = None
        for h in range(nhead):                                  # no stack/concat: lane slices only
            q_h = q_b[:, h * dh:(h + 1) * dh]                   # [li, dh]
            k_h = kvt_b[:, h * dh:(h + 1) * dh]                 # [lt, dh]
            s = jax.lax.dot_general(q_h, k_h, (((1,), (1,)), ((), ())),
                                    preferred_element_type=jnp.float32)    # [li, lt]
            s = s + bias_b                                      # key padding mask bias
            s = s - jnp.max(s, axis=-1, keepdims=True)
            p = jnp.exp(s)
            p = p / jnp.sum(p, axis=-1, keepdims=True)
            vprime_h = kvt_b[:, v_off + h * d:v_off + (h + 1) * d]          # [lt, d] (= V_h @ Wo_h)
            c = jnp.dot(p, vprime_h, preferred_element_type=jnp.float32)    # [li, d]
            ctx = c if ctx is None else ctx + c
        img_out = ctx + bvo                                     # attention output, heads pre-merged

        # cosine similarity directly in [lt, li] orientation
        img_nrm = jnp.sqrt(jnp.sum(img_out * img_out, axis=-1, keepdims=True))
        img_n = img_out / jnp.maximum(img_nrm, eps)
        txt_n_b = txt_n[bi * lt:(bi + 1) * lt, :]
        cos = jax.lax.dot_general(txt_n_b, img_n, (((1,), (1,)), ((), ())),
                                  preferred_element_type=jnp.float32)       # [lt, li]
        diff = 1.0 - cos
        g_blocks.append(alpha * jnp.exp(-0.5 * diff * diff / sig2))

    # stacked g -> single lane-dense interpolation matmul + unmasked store
    g_all = jnp.concatenate(g_blocks, axis=0)                   # [nb*lt, li]
    score_ref[...] = jnp.dot(g_all, winterp_ref[...],
                             preferred_element_type=jnp.float32).astype(score_ref.dtype)


# ----------------------------- constant prep (hoisted, one-time) -----------------------------
def make_interp_matrix(in_size, out_size, pad_to=None):
    """W[i, j] such that out[j] = sum_i W[i, j] * in[i] matches
    F.interpolate(mode='linear', align_corners=False); zero-padded to pad_to lanes."""
    scale = in_size / out_size
    j = jnp.arange(out_size, dtype=jnp.float32)
    src = (j + 0.5) * scale - 0.5
    src = jnp.maximum(src, 0.0)
    i0 = jnp.clip(jnp.floor(src).astype(jnp.int32), 0, in_size - 1)
    lam = src - i0.astype(jnp.float32)
    i1 = jnp.minimum(i0 + 1, in_size - 1)
    cols = jnp.arange(out_size, dtype=jnp.int32)
    w = jnp.zeros((in_size, out_size), jnp.float32)
    w = w.at[i0, cols].add(1.0 - lam)
    w = w.at[i1, cols].add(lam)
    if pad_to is not None and pad_to > out_size:
        w = jnp.pad(w, ((0, 0), (0, pad_to - out_size)))
    return w


def init_params(key, d_model):
    ks = jax.random.split(key, 8)

    def xavier(k, shape):
        bound = math.sqrt(6.0 / (shape[0] + shape[1]))
        return jax.random.uniform(k, shape, jnp.float32, -bound, bound)

    return {
        # weights stored pre-transposed so the kernel computes x @ W
        "wq": xavier(ks[0], (d_model, d_model)),
        "wk": xavier(ks[1], (d_model, d_model)),
        "wv": xavier(ks[2], (d_model, d_model)),
        "wo": xavier(ks[3], (d_model, d_model)),
        "wt": xavier(ks[4], (d_model, d_model)),
        "bq": jnp.zeros((1, d_model), jnp.float32),
        "bk": jnp.zeros((1, d_model), jnp.float32),
        "bv": jnp.zeros((1, d_model), jnp.float32),
        "bo": jnp.zeros((1, d_model), jnp.float32),
        "bt": 0.01 * jax.random.normal(ks[5], (1, d_model), jnp.float32),
        "alpha": jnp.full((1, 1), ALPHA, jnp.float32),
        "sigma": jnp.full((1, 1), SIGMA, jnp.float32),
    }


def prepare_params(params, li, nhead=NHEAD):
    """One-time constant prep (call at init, NOT per forward):
    q-scale folded into wq/bq; out_proj folded into per-head value weights;
    fused, lane-padded [K | V' | txt] weight; linear-interp matrix."""
    d = params["wq"].shape[0]
    dh = d // nhead
    scale = 1.0 / math.sqrt(dh)
    v_off, t_off, t_w, kvt_w = _kvt_layout(d, nhead)

    # V'_h = Wv_h @ Wo_h  (out_proj folded into values; exact since softmax rows sum to 1)
    wvo = jnp.concatenate(
        [params["wv"][:, h * dh:(h + 1) * dh] @ params["wo"][h * dh:(h + 1) * dh, :]
         for h in range(nhead)], axis=1)                                  # [d, nhead*d]
    bvo = params["bv"] @ params["wo"] + params["bo"]                      # [1, d]

    wkvt = jnp.zeros((d, kvt_w), jnp.float32)
    wkvt = wkvt.at[:, 0:d].set(params["wk"])
    wkvt = wkvt.at[:, v_off:v_off + nhead * d].set(wvo)
    wkvt = wkvt.at[:, t_off:t_off + d].set(params["wt"])
    bkvt = jnp.zeros((1, kvt_w), jnp.float32)
    bkvt = bkvt.at[:, 0:d].set(params["bk"])
    bkvt = bkvt.at[:, t_off:t_off + d].set(params["bt"])

    return {
        "wq": params["wq"] * scale,
        "bq": params["bq"] * scale,
        "wkvt": wkvt,
        "bkvt": bkvt,
        "bvo": bvo,
        "alpha": params["alpha"],
        "sigma": params["sigma"],
        "winterp": make_interp_matrix(li, OUT_SIZE, OUT_PAD),
    }


# ----------------------------- forward wrapper -----------------------------
def score_module_forward(img_emb_bdl, img_pos, img_mask, txt_emb, txt_mask, prep):
    """img_emb_bdl: [B, D, L_i] (PyTorch layout), img_pos: [B, L_i, D],
    img_mask: [B, L_i] bool (True = padded), txt_emb: [B, L_t, D],
    txt_mask: [B, L_t] bool (True = padded), prep: prepare_params() output."""
    b, d, li = img_emb_bdl.shape
    lt = txt_emb.shape[1]
    v_off, t_off, t_w, kvt_w = _kvt_layout(d, NHEAD)

    img2d = jnp.transpose(img_emb_bdl, (0, 2, 1)).reshape(b * li, d).astype(jnp.float32)
    pos2d = img_pos.reshape(b * li, d).astype(jnp.float32)
    txt2d = txt_emb.reshape(b * lt, d).astype(jnp.float32)
    img_valid = (~img_mask).astype(jnp.float32)                           # [B, L_i]
    txt_bias = jnp.where(txt_mask, -1e30, 0.0).astype(jnp.float32)        # [B, L_t]

    def full(shape):
        return pl.BlockSpec(shape, lambda i, _s=shape: tuple(0 for _ in _s))

    in_specs = [
        full((b * li, d)),            # img2d
        full((b * li, d)),            # pos2d
        full((b, li)),                # img_valid
        full((b * lt, d)),            # txt2d
        full((b, lt)),                # txt_bias
        full((d, d)), full((1, d)),   # wq, bq (scale pre-folded)
        full((d, kvt_w)), full((1, kvt_w)),   # fused wkvt, bkvt
        full((1, d)),                 # bvo
        full((1, 1)), full((1, 1)),   # alpha, sigma
        full((li, OUT_PAD)),          # winterp
    ]
    out_specs = [full((b * lt, OUT_PAD)), full((b * lt, t_w))]
    out_shape = [
        jax.ShapeDtypeStruct((b * lt, OUT_PAD), jnp.float32),
        jax.ShapeDtypeStruct((b * lt, t_w), jnp.float32),
    ]

    fn = pl.pallas_call(
        functools.partial(score_kernel, nb=b, li=li, lt=lt, d=d, nhead=NHEAD,
                          v_off=v_off, t_off=t_off),
        out_shape=out_shape,
        grid=(1,),                    # whole batch in one grid step on every chip generation
        in_specs=in_specs,
        out_specs=out_specs,
        compiler_params=pltpu.CompilerParams(dimension_semantics=("arbitrary",)),
    )
    score2d, txtslab = fn(
        img2d, pos2d, img_valid, txt2d, txt_bias,
        prep["wq"], prep["bq"], prep["wkvt"], prep["bkvt"], prep["bvo"],
        prep["alpha"], prep["sigma"], prep["winterp"],
    )
    score = score2d.reshape(b, lt, OUT_PAD)[:, :, :OUT_SIZE]
    txt_out = txtslab.reshape(b, lt, t_w)[:, :, :d]
    return score, txt_out


# ----------------------------- main -----------------------------
if __name__ == "__main__":
    key = jax.random.PRNGKey(0)
    k_img, k_pos, k_txt, k_par = jax.random.split(key, 4)

    img_emb = jax.random.normal(k_img, (BATCH, D_MODEL, L_IMG), jnp.float32)  # [B, D, L_i]
    img_pos = jax.random.normal(k_pos, (BATCH, L_IMG, D_MODEL), jnp.float32)  # [B, L_i, D]
    txt_emb = jax.random.normal(k_txt, (BATCH, L_TXT, D_MODEL), jnp.float32)  # [B, L_t, D]

    # masks: True = padded/invalid (PyTorch key_padding_mask convention)
    img_mask = jnp.zeros((BATCH, L_IMG), jnp.bool_).at[:, -2:].set(True)
    txt_mask = jnp.zeros((BATCH, L_TXT), jnp.bool_).at[:, -1:].set(True)

    params = init_params(k_par, D_MODEL)
    prep = prepare_params(params, L_IMG)   # one-time constant prep, hoisted out of the forward

    score, txt_out = score_module_forward(
        img_emb, img_pos, img_mask, txt_emb, txt_mask, prep)
    jax.block_until_ready((score, txt_out))

    assert score.shape == (BATCH, L_TXT, OUT_SIZE)
    assert txt_out.shape == (BATCH, L_TXT, D_MODEL)
    assert bool(jnp.all(jnp.isfinite(score)))
    assert bool(jnp.all(jnp.isfinite(txt_out)))
    # TODO(synk): attention dropout from nn.MultiheadAttention is treated as
    # identity (inference mode); no Pallas-side RNG needed for the forward.
    print("KERNEL_OK")
</pallas_src>

<mosaic_0001>
module attributes {stable_mosaic.version = 11 : i64} {
  func.func @score_kernel(%arg0: i32, %arg1: memref<32x32xf32, #tpu.memory_space<vmem>>, %arg2: memref<32x32xf32, #tpu.memory_space<vmem>>, %arg3: memref<2x16xf32, #tpu.memory_space<vmem>>, %arg4: memref<16x32xf32, #tpu.memory_space<vmem>>, %arg5: memref<2x8xf32, #tpu.memory_space<vmem>>, %arg6: memref<32x32xf32, #tpu.memory_space<vmem>>, %arg7: memref<1x32xf32, #tpu.memory_space<vmem>>, %arg8: memref<32x384xf32, #tpu.memory_space<vmem>>, %arg9: memref<1x384xf32, #tpu.memory_space<vmem>>, %arg10: memref<1x32xf32, #tpu.memory_space<vmem>>, %arg11: memref<1x1xf32, #tpu.memory_space<vmem>>, %arg12: memref<1x1xf32, #tpu.memory_space<vmem>>, %arg13: memref<16x512xf32, #tpu.memory_space<vmem>>, %arg14: memref<16x512xf32, #tpu.memory_space<vmem>>, %arg15: memref<16x128xf32, #tpu.memory_space<vmem>>) attributes {dimension_semantics = [#tpu.dimension_semantics<arbitrary>], iteration_bounds = array<i64: 1>, scalar_prefetch = 0 : i64, scratch_operands = 0 : i64, tpu.core_type = #tpu.core_type<tc>, window_params = [{pipeline_mode = #tpu.pipeline_mode<synchronous>, transform_indices = @transform_0, window_bounds = array<i64: 32, 32>}, {pipeline_mode = #tpu.pipeline_mode<synchronous>, transform_indices = @transform_1, window_bounds = array<i64: 32, 32>}, {pipeline_mode = #tpu.pipeline_mode<synchronous>, transform_indices = @transform_2, window_bounds = array<i64: 2, 16>}, {pipeline_mode = #tpu.pipeline_mode<synchronous>, transform_indices = @transform_3, window_bounds = array<i64: 16, 32>}, {pipeline_mode = #tpu.pipeline_mode<synchronous>, transform_indices = @transform_4, window_bounds = array<i64: 2, 8>}, {pipeline_mode = #tpu.pipeline_mode<synchronous>, transform_indices = @transform_5, window_bounds = array<i64: 32, 32>}, {pipeline_mode = #tpu.pipeline_mode<synchronous>, transform_indices = @transform_6, window_bounds = array<i64: 1, 32>}, {pipeline_mode = #tpu.pipeline_mode<synchronous>, transform_indices = @transform_7, window_bounds = array<i64: 32, 384>}, {pipeline_mode = #tpu.pipeline_mode<synchronous>, transform_indices = @transform_8, window_bounds = array<i64: 1, 384>}, {pipeline_mode = #tpu.pipeline_mode<synchronous>, transform_indices = @transform_9, window_bounds = array<i64: 1, 32>}, {pipeline_mode = #tpu.pipeline_mode<synchronous>, transform_indices = @transform_10, window_bounds = array<i64: 1, 1>}, {pipeline_mode = #tpu.pipeline_mode<synchronous>, transform_indices = @transform_11, window_bounds = array<i64: 1, 1>}, {pipeline_mode = #tpu.pipeline_mode<synchronous>, transform_indices = @transform_12, window_bounds = array<i64: 16, 512>}, {pipeline_mode = #tpu.pipeline_mode<synchronous>, transform_indices = @transform_13, window_bounds = array<i64: 16, 512>}, {pipeline_mode = #tpu.pipeline_mode<synchronous>, transform_indices = @transform_14, window_bounds = array<i64: 16, 128>}]} {
    %c0 = arith.constant 0 : index
    %c0_0 = arith.constant 0 : index
    %0 = vector.load %arg1[%c0, %c0_0] : memref<32x32xf32, #tpu.memory_space<vmem>>, vector<32x32xf32>
    %c0_1 = arith.constant 0 : index
    %c0_2 = arith.constant 0 : index
    %1 = vector.load %arg2[%c0_1, %c0_2] : memref<32x32xf32, #tpu.memory_space<vmem>>, vector<32x32xf32>
    %c0_3 = arith.constant 0 : index
    %c0_4 = arith.constant 0 : index
    %2 = vector.load %arg4[%c0_3, %c0_4] : memref<16x32xf32, #tpu.memory_space<vmem>>, vector<16x32xf32>
    %3 = tpu.iota {dimensions = array<i32: 0>} : vector<16x32xi32>
    %4 = vector.extract_strided_slice %0 {offsets = [0, 0], sizes = [16, 32], strides = [1, 1]} : vector<32x32xf32> to vector<16x32xf32>
    %c0_5 = arith.constant 0 : index
    %c0_6 = arith.constant 0 : index
    %5 = vector.load %arg3[%c0_5, %c0_6] : memref<2x16xf32, #tpu.memory_space<vmem>>, vector<1x16xf32>
    %cst = arith.constant dense<0.000000e+00> : vector<1xf32>
    %6 = vector.multi_reduction <add>, %5, %cst [1] : vector<1x16xf32> to vector<1xf32>
    %7 = vector.shape_cast %6 : vector<1xf32> to vector<1x1xf32>
    %cst_7 = arith.constant dense<0.000000e+00> : vector<32xf32>
    %8 = vector.multi_reduction <add>, %4, %cst_7 [0] : vector<16x32xf32> to vector<32xf32>
    %9 = vector.shape_cast %8 : vector<32xf32> to vector<1x32xf32>
    %10 = vector.broadcast %7 : vector<1x1xf32> to vector<1x32xf32>
    %11 = arith.divf %9, %10 : vector<1x32xf32>
    %c0_i32 = arith.constant 0 : i32
    %12 = vector.broadcast %c0_i32 : i32 to vector<16x32xi32>
    %13 = arith.cmpi eq, %3, %12 : vector<16x32xi32>
    %14 = vector.shape_cast %11 : vector<1x32xf32> to vector<1x32xf32>
    %15 = vector.broadcast %14 : vector<1x32xf32> to vector<16x32xf32>
    %16 = arith.select %13, %15, %2 : vector<16x32xi1>, vector<16x32xf32>
    %17 = vector.extract_strided_slice %0 {offsets = [16, 0], sizes = [16, 32], strides = [1, 1]} : vector<32x32xf32> to vector<16x32xf32>
    %c1 = arith.constant 1 : index
    %c0_8 = arith.constant 0 : index
    %18 = vector.load %arg3[%c1, %c0_8] : memref<2x16xf32, #tpu.memory_space<vmem>>, vector<1x16xf32>
    %cst_9 = arith.constant dense<0.000000e+00> : vector<1xf32>
    %19 = vector.multi_reduction <add>, %18, %cst_9 [1] : vector<1x16xf32> to vector<1xf32>
    %20 = vector.shape_cast %19 : vector<1xf32> to vector<1x1xf32>
    %cst_10 = arith.constant dense<0.000000e+00> : vector<32xf32>
    %21 = vector.multi_reduction <add>, %17, %cst_10 [0] : vector<16x32xf32> to vector<32xf32>
    %22 = vector.shape_cast %21 : vector<32xf32> to vector<1x32xf32>
    %23 = vector.broadcast %20 : vector<1x1xf32> to vector<1x32xf32>
    %24 = arith.divf %22, %23 : vector<1x32xf32>
    %c8_i32 = arith.constant 8 : i32
    %25 = vector.broadcast %c8_i32 : i32 to vector<16x32xi32>
    %26 = arith.cmpi eq, %3, %25 : vector<16x32xi32>
    %27 = vector.shape_cast %24 : vector<1x32xf32> to vector<1x32xf32>
    %28 = vector.broadcast %27 : vector<1x32xf32> to vector<16x32xf32>
    %29 = arith.select %26, %28, %16 : vector<16x32xi1>, vector<16x32xf32>
    %30 = arith.addf %0, %1 : vector<32x32xf32>
    %c0_11 = arith.constant 0 : index
    %c0_12 = arith.constant 0 : index
    %31 = vector.load %arg6[%c0_11, %c0_12] : memref<32x32xf32, #tpu.memory_space<vmem>>, vector<32x32xf32>
    %cst_13 = arith.constant dense<0.000000e+00> : vector<32x32xf32>
    %32 = tpu.matmul %30, %31, %cst_13 {dimension_numbers = #tpu.dot_dimension_numbers<[1], [0], [0], [1], [0, 0, 1, 1], [], []>} : vector<32x32xf32>, vector<32x32xf32>, vector<32x32xf32> -> vector<32x32xf32>
    %c0_14 = arith.constant 0 : index
    %c0_15 = arith.constant 0 : index
    %33 = vector.load %arg7[%c0_14, %c0_15] : memref<1x32xf32, #tpu.memory_space<vmem>>, vector<1x32xf32>
    %34 = vector.broadcast %33 : vector<1x32xf32> to vector<32x32xf32>
    %35 = arith.addf %32, %34 : vector<32x32xf32>
    %c0_16 = arith.constant 0 : index
    %c0_17 = arith.constant 0 : index
    %36 = vector.load %arg8[%c0_16, %c0_17] : memref<32x384xf32, #tpu.memory_space<vmem>>, vector<32x384xf32>
    %cst_18 = arith.constant dense<0.000000e+00> : vector<16x384xf32>
    %37 = tpu.matmul %29, %36, %cst_18 {dimension_numbers = #tpu.dot_dimension_numbers<[1], [0], [0], [1], [0, 0, 1, 1], [], []>} : vector<16x32xf32>, vector<32x384xf32>, vector<16x384xf32> -> vector<16x384xf32>
    %c0_19 = arith.constant 0 : index
    %c0_20 = arith.constant 0 : index
    %38 = vector.load %arg9[%c0_19, %c0_20] : memref<1x384xf32, #tpu.memory_space<vmem>>, vector<1x384xf32>
    %39 = vector.broadcast %38 : vector<1x384xf32> to vector<16x384xf32>
    %40 = arith.addf %37, %39 : vector<16x384xf32>
    %41 = vector.extract_strided_slice %40 {offsets = [0, 256], sizes = [16, 128], strides = [1, 1]} : vector<16x384xf32> to vector<16x128xf32>
    %c0_21 = arith.constant 0 : index
    %c0_22 = arith.constant 0 : index
    %42 = vector.load %arg15[%c0_21, %c0_22] : memref<16x128xf32, #tpu.memory_space<vmem>>, vector<16x128xf32>
    tpu.vector_store %arg15[%c0_21, %c0_22], %41 {strides = array<i32>} : memref<16x128xf32, #tpu.memory_space<vmem>>, vector<16x128xf32>,
    %43 = vector.extract_strided_slice %40 {offsets = [0, 256], sizes = [16, 32], strides = [1, 1]} : vector<16x384xf32> to vector<16x32xf32>
    %44 = arith.mulf %43, %43 : vector<16x32xf32>
    %cst_23 = arith.constant dense<0.000000e+00> : vector<16xf32>
    %45 = vector.multi_reduction <add>, %44, %cst_23 [1] : vector<16x32xf32> to vector<16xf32>
    %46 = vector.shape_cast %45 : vector<16xf32> to vector<16x1xf32>
    %47 = math.sqrt %46 : vector<16x1xf32>
    %cst_24 = arith.constant 9.99999993E-9 : f32
    %48 = vector.broadcast %cst_24 : f32 to vector<16x1xf32>
    %49 = arith.maximumf %47, %48 : vector<16x1xf32>
    %50 = vector.broadcast %49 : vector<16x1xf32> to vector<16x32xf32>
    %51 = arith.divf %43, %50 : vector<16x32xf32>
    %c0_25 = arith.constant 0 : index
    %c0_26 = arith.constant 0 : index
    %52 = vector.load %arg10[%c0_25, %c0_26] : memref<1x32xf32, #tpu.memory_space<vmem>>, vector<1x32xf32>
    %c0_27 = arith.constant 0 : index
    %c0_28 = arith.constant 0 : index
    %53 = vector.load %arg11[%c0_27, %c0_28] : memref<1x1xf32, #tpu.memory_space<vmem>>, vector<1x1xf32>
    %c0_29 = arith.constant 0 : index
    %c0_30 = arith.constant 0 : index
    %54 = vector.load %arg12[%c0_29, %c0_30] : memref<1x1xf32, #tpu.memory_space<vmem>>, vector<1x1xf32>
    %55 = arith.mulf %54, %54 : vector<1x1xf32>
    %c0_31 = arith.constant 0 : index
    %c0_32 = arith.constant 0 : index
    %56 = vector.load %arg5[%c0_31, %c0_32] : memref<2x8xf32, #tpu.memory_space<vmem>>, vector<1x8xf32>
    %57 = vector.extract_strided_slice %35 {offsets = [0, 0], sizes = [16, 32], strides = [1, 1]} : vector<32x32xf32> to vector<16x32xf32>
    %58 = vector.extract_strided_slice %40 {offsets = [0, 0], sizes = [8, 384], strides = [1, 1]} : vector<16x384xf32> to vector<8x384xf32>
    %59 = vector.extract_strided_slice %57 {offsets = [0, 0], sizes = [16, 8], strides = [1, 1]} : vector<16x32xf32> to vector<16x8xf32>
    %60 = vector.extract_strided_slice %58 {offsets = [0, 0], sizes = [8, 8], strides = [1, 1]} : vector<8x384xf32> to vector<8x8xf32>
    %cst_33 = arith.constant dense<0.000000e+00> : vector<16x8xf32>
    %61 = tpu.matmul %59, %60, %cst_33 {dimension_numbers = #tpu.dot_dimension_numbers<[1], [1], [0], [0], [0, 0, 1, 0], [], []>} : vector<16x8xf32>, vector<8x8xf32>, vector<16x8xf32> -> vector<16x8xf32>
    %62 = vector.broadcast %56 : vector<1x8xf32> to vector<16x8xf32>
    %63 = arith.addf %61, %62 : vector<16x8xf32>
    %cst_34 = arith.constant dense<0xFF800000> : vector<16xf32>
    %64 = vector.multi_reduction <maximumf>, %63, %cst_34 [1] : vector<16x8xf32> to vector<16xf32>
    %65 = vector.shape_cast %64 : vector<16xf32> to vector<16x1xf32>
    %66 = vector.broadcast %65 : vector<16x1xf32> to vector<16x8xf32>
    %67 = arith.subf %63, %66 : vector<16x8xf32>
    %68 = math.exp %67 : vector<16x8xf32>
    %cst_35 = arith.constant dense<0.000000e+00> : vector<16xf32>
    %69 = vector.multi_reduction <add>, %68, %cst_35 [1] : vector<16x8xf32> to vector<16xf32>
    %70 = vector.shape_cast %69 : vector<16xf32> to vector<16x1xf32>
    %71 = vector.broadcast %70 : vector<16x1xf32> to vector<16x8xf32>
    %72 = arith.divf %68, %71 : vector<16x8xf32>
    %73 = vector.extract_strided_slice %58 {offsets = [0, 128], sizes = [8, 32], strides = [1, 1]} : vector<8x384xf32> to vector<8x32xf32>
    %cst_36 = arith.constant dense<0.000000e+00> : vector<16x32xf32>
    %74 = tpu.matmul %72, %73, %cst_36 {dimension_numbers = #tpu.dot_dimension_numbers<[1], [0], [0], [1], [0, 0, 1, 1], [], []>} : vector<16x8xf32>, vector<8x32xf32>, vector<16x32xf32> -> vector<16x32xf32>
    %75 = vector.extract_strided_slice %57 {offsets = [0, 8], sizes = [16, 8], strides = [1, 1]} : vector<16x32xf32> to vector<16x8xf32>
    %76 = vector.extract_strided_slice %58 {offsets = [0, 8], sizes = [8, 8], strides = [1, 1]} : vector<8x384xf32> to vector<8x8xf32>
    %cst_37 = arith.constant dense<0.000000e+00> : vector<16x8xf32>
    %77 = tpu.matmul %75, %76, %cst_37 {dimension_numbers = #tpu.dot_dimension_numbers<[1], [1], [0], [0], [0, 0, 1, 0], [], []>} : vector<16x8xf32>, vector<8x8xf32>, vector<16x8xf32> -> vector<16x8xf32>
    %78 = vector.broadcast %56 : vector<1x8xf32> to vector<16x8xf32>
    %79 = arith.addf %77, %78 : vector<16x8xf32>
    %cst_38 = arith.constant dense<0xFF800000> : vector<16xf32>
    %80 = vector.multi_reduction <maximumf>, %79, %cst_38 [1] : vector<16x8xf32> to vector<16xf32>
    %81 = vector.shape_cast %80 : vector<16xf32> to vector<16x1xf32>
    %82 = vector.broadcast %81 : vector<16x1xf32> to vector<16x8xf32>
    %83 = arith.subf %79, %82 : vector<16x8xf32>
    %84 = math.exp %83 : vector<16x8xf32>
    %cst_39 = arith.constant dense<0.000000e+00> : vector<16xf32>
    %85 = vector.multi_reduction <add>, %84, %cst_39 [1] : vector<16x8xf32> to vector<16xf32>
    %86 = vector.shape_cast %85 : vector<16xf32> to vector<16x1xf32>
    %87 = vector.broadcast %86 : vector<16x1xf32> to vector<16x8xf32>
    %88 = arith.divf %84, %87 : vector<16x8xf32>
    %89 = vector.extract_strided_slice %58 {offsets = [0, 160], sizes = [8, 32], strides = [1, 1]} : vector<8x384xf32> to vector<8x32xf32>
    %cst_40 = arith.constant dense<0.000000e+00> : vector<16x32xf32>
    %90 = tpu.matmul %88, %89, %cst_40 {dimension_numbers = #tpu.dot_dimension_numbers<[1], [0], [0], [1], [0, 0, 1, 1], [], []>} : vector<16x8xf32>, vector<8x32xf32>, vector<16x32xf32> -> vector<16x32xf32>
    %91 = arith.addf %74, %90 : vector<16x32xf32>
    %92 = vector.extract_strided_slice %57 {offsets = [0, 16], sizes = [16, 8], strides = [1, 1]} : vector<16x32xf32> to vector<16x8xf32>
    %93 = vector.extract_strided_slice %58 {offsets = [0, 16], sizes = [8, 8], strides = [1, 1]} : vector<8x384xf32> to vector<8x8xf32>
    %cst_41 = arith.constant dense<0.000000e+00> : vector<16x8xf32>
    %94 = tpu.matmul %92, %93, %cst_41 {dimension_numbers = #tpu.dot_dimension_numbers<[1], [1], [0], [0], [0, 0, 1, 0], [], []>} : vector<16x8xf32>, vector<8x8xf32>, vector<16x8xf32> -> vector<16x8xf32>
    %95 = vector.broadcast %56 : vector<1x8xf32> to vector<16x8xf32>
    %96 = arith.addf %94, %95 : vector<16x8xf32>
    %cst_42 = arith.constant dense<0xFF800000> : vector<16xf32>
    %97 = vector.multi_reduction <maximumf>, %96, %cst_42 [1] : vector<16x8xf32> to vector<16xf32>
    %98 = vector.shape_cast %97 : vector<16xf32> to vector<16x1xf32>
    %99 = vector.broadcast %98 : vector<16x1xf32> to vector<16x8xf32>
    %100 = arith.subf %96, %99 : vector<16x8xf32>
    %101 = math.exp %100 : vector<16x8xf32>
    %cst_43 = arith.constant dense<0.000000e+00> : vector<16xf32>
    %102 = vector.multi_reduction <add>, %101, %cst_43 [1] : vector<16x8xf32> to vector<16xf32>
    %103 = vector.shape_cast %102 : vector<16xf32> to vector<16x1xf32>
    %104 = vector.broadcast %103 : vector<16x1xf32> to vector<16x8xf32>
    %105 = arith.divf %101, %104 : vector<16x8xf32>
    %106 = vector.extract_strided_slice %58 {offsets = [0, 192], sizes = [8, 32], strides = [1, 1]} : vector<8x384xf32> to vector<8x32xf32>
    %cst_44 = arith.constant dense<0.000000e+00> : vector<16x32xf32>
    %107 = tpu.matmul %105, %106, %cst_44 {dimension_numbers = #tpu.dot_dimension_numbers<[1], [0], [0], [1], [0, 0, 1, 1], [], []>} : vector<16x8xf32>, vector<8x32xf32>, vector<16x32xf32> -> vector<16x32xf32>
    %108 = arith.addf %91, %107 : vector<16x32xf32>
    %109 = vector.extract_strided_slice %57 {offsets = [0, 24], sizes = [16, 8], strides = [1, 1]} : vector<16x32xf32> to vector<16x8xf32>
    %110 = vector.extract_strided_slice %58 {offsets = [0, 24], sizes = [8, 8], strides = [1, 1]} : vector<8x384xf32> to vector<8x8xf32>
    %cst_45 = arith.constant dense<0.000000e+00> : vector<16x8xf32>
    %111 = tpu.matmul %109, %110, %cst_45 {dimension_numbers = #tpu.dot_dimension_numbers<[1], [1], [0], [0], [0, 0, 1, 0], [], []>} : vector<16x8xf32>, vector<8x8xf32>, vector<16x8xf32> -> vector<16x8xf32>
    %112 = vector.broadcast %56 : vector<1x8xf32> to vector<16x8xf32>
    %113 = arith.addf %111, %112 : vector<16x8xf32>
    %cst_46 = arith.constant dense<0xFF800000> : vector<16xf32>
    %114 = vector.multi_reduction <maximumf>, %113, %cst_46 [1] : vector<16x8xf32> to vector<16xf32>
    %115 = vector.shape_cast %114 : vector<16xf32> to vector<16x1xf32>
    %116 = vector.broadcast %115 : vector<16x1xf32> to vector<16x8xf32>
    %117 = arith.subf %113, %116 : vector<16x8xf32>
    %118 = math.exp %117 : vector<16x8xf32>
    %cst_47 = arith.constant dense<0.000000e+00> : vector<16xf32>
    %119 = vector.multi_reduction <add>, %118, %cst_47 [1] : vector<16x8xf32> to vector<16xf32>
    %120 = vector.shape_cast %119 : vector<16xf32> to vector<16x1xf32>
    %121 = vector.broadcast %120 : vector<16x1xf32> to vector<16x8xf32>
    %122 = arith.divf %118, %121 : vector<16x8xf32>
    %123 = vector.extract_strided_slice %58 {offsets = [0, 224], sizes = [8, 32], strides = [1, 1]} : vector<8x384xf32> to vector<8x32xf32>
    %cst_48 = arith.constant dense<0.000000e+00> : vector<16x32xf32>
    %124 = tpu.matmul %122, %123, %cst_48 {dimension_numbers = #tpu.dot_dimension_numbers<[1], [0], [0], [1], [0, 0, 1, 1], [], []>} : vector<16x8xf32>, vector<8x32xf32>, vector<16x32xf32> -> vector<16x32xf32>
    %125 = arith.addf %108, %124 : vector<16x32xf32>
    %126 = vector.broadcast %52 : vector<1x32xf32> to vector<16x32xf32>
    %127 = arith.addf %125, %126 : vector<16x32xf32>
    %128 = arith.mulf %127, %127 : vector<16x32xf32>
    %cst_49 = arith.constant dense<0.000000e+00> : vector<16xf32>
    %129 = vector.multi_reduction <add>, %128, %cst_49 [1] : vector<16x32xf32> to vector<16xf32>
    %130 = vector.shape_cast %129 : vector<16xf32> to vector<16x1xf32>
    %131 = math.sqrt %130 : vector<16x1xf32>
    %cst_50 = arith.constant 9.99999993E-9 : f32
    %132 = vector.broadcast %cst_50 : f32 to vector<16x1xf32>
    %133 = arith.maximumf %131, %132 : vector<16x1xf32>
    %134 = vector.broadcast %133 : vector<16x1xf32> to vector<16x32xf32>
    %135 = arith.divf %127, %134 : vector<16x32xf32>
    %136 = vector.extract_strided_slice %51 {offsets = [0, 0], sizes = [8, 32], strides = [1, 1]} : vector<16x32xf32> to vector<8x32xf32>
    %cst_51 = arith.constant dense<0.000000e+00> : vector<8x16xf32>
    %137 = tpu.matmul %136, %135, %cst_51 {dimension_numbers = #tpu.dot_dimension_numbers<[1], [1], [0], [0], [0, 0, 1, 0], [], []>} : vector<8x32xf32>, vector<16x32xf32>, vector<8x16xf32> -> vector<8x16xf32>
    %cst_52 = arith.constant 1.000000e+00 : f32
    %138 = vector.broadcast %cst_52 : f32 to vector<8x16xf32>
    %139 = arith.subf %138, %137 : vector<8x16xf32>
    %cst_53 = arith.constant -5.000000e-01 : f32
    %140 = vector.broadcast %cst_53 : f32 to vector<8x16xf32>
    %141 = arith.mulf %140, %139 : vector<8x16xf32>
    %142 = arith.mulf %141, %139 : vector<8x16xf32>
    %143 = vector.broadcast %55 : vector<1x1xf32> to vector<8x16xf32>
    %144 = arith.divf %142, %143 : vector<8x16xf32>
    %145 = math.exp %144 : vector<8x16xf32>
    %146 = vector.broadcast %53 : vector<1x1xf32> to vector<8x16xf32>
    %147 = arith.mulf %146, %145 : vector<8x16xf32>
    %c1_54 = arith.constant 1 : index
    %c0_55 = arith.constant 0 : index
    %148 = vector.load %arg5[%c1_54, %c0_55] : memref<2x8xf32, #tpu.memory_space<vmem>>, vector<1x8xf32>
    %149 = vector.extract_strided_slice %35 {offsets = [16, 0], sizes = [16, 32], strides = [1, 1]} : vector<32x32xf32> to vector<16x32xf32>
    %150 = vector.extract_strided_slice %40 {offsets = [8, 0], sizes = [8, 384], strides = [1, 1]} : vector<16x384xf32> to vector<8x384xf32>
    %151 = vector.extract_strided_slice %149 {offsets = [0, 0], sizes = [16, 8], strides = [1, 1]} : vector<16x32xf32> to vector<16x8xf32>
    %152 = vector.extract_strided_slice %150 {offsets = [0, 0], sizes = [8, 8], strides = [1, 1]} : vector<8x384xf32> to vector<8x8xf32>
    %cst_56 = arith.constant dense<0.000000e+00> : vector<16x8xf32>
    %153 = tpu.matmul %151, %152, %cst_56 {dimension_numbers = #tpu.dot_dimension_numbers<[1], [1], [0], [0], [0, 0, 1, 0], [], []>} : vector<16x8xf32>, vector<8x8xf32>, vector<16x8xf32> -> vector<16x8xf32>
    %154 = vector.broadcast %148 : vector<1x8xf32> to vector<16x8xf32>
    %155 = arith.addf %153, %154 : vector<16x8xf32>
    %cst_57 = arith.constant dense<0xFF800000> : vector<16xf32>
    %156 = vector.multi_reduction <maximumf>, %155, %cst_57 [1] : vector<16x8xf32> to vector<16xf32>
    %157 = vector.shape_cast %156 : vector<16xf32> to vector<16x1xf32>
    %158 = vector.broadcast %157 : vector<16x1xf32> to vector<16x8xf32>
    %159 = arith.subf %155, %158 : vector<16x8xf32>
    %160 = math.exp %159 : vector<16x8xf32>
    %cst_58 = arith.constant dense<0.000000e+00> : vector<16xf32>
    %161 = vector.multi_reduction <add>, %160, %cst_58 [1] : vector<16x8xf32> to vector<16xf32>
    %162 = vector.shape_cast %161 : vector<16xf32> to vector<16x1xf32>
    %163 = vector.broadcast %162 : vector<16x1xf32> to vector<16x8xf32>
    %164 = arith.divf %160, %163 : vector<16x8xf32>
    %165 = vector.extract_strided_slice %150 {offsets = [0, 128], sizes = [8, 32], strides = [1, 1]} : vector<8x384xf32> to vector<8x32xf32>
    %cst_59 = arith.constant dense<0.000000e+00> : vector<16x32xf32>
    %166 = tpu.matmul %164, %165, %cst_59 {dimension_numbers = #tpu.dot_dimension_numbers<[1], [0], [0], [1], [0, 0, 1, 1], [], []>} : vector<16x8xf32>, vector<8x32xf32>, vector<16x32xf32> -> vector<16x32xf32>
    %167 = vector.extract_strided_slice %149 {offsets = [0, 8], sizes = [16, 8], strides = [1, 1]} : vector<16x32xf32> to vector<16x8xf32>
    %168 = vector.extract_strided_slice %150 {offsets = [0, 8], sizes = [8, 8], strides = [1, 1]} : vector<8x384xf32> to vector<8x8xf32>
    %cst_60 = arith.constant dense<0.000000e+00> : vector<16x8xf32>
    %169 = tpu.matmul %167, %168, %cst_60 {dimension_numbers = #tpu.dot_dimension_numbers<[1], [1], [0], [0], [0, 0, 1, 0], [], []>} : vector<16x8xf32>, vector<8x8xf32>, vector<16x8xf32> -> vector<16x8xf32>
    %170 = vector.broadcast %148 : vector<1x8xf32> to vector<16x8xf32>
    %171 = arith.addf %169, %170 : vector<16x8xf32>
    %cst_61 = arith.constant dense<0xFF800000> : vector<16xf32>
    %172 = vector.multi_reduction <maximumf>, %171, %cst_61 [1] : vector<16x8xf32> to vector<16xf32>
    %173 = vector.shape_cast %172 : vector<16xf32> to vector<16x1xf32>
    %174 = vector.broadcast %173 : vector<16x1xf32> to vector<16x8xf32>
    %175 = arith.subf %171, %174 : vector<16x8xf32>
    %176 = math.exp %175 : vector<16x8xf32>
    %cst_62 = arith.constant dense<0.000000e+00> : vector<16xf32>
    %177 = vector.multi_reduction <add>, %176, %cst_62 [1] : vector<16x8xf32> to vector<16xf32>
    %178 = vector.shape_cast %177 : vector<16xf32> to vector<16x1xf32>
    %179 = vector.broadcast %178 : vector<16x1xf32> to vector<16x8xf32>
    %180 = arith.divf %176, %179 : vector<16x8xf32>
    %181 = vector.extract_strided_slice %150 {offsets = [0, 160], sizes = [8, 32], strides = [1, 1]} : vector<8x384xf32> to vector<8x32xf32>
    %cst_63 = arith.constant dense<0.000000e+00> : vector<16x32xf32>
    %182 = tpu.matmul %180, %181, %cst_63 {dimension_numbers = #tpu.dot_dimension_numbers<[1], [0], [0], [1], [0, 0, 1, 1], [], []>} : vector<16x8xf32>, vector<8x32xf32>, vector<16x32xf32> -> vector<16x32xf32>
    %183 = arith.addf %166, %182 : vector<16x32xf32>
    %184 = vector.extract_strided_slice %149 {offsets = [0, 16], sizes = [16, 8], strides = [1, 1]} : vector<16x32xf32> to vector<16x8xf32>
    %185 = vector.extract_strided_slice %150 {offsets = [0, 16], sizes = [8, 8], strides = [1, 1]} : vector<8x384xf32> to vector<8x8xf32>
    %cst_64 = arith.constant dense<0.000000e+00> : vector<16x8xf32>
    %186 = tpu.matmul %184, %185, %cst_64 {dimension_numbers = #tpu.dot_dimension_numbers<[1], [1], [0], [0], [0, 0, 1, 0], [], []>} : vector<16x8xf32>, vector<8x8xf32>, vector<16x8xf32> -> vector<16x8xf32>
    %187 = vector.broadcast %148 : vector<1x8xf32> to vector<16x8xf32>
    %188 = arith.addf %186, %187 : vector<16x8xf32>
    %cst_65 = arith.constant dense<0xFF800000> : vector<16xf32>
    %189 = vector.multi_reduction <maximumf>, %188, %cst_65 [1] : vector<16x8xf32> to vector<16xf32>
    %190 = vector.shape_cast %189 : vector<16xf32> to vector<16x1xf32>
    %191 = vector.broadcast %190 : vector<16x1xf32> to vector<16x8xf32>
    %192 = arith.subf %188, %191 : vector<16x8xf32>
    %193 = math.exp %192 : vector<16x8xf32>
    %cst_66 = arith.constant dense<0.000000e+00> : vector<16xf32>
    %194 = vector.multi_reduction <add>, %193, %cst_66 [1] : vector<16x8xf32> to vector<16xf32>
    %195 = vector.shape_cast %194 : vector<16xf32> to vector<16x1xf32>
    %196 = vector.broadcast %195 : vector<16x1xf32> to vector<16x8xf32>
    %197 = arith.divf %193, %196 : vector<16x8xf32>
    %198 = vector.extract_strided_slice %150 {offsets = [0, 192], sizes = [8, 32], strides = [1, 1]} : vector<8x384xf32> to vector<8x32xf32>
    %cst_67 = arith.constant dense<0.000000e+00> : vector<16x32xf32>
    %199 = tpu.matmul %197, %198, %cst_67 {dimension_numbers = #tpu.dot_dimension_numbers<[1], [0], [0], [1], [0, 0, 1, 1], [], []>} : vector<16x8xf32>, vector<8x32xf32>, vector<16x32xf32> -> vector<16x32xf32>
    %200 = arith.addf %183, %199 : vector<16x32xf32>
    %201 = vector.extract_strided_slice %149 {offsets = [0, 24], sizes = [16, 8], strides = [1, 1]} : vector<16x32xf32> to vector<16x8xf32>
    %202 = vector.extract_strided_slice %150 {offsets = [0, 24], sizes = [8, 8], strides = [1, 1]} : vector<8x384xf32> to vector<8x8xf32>
    %cst_68 = arith.constant dense<0.000000e+00> : vector<16x8xf32>
    %203 = tpu.matmul %201, %202, %cst_68 {dimension_numbers = #tpu.dot_dimension_numbers<[1], [1], [0], [0], [0, 0, 1, 0], [], []>} : vector<16x8xf32>, vector<8x8xf32>, vector<16x8xf32> -> vector<16x8xf32>
    %204 = vector.broadcast %148 : vector<1x8xf32> to vector<16x8xf32>
    %205 = arith.addf %203, %204 : vector<16x8xf32>
    %cst_69 = arith.constant dense<0xFF800000> : vector<16xf32>
    %206 = vector.multi_reduction <maximumf>, %205, %cst_69 [1] : vector<16x8xf32> to vector<16xf32>
    %207 = vector.shape_cast %206 : vector<16xf32> to vector<16x1xf32>
    %208 = vector.broadcast %207 : vector<16x1xf32> to vector<16x8xf32>
    %209 = arith.subf %205, %208 : vector<16x8xf32>
    %210 = math.exp %209 : vector<16x8xf32>
    %cst_70 = arith.constant dense<0.000000e+00> : vector<16xf32>
    %211 = vector.multi_reduction <add>, %210, %cst_70 [1] : vector<16x8xf32> to vector<16xf32>
    %212 = vector.shape_cast %211 : vector<16xf32> to vector<16x1xf32>
    %213 = vector.broadcast %212 : vector<16x1xf32> to vector<16x8xf32>
    %214 = arith.divf %210, %213 : vector<16x8xf32>
    %215 = vector.extract_strided_slice %150 {offsets = [0, 224], sizes = [8, 32], strides = [1, 1]} : vector<8x384xf32> to vector<8x32xf32>
    %cst_71 = arith.constant dense<0.000000e+00> : vector<16x32xf32>
    %216 = tpu.matmul %214, %215, %cst_71 {dimension_numbers = #tpu.dot_dimension_numbers<[1], [0], [0], [1], [0, 0, 1, 1], [], []>} : vector<16x8xf32>, vector<8x32xf32>, vector<16x32xf32> -> vector<16x32xf32>
    %217 = arith.addf %200, %216 : vector<16x32xf32>
    %218 = vector.broadcast %52 : vector<1x32xf32> to vector<16x32xf32>
    %219 = arith.addf %217, %218 : vector<16x32xf32>
    %220 = arith.mulf %219, %219 : vector<16x32xf32>
    %cst_72 = arith.constant dense<0.000000e+00> : vector<16xf32>
    %221 = vector.multi_reduction <add>, %220, %cst_72 [1] : vector<16x32xf32> to vector<16xf32>
    %222 = vector.shape_cast %221 : vector<16xf32> to vector<16x1xf32>
    %223 = math.sqrt %222 : vector<16x1xf32>
    %cst_73 = arith.constant 9.99999993E-9 : f32
    %224 = vector.broadcast %cst_73 : f32 to vector<16x1xf32>
    %225 = arith.maximumf %223, %224 : vector<16x1xf32>
    %226 = vector.broadcast %225 : vector<16x1xf32> to vector<16x32xf32>
    %227 = arith.divf %219, %226 : vector<16x32xf32>
    %228 = vector.extract_strided_slice %51 {offsets = [8, 0], sizes = [8, 32], strides = [1, 1]} : vector<16x32xf32> to vector<8x32xf32>
    %cst_74 = arith.constant dense<0.000000e+00> : vector<8x16xf32>
    %229 = tpu.matmul %228, %227, %cst_74 {dimension_numbers = #tpu.dot_dimension_numbers<[1], [1], [0], [0], [0, 0, 1, 0], [], []>} : vector<8x32xf32>, vector<16x32xf32>, vector<8x16xf32> -> vector<8x16xf32>
    %cst_75 = arith.constant 1.000000e+00 : f32
    %230 = vector.broadcast %cst_75 : f32 to vector<8x16xf32>
    %231 = arith.subf %230, %229 : vector<8x16xf32>
    %cst_76 = arith.constant -5.000000e-01 : f32
    %232 = vector.broadcast %cst_76 : f32 to vector<8x16xf32>
    %233 = arith.mulf %232, %231 : vector<8x16xf32>
    %234 = arith.mulf %233, %231 : vector<8x16xf32>
    %235 = vector.broadcast %55 : vector<1x1xf32> to vector<8x16xf32>
    %236 = arith.divf %234, %235 : vector<8x16xf32>
    %237 = math.exp %236 : vector<8x16xf32>
    %238 = vector.broadcast %53 : vector<1x1xf32> to vector<8x16xf32>
    %239 = arith.mulf %238, %237 : vector<8x16xf32>
    %240 = tpu.concatenate %147, %239 in 0 : vector<8x16xf32>, vector<8x16xf32> -> vector<16x16xf32>
    %c0_77 = arith.constant 0 : index
    %c0_78 = arith.constant 0 : index
    %241 = vector.load %arg13[%c0_77, %c0_78] : memref<16x512xf32, #tpu.memory_space<vmem>>, vector<16x512xf32>
    %cst_79 = arith.constant dense<0.000000e+00> : vector<16x512xf32>
    %242 = tpu.matmul %240, %241, %cst_79 {dimension_numbers = #tpu.dot_dimension_numbers<[1], [0], [0], [1], [0, 0, 1, 1], [], []>} : vector<16x16xf32>, vector<16x512xf32>, vector<16x512xf32> -> vector<16x512xf32>
    %c0_80 = arith.constant 0 : index
    %c0_81 = arith.constant 0 : index
    %243 = vector.load %arg14[%c0_80, %c0_81] : memref<16x512xf32, #tpu.memory_space<vmem>>, vector<16x512xf32>
    tpu.vector_store %arg14[%c0_80, %c0_81], %242 {strides = array<i32>} : memref<16x512xf32, #tpu.memory_space<vmem>>, vector<16x512xf32>,
    return
  }
  func.func @transform_0(%arg0: i32) -> (i32, i32) {
    %c0_i32 = arith.constant 0 : i32
    %c0_i32_0 = arith.constant 0 : i32
    %c0_i32_1 = arith.constant 0 : i32
    return %c0_i32, %c0_i32_0 : i32, i32
  }
  func.func @transform_1(%arg0: i32) -> (i32, i32) {
    %c0_i32 = arith.constant 0 : i32
    %c0_i32_0 = arith.constant 0 : i32
    %c0_i32_1 = arith.constant 0 : i32
    return %c0_i32, %c0_i32_0 : i32, i32
  }
  func.func @transform_2(%arg0: i32) -> (i32, i32) {
    %c0_i32 = arith.constant 0 : i32
    %c0_i32_0 = arith.constant 0 : i32
    %c0_i32_1 = arith.constant 0 : i32
    return %c0_i32, %c0_i32_0 : i32, i32
  }
  func.func @transform_3(%arg0: i32) -> (i32, i32) {
    %c0_i32 = arith.constant 0 : i32
    %c0_i32_0 = arith.constant 0 : i32
    %c0_i32_1 = arith.constant 0 : i32
    return %c0_i32, %c0_i32_0 : i32, i32
  }
  func.func @transform_4(%arg0: i32) -> (i32, i32) {
    %c0_i32 = arith.constant 0 : i32
    %c0_i32_0 = arith.constant 0 : i32
    %c0_i32_1 = arith.constant 0 : i32
    return %c0_i32, %c0_i32_0 : i32, i32
  }
  func.func @transform_5(%arg0: i32) -> (i32, i32) {
    %c0_i32 = arith.constant 0 : i32
    %c0_i32_0 = arith.constant 0 : i32
    %c0_i32_1 = arith.constant 0 : i32
    return %c0_i32, %c0_i32_0 : i32, i32
  }
  func.func @transform_6(%arg0: i32) -> (i32, i32) {
    %c0_i32 = arith.constant 0 : i32
    %c0_i32_0 = arith.constant 0 : i32
    %c0_i32_1 = arith.constant 0 : i32
    return %c0_i32, %c0_i32_0 : i32, i32
  }
  func.func @transform_7(%arg0: i32) -> (i32, i32) {
    %c0_i32 = arith.constant 0 : i32
    %c0_i32_0 = arith.constant 0 : i32
    %c0_i32_1 = arith.constant 0 : i32
    return %c0_i32, %c0_i32_0 : i32, i32
  }
  func.func @transform_8(%arg0: i32) -> (i32, i32) {
    %c0_i32 = arith.constant 0 : i32
    %c0_i32_0 = arith.constant 0 : i32
    %c0_i32_1 = arith.constant 0 : i32
    return %c0_i32, %c0_i32_0 : i32, i32
  }
  func.func @transform_9(%arg0: i32) -> (i32, i32) {
    %c0_i32 = arith.constant 0 : i32
    %c0_i32_0 = arith.constant 0 : i32
    %c0_i32_1 = arith.constant 0 : i32
    return %c0_i32, %c0_i32_0 : i32, i32
  }
  func.func @transform_10(%arg0: i32) -> (i32, i32) {
    %c0_i32 = arith.constant 0 : i32
    %c0_i32_0 = arith.constant 0 : i32
    %c0_i32_1 = arith.constant 0 : i32
    return %c0_i32, %c0_i32_0 : i32, i32
  }
  func.func @transform_11(%arg0: i32) -> (i32, i32) {
    %c0_i32 = arith.constant 0 : i32
    %c0_i32_0 = arith.constant 0 : i32
    %c0_i32_1 = arith.constant 0 : i32
    return %c0_i32, %c0_i32_0 : i32, i32
  }
  func.func @transform_12(%arg0: i32) -> (i32, i32) {
    %c0_i32 = arith.constant 0 : i32
    %c0_i32_0 = arith.constant 0 : i32
    %c0_i32_1 = arith.constant 0 : i32
    return %c0_i32, %c0_i32_0 : i32, i32
  }
  func.func @transform_13(%arg0: i32) -> (i32, i32) {
    %c0_i32 = arith.constant 0 : i32
    %c0_i32_0 = arith.constant 0 : i32
    %c0_i32_1 = arith.constant 0 : i32
    return %c0_i32, %c0_i32_0 : i32, i32
  }
  func.func @transform_14(%arg0: i32) -> (i32, i32) {
    %c0_i32 = arith.constant 0 : i32
    %c0_i32_0 = arith.constant 0 : i32
    %c0_i32_1 = arith.constant 0 : i32
    return %c0_i32, %c0_i32_0 : i32, i32
  }
}

</mosaic_0001>

<llo_original>
// kernel: tpu_custom_call.1
$region0: #{tpu_custom_call.1}
  #allocation0 [shape = 'u32[]', space=smem, size = 0x4, offset = 0x4, fixed_abs, tag = 'smem constant byte address 0x4 - core index']
  #allocation1 [shape = 'u32[144,128]{1,0:T(1,128)}', space=vmem, size = 0x12000, scoped, tag = 'internal scratch']
  #allocation2 [shape = 'f32[1,1]{1,0:T(1,128)S(1)}', space=vmem, size = 0x200, scoped, tag = 'scoped memory for tpu_custom_call.1']
  #allocation3 [shape = 'f32[1,1]{1,0:T(1,128)S(1)}', space=vmem, size = 0x200, scoped, tag = 'scoped memory for tpu_custom_call.1']
  %s0 = inlined_call_operand.hbm [shape: f32[32,32], index: 0, kind: input, shape index: {}]
  %s1 = inlined_call_operand.hbm [shape: f32[32,32], index: 1, kind: input, shape index: {}]
  %s2 = inlined_call_operand.vmem [shape: f32[2,16], index: 2, kind: input, shape index: {}]
  %s3 = inlined_call_operand.vmem [shape: f32[16,32], index: 3, kind: input, shape index: {}]
  %s4 = inlined_call_operand.hbm [shape: f32[2,8], index: 4, kind: input, shape index: {}]
  %s5 = inlined_call_operand.hbm [shape: f32[32,32], index: 5, kind: input, shape index: {}]
  %s6 = inlined_call_operand.vmem [shape: f32[1,32], index: 6, kind: input, shape index: {}]
  %s7 = inlined_call_operand.hbm [shape: f32[32,384], index: 7, kind: input, shape index: {}]
  %s8 = inlined_call_operand.vmem [shape: f32[1,384], index: 8, kind: input, shape index: {}]
  %s9 = inlined_call_operand.vmem [shape: f32[1,32], index: 9, kind: input, shape index: {}]
  %s10 = inlined_call_operand.<no memory space> [shape: f32[1,1], index: 10, kind: input, shape index: {}]
  %s11 = inlined_call_operand.<no memory space> [shape: f32[1,1], index: 11, kind: input, shape index: {}]
  %s12 = inlined_call_operand.hbm [shape: f32[16,512], index: 12, kind: input, shape index: {}]
  %s13 = inlined_call_operand.hbm [shape: f32[16,512], index: 13, kind: output, shape index: {0}]
  %s14 = inlined_call_operand.hbm [shape: f32[16,128], index: 14, kind: output, shape index: {1}]
  %15 = xla_tuple %s13, %s14
  %s16 = sld [smem:[#allocation0]]
  $region94: #{tpu_custom_call.1} parent=0
    _
  %s18 = ssub.s32 1, %s16
  %s19 = scalar_select 0, %s18, %s16
  %v20 = vstv %s10
  %21 = vst [vmem:[#allocation2] sm:$0x1] %v20
  %v22 = vstv %s11
  %23 = vst [vmem:[#allocation3] sm:$0x1] %v22
  $region1: #{tpu_custom_call.1} parent=0
    #allocation4 [shape = 'u8[16384]{0}', space=vmem, size = 0x4000, scoped, tag = 'input window, operand 0, single buffered']
    #allocation5 [shape = 's32[1]{0}', space=sflag, size = 0x4, scoped, tag = 'scoped memory for tpu_custom_call.1']
    #allocation6 [shape = 's32[1]{0}', space=sflag, size = 0x4, scoped, tag = 'scoped memory for tpu_custom_call.1']
    #allocation7 [shape = 'u8[16384]{0}', space=vmem, size = 0x4000, scoped, tag = 'input window, operand 1, single buffered']
    #allocation8 [shape = 's32[1]{0}', space=sflag, size = 0x4, scoped, tag = 'scoped memory for tpu_custom_call.1']
    #allocation9 [shape = 'u8[1024]{0}', space=vmem, size = 0x400, scoped, tag = 'input window, operand 4, single buffered']
    #allocation10 [shape = 'u8[16384]{0}', space=vmem, size = 0x4000, scoped, tag = 'input window, operand 5, single buffered']
    #allocation11 [shape = 's32[1]{0}', space=sflag, size = 0x4, scoped, tag = 'scoped memory for tpu_custom_call.1']
    #allocation12 [shape = 'u8[49152]{0}', space=vmem, size = 0xc000, scoped, tag = 'input window, operand 7, single buffered']
    #allocation13 [shape = 'u8[32768]{0}', space=vmem, size = 0x8000, scoped, tag = 'input window, operand 12, single buffered']
    #allocation14 [shape = 's32[1]{0}', space=sflag, size = 0x4, scoped, tag = 'scoped memory for tpu_custom_call.1']
    #allocation15 [shape = 'u8[32768]{0}', space=vmem, size = 0x8000, scoped, tag = 'output window, operand 0, single buffered']
    #allocation16 [shape = 'u8[8192]{0}', space=vmem, size = 0x2000, scoped, tag = 'output window, operand 1, single buffered']
    #allocation17 [shape = 's32[1]{0}', space=sflag, size = 0x4, scoped, tag = 'scoped memory for tpu_custom_call.1']
    %24 = vsyncpa [#allocation5], 0
    %25 = vsyncpa [#allocation8], 0
    %26 = vsyncpa [#allocation11], 0
    %27 = vsyncpa [#allocation14], 0
    %28 = vsyncpa [#allocation6], 0
    %29 = vsyncpa [#allocation17], 0
    // Predicated region
    $region2: #{tpu_custom_call.1} parent=1 // pred_check
      _
    $region3: #{tpu_custom_call.1} parent=1 // pred_check_branch
      %31 = sbr.rel (0) target = $region5
    $region4: #{tpu_custom_call.1} parent=1 // pred_region
      %s33 = ssub.s32 512, 512
      %34 = vsyncadd [#allocation5], %s33
      %s35 = sshll.u32 [#allocation4], 4
      %s36 = int_to_ptr.vmem [resolvable:$true] %s35
      %41 = dma.hbm_to_vmem [thread:$0]  %s0, 512, %s36, [#allocation5], 128, 128, 8
    $region5: #{tpu_custom_call.1} parent=1 // pred_fallthru
      _
    // Predicated region
    $region6: #{tpu_custom_call.1} parent=1 // pred_check
      _
    $region7: #{tpu_custom_call.1} parent=1 // pred_check_branch
      %43 = sbr.rel (0) target = $region9
    $region8: #{tpu_custom_call.1} parent=1 // pred_region
      %s45 = ssub.s32 512, 512
      %46 = vsyncadd [#allocation8], %s45
      %s47 = sshll.u32 [#allocation7], 4
      %s48 = int_to_ptr.vmem [resolvable:$true] %s47
      %53 = dma.hbm_to_vmem [thread:$0]  %s1, 512, %s48, [#allocation8], 128, 128, 8
    $region9: #{tpu_custom_call.1} parent=1 // pred_fallthru
      _
    // Predicated region
    $region10: #{tpu_custom_call.1} parent=1 // pred_check
      _
    $region11: #{tpu_custom_call.1} parent=1 // pred_check_branch
      %55 = sbr.rel (0) target = $region13
    $region12: #{tpu_custom_call.1} parent=1 // pred_region
      _
    $region13: #{tpu_custom_call.1} parent=1 // pred_fallthru
      _
    // Predicated region
    $region14: #{tpu_custom_call.1} parent=1 // pred_check
      _
    $region15: #{tpu_custom_call.1} parent=1 // pred_check_branch
      %57 = sbr.rel (0) target = $region17
    $region16: #{tpu_custom_call.1} parent=1 // pred_region
      _
    $region17: #{tpu_custom_call.1} parent=1 // pred_fallthru
      _
    // Predicated region
    $region18: #{tpu_custom_call.1} parent=1 // pred_check
      _
    $region19: #{tpu_custom_call.1} parent=1 // pred_check_branch
      %59 = sbr.rel (0) target = $region21
    $region20: #{tpu_custom_call.1} parent=1 // pred_region
      %s61 = ssub.s32 32, 32
      %62 = vsyncadd [#allocation8], %s61
      %s64 = sshll.u32 [#allocation9], 4
      %s65 = int_to_ptr.vmem [resolvable:$true] %s64
      %67 = dma.hbm_to_vmem [thread:$0]  %s4, 32, %s65, [#allocation8]
    $region21: #{tpu_custom_call.1} parent=1 // pred_fallthru
      _
    // Predicated region
    $region22: #{tpu_custom_call.1} parent=1 // pred_check
      _
    $region23: #{tpu_custom_call.1} parent=1 // pred_check_branch
      %69 = sbr.rel (0) target = $region25
    $region24: #{tpu_custom_call.1} parent=1 // pred_region
      %s71 = ssub.s32 512, 512
      %72 = vsyncadd [#allocation11], %s71
      %s73 = sshll.u32 [#allocation10], 4
      %s74 = int_to_ptr.vmem [resolvable:$true] %s73
      %79 = dma.hbm_to_vmem [thread:$0]  %s5, 512, %s74, [#allocation11], 128, 128, 8
    $region25: #{tpu_custom_call.1} parent=1 // pred_fallthru
      _
    // Predicated region
    $region26: #{tpu_custom_call.1} parent=1 // pred_check
      _
    $region27: #{tpu_custom_call.1} parent=1 // pred_check_branch
      %81 = sbr.rel (0) target = $region29
    $region28: #{tpu_custom_call.1} parent=1 // pred_region
      _
    $region29: #{tpu_custom_call.1} parent=1 // pred_fallthru
      _
    // Predicated region
    $region30: #{tpu_custom_call.1} parent=1 // pred_check
      _
    $region31: #{tpu_custom_call.1} parent=1 // pred_check_branch
      %83 = sbr.rel (0) target = $region33
    $region32: #{tpu_custom_call.1} parent=1 // pred_region
      %s85 = ssub.s32 1536, 1536
      %86 = vsyncadd [#allocation11], %s85
      %s87 = sshll.u32 [#allocation12], 4
      %s88 = int_to_ptr.vmem [resolvable:$true] %s87
      %93 = dma.hbm_to_vmem [thread:$0]  %s7, 1536, %s88, [#allocation11], 384, 384, 24
    $region33: #{tpu_custom_call.1} parent=1 // pred_fallthru
      _
    // Predicated region
    $region34: #{tpu_custom_call.1} parent=1 // pred_check
      _
    $region35: #{tpu_custom_call.1} parent=1 // pred_check_branch
      %95 = sbr.rel (0) target = $region37
    $region36: #{tpu_custom_call.1} parent=1 // pred_region
      _
    $region37: #{tpu_custom_call.1} parent=1 // pred_fallthru
      _
    // Predicated region
    $region38: #{tpu_custom_call.1} parent=1 // pred_check
      _
    $region39: #{tpu_custom_call.1} parent=1 // pred_check_branch
      %97 = sbr.rel (0) target = $region41
    $region40: #{tpu_custom_call.1} parent=1 // pred_region
      _
    $region41: #{tpu_custom_call.1} parent=1 // pred_fallthru
      _
    // Predicated region
    $region42: #{tpu_custom_call.1} parent=1 // pred_check
      _
    $region43: #{tpu_custom_call.1} parent=1 // pred_check_branch
      %99 = sbr.rel (0) target = $region45
    $region44: #{tpu_custom_call.1} parent=1 // pred_region
      _
    $region45: #{tpu_custom_call.1} parent=1 // pred_fallthru
      _
    // Predicated region
    $region46: #{tpu_custom_call.1} parent=1 // pred_check
      _
    $region47: #{tpu_custom_call.1} parent=1 // pred_check_branch
      %101 = sbr.rel (0) target = $region49
    $region48: #{tpu_custom_call.1} parent=1 // pred_region
      _
    $region49: #{tpu_custom_call.1} parent=1 // pred_fallthru
      _
    // Predicated region
    $region50: #{tpu_custom_call.1} parent=1 // pred_check
      _
    $region51: #{tpu_custom_call.1} parent=1 // pred_check_branch
      %103 = sbr.rel (0) target = $region53
    $region52: #{tpu_custom_call.1} parent=1 // pred_region
      %s105 = ssub.s32 1024, 1024
      %106 = vsyncadd [#allocation14], %s105
      %s107 = sshll.u32 [#allocation13], 4
      %s108 = int_to_ptr.vmem [resolvable:$true] %s107
      %113 = dma.hbm_to_vmem [thread:$0]  %s12, 1024, %s108, [#allocation14], 512, 512, 32
    $region53: #{tpu_custom_call.1} parent=1 // pred_fallthru
      _
    // Predicated region
    $region54: #{tpu_custom_call.1} parent=1 // pred_check
      _
    $region55: #{tpu_custom_call.1} parent=1 // pred_check_branch
      %115 = sbr.rel (0) target = $region57
    $region56: #{tpu_custom_call.1} parent=1 // pred_region
      %116 = dma.done [#allocation5], 512
    $region57: #{tpu_custom_call.1} parent=1 // pred_fallthru
      _
    // Predicated region
    $region58: #{tpu_custom_call.1} parent=1 // pred_check
      _
    $region59: #{tpu_custom_call.1} parent=1 // pred_check_branch
      %118 = sbr.rel (0) target = $region61
    $region60: #{tpu_custom_call.1} parent=1 // pred_region
      %119 = dma.done [#allocation8], 512
    $region61: #{tpu_custom_call.1} parent=1 // pred_fallthru
      _
    // Predicated region
    $region62: #{tpu_custom_call.1} parent=1 // pred_check
      _
    $region63: #{tpu_custom_call.1} parent=1 // pred_check_branch
      %121 = sbr.rel (0) target = $region65
    $region64: #{tpu_custom_call.1} parent=1 // pred_region
      %122 = dma.done [#allocation8], 32
    $region65: #{tpu_custom_call.1} parent=1 // pred_fallthru
      _
    // Predicated region
    $region66: #{tpu_custom_call.1} parent=1 // pred_check
      _
    $region67: #{tpu_custom_call.1} parent=1 // pred_check_branch
      %124 = sbr.rel (0) target = $region69
    $region68: #{tpu_custom_call.1} parent=1 // pred_region
      %125 = dma.done [#allocation11], 512
    $region69: #{tpu_custom_call.1} parent=1 // pred_fallthru
      _
    // Predicated region
    $region70: #{tpu_custom_call.1} parent=1 // pred_check
      _
    $region71: #{tpu_custom_call.1} parent=1 // pred_check_branch
      %127 = sbr.rel (0) target = $region73
    $region72: #{tpu_custom_call.1} parent=1 // pred_region
      %128 = dma.done [#allocation11], 1536
    $region73: #{tpu_custom_call.1} parent=1 // pred_fallthru
      _
    // Predicated region
    $region74: #{tpu_custom_call.1} parent=1 // pred_check
      _
    $region75: #{tpu_custom_call.1} parent=1 // pred_check_branch
      %130 = sbr.rel (0) target = $region77
    $region76: #{tpu_custom_call.1} parent=1 // pred_region
      %131 = dma.done [#allocation14], 1024
    $region77: #{tpu_custom_call.1} parent=1 // pred_fallthru
      _
    %v132 = vld [vmem:[#allocation4] sm:$0xff]
    %v133 = vld [vmem:[#allocation4 + $0x8] sm:$0xff]
    %v134 = vld [vmem:[#allocation4 + $0x10] sm:$0xff]
    %v135 = vld [vmem:[#allocation4 + $0x18] sm:$0xff]
    %v136 = vld [vmem:[#allocation7] sm:$0xff]
    %v137 = vld [vmem:[#allocation7 + $0x8] sm:$0xff]
    %v138 = vld [vmem:[#allocation7 + $0x10] sm:$0xff]
    %v139 = vld [vmem:[#allocation7 + $0x18] sm:$0xff]
    %v140 = vld [vmem:[%s3] sm:$0xff]
    %v141 = vld [vmem:[%s3 + $0x8] sm:$0xff]
    %v142 = vlaneseq
    %v143 = vshrl.u32 %v142, 7
    %v144 = vadd.s32 %v143, 8
    %v145 = vld [vmem:[%s2] sm:$0x1]
    %vm146 = vcmask 122880
    %v147 = vsel %vm146, %v145, 0.0
    %148 = vadd.xlane.f32.xlu0 %v147
    %v149 = vpop.xlane.xlu0 %148
    %vm150 = vcmask 261120
    %v151 = vsel %vm150, %v132, 0.0
    %v152 = vsel %vm150, %v133, 0.0
    %v153 = vadd.f32 %v151, %v152
    %v154 = vrot.slane %v153, 4
    %v155 = vadd.f32 %v153, %v154
    %v156 = vrot.slane %v155, 2
    %v157 = vadd.f32 %v155, %v156
    %v158 = vrot.slane %v157, 1
    %v159 = vadd.f32 %v157, %v158
    %v160 = vrcp.pop %v149
    %v161 = vmul.f32 %v159, %v160
    %vm162 = vcmp.eq.s32.totalorder %v143, 0
    %vm163 = vcmp.eq.s32.totalorder %v144, 0
    %v164 = vlaneseq
    %v165 = vshrl.u32 %v164, 7
    %v166 = vsub.s32 0, %v165
    %v167 = vrot.slane %v161, %v166
    %v168 = vsel %vm162, %v167, %v140
    %v169 = vsel %vm163, %v167, %v141
    %v170 = vld [vmem:[%s2 + $0x1] sm:$0x1]
    %v171 = vsel %vm146, %v170, 0.0
    %172 = vadd.xlane.f32.xlu0 %v171
    %v173 = vpop.xlane.xlu0 %172
    %v174 = vsel %vm150, %v134, 0.0
    %v175 = vsel %vm150, %v135, 0.0
    %v176 = vadd.f32 %v174, %v175
    %v177 = vrot.slane %v176, 4
    %v178 = vadd.f32 %v176, %v177
    %v179 = vrot.slane %v178, 2
    %v180 = vadd.f32 %v178, %v179
    %v181 = vrot.slane %v180, 1
    %v182 = vadd.f32 %v180, %v181
    %v183 = vrcp.pop %v173
    %v184 = vmul.f32 %v182, %v183
    %vm185 = vcmp.eq.s32.totalorder %v143, 8
    %vm186 = vcmp.eq.s32.totalorder %v144, 8
    %v187 = vlaneseq
    %v188 = vshrl.u32 %v187, 7
    %v189 = vsub.s32 0, %v188
    %v190 = vrot.slane %v184, %v189
    %v191 = vsel %vm185, %v190, %v168
    %v192 = vsel %vm186, %v190, %v169
    %v193 = vadd.f32 %v132, %v136
    %v194 = vadd.f32 %v133, %v137
    %v195 = vadd.f32 %v134, %v138
    %v196 = vadd.f32 %v135, %v139
    %v197 = vld [vmem:[#allocation10] sm:$0xff]
    %v198 = vld [vmem:[#allocation10 + $0x8] sm:$0xff]
    %v199 = vld [vmem:[#allocation10 + $0x10] sm:$0xff]
    %v200 = vld [vmem:[#allocation10 + $0x18] sm:$0xff]
    %v201 = vld [vmem:[%s6] sm:$0x1]
    %v203 = vlaneseq
    %v204 = vshrl.u32 %v203, 7
    %v205 = vsub.s32 0, %v204
    %v206 = vrot.slane %v201, %v205
    %v209 = vsel %vm150, %v193, 0
    %v212 = vsel %vm150, %v194, 0
    %v215 = vsel %vm150, %v195, 0
    %v218 = vsel %vm150, %v196, 0
    %220 = vmatprep.subr.mxu0 0.0
    %221 = vmatpush1.msra.mxu0 %v197
    %222 = vmatprep.subr.mxu0 0.0
    %223 = vmatpush1.msra.mxu0 %v198
    %224 = vmatprep.subr.mxu0 0.0
    %225 = vmatpush1.msra.mxu0 %v199
    %226 = vmatprep.subr.mxu0 0.0
    %227 = vmatpush1.msra.mxu0 %v200
    %228 = vmatprep.subr.mxu0 0.0
    %229 = vmatpush1.msra.mxu0 0.0
    %230 = vmatprep.subr.mxu0 0.0
    %231 = vmatpush1.msra.mxu0 0.0
    %232 = vmatprep.subr.mxu0 0.0
    %233 = vmatpush1.msra.mxu0 0.0
    %234 = vmatprep.subr.mxu0 0.0
    %235 = vmatpush1.msra.mxu0 0.0
    %236 = vmatprep.subr.mxu0 0.0
    %237 = vmatpush1.msra.mxu0 0.0
    %238 = vmatprep.subr.mxu0 0.0
    %239 = vmatpush1.msra.mxu0 0.0
    %240 = vmatprep.subr.mxu0 0.0
    %241 = vmatpush1.msra.mxu0 0.0
    %242 = vmatprep.subr.mxu0 0.0
    %243 = vmatpush1.msra.mxu0 0.0
    %244 = vmatprep.subr.mxu0 0.0
    %245 = vmatpush1.msra.mxu0 0.0
    %246 = vmatprep.subr.mxu0 0.0
    %247 = vmatpush1.msra.mxu0 0.0
    %248 = vmatprep.subr.mxu0 0.0
    %249 = vmatpush1.msra.mxu0 0.0
    %250 = vmatprep.subr.mxu0 0.0
    %251 = vmatpush1.msra.mxu0 0.0
    %252 = vmatprep.subr.mxu0 0.0
    %253 = vmatpush1.msra.mxu0 0.0
    %254 = vmatprep.subr.mxu0 0.0
    %255 = vmatpush1.msra.mxu0 0.0
    %256 = vmatprep.subr.mxu0 0.0
    %257 = vmatpush1.msra.mxu0 0.0
    %258 = vmatprep.subr.mxu0 0.0
    %259 = vmatpush1.msra.mxu0 0.0
    %260 = vmatprep.subr.mxu0 0.0
    %261 = vmatpush1.msra.mxu0 0.0
    %262 = vmatprep.subr.mxu0 0.0
    %263 = vmatpush1.msra.mxu0 0.0
    %264 = vmatprep.subr.mxu0 0.0
    %265 = vmatpush1.msra.mxu0 0.0
    %266 = vmatprep.subr.mxu0 0.0
    %267 = vmatpush1.msra.mxu0 0.0
    %268 = vmatprep.subr.mxu0 0.0
    %269 = vmatpush1.msra.mxu0 0.0
    %270 = vmatprep.subr.mxu0 0.0
    %271 = vmatpush1.msra.mxu0 0.0
    %272 = vmatprep.subr.mxu0 0.0
    %273 = vmatpush1.msra.mxu0 0.0
    %274 = vmatprep.subr.mxu0 0.0
    %275 = vmatpush1.msra.mxu0 0.0
    %276 = vmatprep.subr.mxu0 0.0
    %277 = vmatpush1.msra.mxu0 0.0
    %278 = vmatprep.subr.mxu0 0.0
    %279 = vmatpush1.msra.mxu0 0.0
    %280 = vmatprep.subr.mxu0 0.0
    %281 = vmatpush1.msra.mxu0 0.0
    %282 = vmatprep.subr.mxu0 0.0
    %283 = vmatpush1.msra.mxu0 0.0
    %284 = vmatprep.mubr.f32.mxu0 0.0
    %285 = vmatmul.mubr.f32.gmra.mrb[0].mxu0 %v209
    %v286 = vpop.f32.mrb[0].mxu0
    %v287 = vadd.f32 %v206, %v286
    %v288 = vpop.f32.mrb[0].mxu0
    %289 = vmatprep.mubr.f32.mxu0 0.0
    %290 = vmatmul.mubr.f32.gmra.mrb[0].mxu0 %v212
    %v291 = vpop.f32.mrb[0].mxu0
    %v292 = vadd.f32 %v206, %v291
    %v293 = vpop.f32.mrb[0].mxu0
    %294 = vmatprep.mubr.f32.mxu0 0.0
    %295 = vmatmul.mubr.f32.gmra.mrb[0].mxu0 %v215
    %v296 = vpop.f32.mrb[0].mxu0
    %v297 = vadd.f32 %v206, %v296
    %v298 = vpop.f32.mrb[0].mxu0
    %299 = vmatprep.mubr.f32.mxu0 0.0
    %300 = vmatmul.mubr.f32.gmra.mrb[0].mxu0 %v218
    %v301 = vpop.f32.mrb[0].mxu0
    %v302 = vadd.f32 %v206, %v301
    %v303 = vpop.f32.mrb[0].mxu0
    %304 = vdwg.mxu0
    %v305 = vld [vmem:[#allocation12] sm:$0xff]
    %v306 = vld [vmem:[#allocation12 + $0x8] sm:$0xff]
    %v307 = vld [vmem:[#allocation12 + $0x10] sm:$0xff]
    %v308 = vld [vmem:[#allocation12 + $0x18] sm:$0xff]
    %v309 = vld [vmem:[#allocation12 + $0x20] sm:$0xff]
    %v310 = vld [vmem:[#allocation12 + $0x28] sm:$0xff]
    %v311 = vld [vmem:[#allocation12 + $0x30] sm:$0xff]
    %v312 = vld [vmem:[#allocation12 + $0x38] sm:$0xff]
    %v313 = vld [vmem:[#allocation12 + $0x40] sm:$0xff]
    %v314 = vld [vmem:[#allocation12 + $0x48] sm:$0xff]
    %v315 = vld [vmem:[#allocation12 + $0x50] sm:$0xff]
    %v316 = vld [vmem:[#allocation12 + $0x58] sm:$0xff]
    %v317 = vld [vmem:[%s8] sm:$0x7]
    %v319 = vlaneseq
    %v320 = vshrl.u32 %v319, 7
    %v321 = vsub.s32 0, %v320
    %v322 = vrot.slane %v317, %v321
    %v323 = vlaneseq
    %v324 = vshrl.u32 %v323, 7
    %v325 = vsub.s32 1, %v324
    %v326 = vrot.slane %v317, %v325
    %v327 = vlaneseq
    %v328 = vshrl.u32 %v327, 7
    %v329 = vsub.s32 2, %v328
    %v330 = vrot.slane %v317, %v329
    %v335 = vsel %vm150, %v191, 0
    %v338 = vsel %vm150, %v192, 0
    %340 = vmatprep.subr.mxu0 %v306
    %341 = vmatpush1.msra.mxu0 %v305
    %342 = vmatprep.subr.mxu0 %v309
    %343 = vmatpush1.msra.mxu0 %v308
    %344 = vmatprep.subr.mxu0 %v312
    %345 = vmatpush1.msra.mxu0 %v311
    %346 = vmatprep.subr.mxu0 %v315
    %347 = vmatpush1.msra.mxu0 %v314
    %348 = vmatprep.subr.mxu0 0.0
    %349 = vmatpush1.msra.mxu0 0.0
    %350 = vmatprep.subr.mxu0 0.0
    %351 = vmatpush1.msra.mxu0 0.0
    %352 = vmatprep.subr.mxu0 0.0
    %353 = vmatpush1.msra.mxu0 0.0
    %354 = vmatprep.subr.mxu0 0.0
    %355 = vmatpush1.msra.mxu0 0.0
    %356 = vmatprep.subr.mxu0 0.0
    %357 = vmatpush1.msra.mxu0 0.0
    %358 = vmatprep.subr.mxu0 0.0
    %359 = vmatpush1.msra.mxu0 0.0
    %360 = vmatprep.subr.mxu0 0.0
    %361 = vmatpush1.msra.mxu0 0.0
    %362 = vmatprep.subr.mxu0 0.0
    %363 = vmatpush1.msra.mxu0 0.0
    %364 = vmatprep.subr.mxu0 0.0
    %365 = vmatpush1.msra.mxu0 0.0
    %366 = vmatprep.subr.mxu0 0.0
    %367 = vmatpush1.msra.mxu0 0.0
    %368 = vmatprep.subr.mxu0 0.0
    %369 = vmatpush1.msra.mxu0 0.0
    %370 = vmatprep.subr.mxu0 0.0
    %371 = vmatpush1.msra.mxu0 0.0
    %372 = vmatprep.subr.mxu0 0.0
    %373 = vmatpush1.msra.mxu0 0.0
    %374 = vmatprep.subr.mxu0 0.0
    %375 = vmatpush1.msra.mxu0 0.0
    %376 = vmatprep.subr.mxu0 0.0
    %377 = vmatpush1.msra.mxu0 0.0
    %378 = vmatprep.subr.mxu0 0.0
    %379 = vmatpush1.msra.mxu0 0.0
    %380 = vmatprep.subr.mxu0 0.0
    %381 = vmatpush1.msra.mxu0 0.0
    %382 = vmatprep.subr.mxu0 0.0
    %383 = vmatpush1.msra.mxu0 0.0
    %384 = vmatprep.subr.mxu0 0.0
    %385 = vmatpush1.msra.mxu0 0.0
    %386 = vmatprep.subr.mxu0 0.0
    %387 = vmatpush1.msra.mxu0 0.0
    %388 = vmatprep.subr.mxu0 0.0
    %389 = vmatpush1.msra.mxu0 0.0
    %390 = vmatprep.subr.mxu0 0.0
    %391 = vmatpush1.msra.mxu0 0.0
    %392 = vmatprep.subr.mxu0 0.0
    %393 = vmatpush1.msra.mxu0 0.0
    %394 = vmatprep.subr.mxu0 0.0
    %395 = vmatpush1.msra.mxu0 0.0
    %396 = vmatprep.subr.mxu0 0.0
    %397 = vmatpush1.msra.mxu0 0.0
    %398 = vmatprep.subr.mxu0 0.0
    %399 = vmatpush1.msra.mxu0 0.0
    %400 = vmatprep.subr.mxu0 0.0
    %401 = vmatpush1.msra.mxu0 0.0
    %402 = vmatprep.subr.mxu0 0.0
    %403 = vmatpush1.msra.mxu0 0.0
    %404 = vmatprep.mubr.f32.mxu0 0.0
    %405 = vmatmul.mubr.f32.gmra.mrb[0].mxu0 %v335
    %v406 = vpop.f32.mrb[0].mxu0
    %v407 = vadd.f32 %v322, %v406
    %v408 = vpop.f32.mrb[0].mxu0
    %v409 = vadd.f32 %v326, %v408
    %410 = vmatprep.mubr.f32.mxu0 0.0
    %411 = vmatmul.mubr.f32.gmra.mrb[0].mxu0 %v338
    %v412 = vpop.f32.mrb[0].mxu0
    %v413 = vadd.f32 %v322, %v412
    %v414 = vpop.f32.mrb[0].mxu0
    %v415 = vadd.f32 %v326, %v414
    %416 = vdwg.mxu0
    %417 = vmatprep.subr.mxu0 0.0
    %418 = vmatpush1.msra.mxu0 %v307
    %419 = vmatprep.subr.mxu0 0.0
    %420 = vmatpush1.msra.mxu0 %v310
    %421 = vmatprep.subr.mxu0 0.0
    %422 = vmatpush1.msra.mxu0 %v313
    %423 = vmatprep.subr.mxu0 0.0
    %424 = vmatpush1.msra.mxu0 %v316
    %425 = vmatprep.subr.mxu0 0.0
    %426 = vmatpush1.msra.mxu0 0.0
    %427 = vmatprep.subr.mxu0 0.0
    %428 = vmatpush1.msra.mxu0 0.0
    %429 = vmatprep.subr.mxu0 0.0
    %430 = vmatpush1.msra.mxu0 0.0
    %431 = vmatprep.subr.mxu0 0.0
    %432 = vmatpush1.msra.mxu0 0.0
    %433 = vmatprep.subr.mxu0 0.0
    %434 = vmatpush1.msra.mxu0 0.0
    %435 = vmatprep.subr.mxu0 0.0
    %436 = vmatpush1.msra.mxu0 0.0
    %437 = vmatprep.subr.mxu0 0.0
    %438 = vmatpush1.msra.mxu0 0.0
    %439 = vmatprep.subr.mxu0 0.0
    %440 = vmatpush1.msra.mxu0 0.0
    %441 = vmatprep.subr.mxu0 0.0
    %442 = vmatpush1.msra.mxu0 0.0
    %443 = vmatprep.subr.mxu0 0.0
    %444 = vmatpush1.msra.mxu0 0.0
    %445 = vmatprep.subr.mxu0 0.0
    %446 = vmatpush1.msra.mxu0 0.0
    %447 = vmatprep.subr.mxu0 0.0
    %448 = vmatpush1.msra.mxu0 0.0
    %449 = vmatprep.subr.mxu0 0.0
    %450 = vmatpush1.msra.mxu0 0.0
    %451 = vmatprep.subr.mxu0 0.0
    %452 = vmatpush1.msra.mxu0 0.0
    %453 = vmatprep.subr.mxu0 0.0
    %454 = vmatpush1.msra.mxu0 0.0
    %455 = vmatprep.subr.mxu0 0.0
    %456 = vmatpush1.msra.mxu0 0.0
    %457 = vmatprep.subr.mxu0 0.0
    %458 = vmatpush1.msra.mxu0 0.0
    %459 = vmatprep.subr.mxu0 0.0
    %460 = vmatpush1.msra.mxu0 0.0
    %461 = vmatprep.subr.mxu0 0.0
    %462 = vmatpush1.msra.mxu0 0.0
    %463 = vmatprep.subr.mxu0 0.0
    %464 = vmatpush1.msra.mxu0 0.0
    %465 = vmatprep.subr.mxu0 0.0
    %466 = vmatpush1.msra.mxu0 0.0
    %467 = vmatprep.subr.mxu0 0.0
    %468 = vmatpush1.msra.mxu0 0.0
    %469 = vmatprep.subr.mxu0 0.0
    %470 = vmatpush1.msra.mxu0 0.0
    %471 = vmatprep.subr.mxu0 0.0
    %472 = vmatpush1.msra.mxu0 0.0
    %473 = vmatprep.subr.mxu0 0.0
    %474 = vmatpush1.msra.mxu0 0.0
    %475 = vmatprep.subr.mxu0 0.0
    %476 = vmatpush1.msra.mxu0 0.0
    %477 = vmatprep.subr.mxu0 0.0
    %478 = vmatpush1.msra.mxu0 0.0
    %479 = vmatprep.subr.mxu0 0.0
    %480 = vmatpush1.msra.mxu0 0.0
    %481 = vmatprep.mubr.f32.mxu0 0.0
    %482 = vmatmul.mubr.f32.gmra.mrb[0].mxu0 %v335
    %v483 = vpop.f32.mrb[0].mxu0
    %v484 = vadd.f32 %v330, %v483
    %v485 = vpop.f32.mrb[0].mxu0
    %486 = vmatprep.mubr.f32.mxu0 0.0
    %487 = vmatmul.mubr.f32.gmra.mrb[0].mxu0 %v338
    %v488 = vpop.f32.mrb[0].mxu0
    %v489 = vadd.f32 %v330, %v488
    %v490 = vpop.f32.mrb[0].mxu0
    %491 = vdwg.mxu0
    %492 = vst [vmem:[#allocation16] sm:$0xff] %v484
    %493 = vst [vmem:[#allocation16 + $0x8] sm:$0xff] %v489
    %v494 = vmul.f32 %v484, %v484
    %v495 = vmul.f32 %v489, %v489
    %v496 = vsel %vm150, %v494, 0.0
    %497 = vadd.xlane.f32.xlu0 %v496
    %v498 = vpop.xlane.xlu0 %497
    %v499 = vsel %vm150, %v495, 0.0
    %500 = vadd.xlane.f32.xlu0 %v499
    %v501 = vpop.xlane.xlu0 %500
    %v502 = vrsqrt.pop %v498
    %v503 = vmul.f32 %v498, %v502
    %vm504 = vcmp.eq.f32.partialorder %v498, inf
    %v505 = vsel %vm504, %v498, %v503
    %vm506 = vcmp.eq.f32.partialorder %v498, 0.0
    %v507 = vand.u32 %v498, 2147483648
    %v508 = vsel %vm506, %v507, %v505
    %v509 = vrsqrt.pop %v501
    %v510 = vmul.f32 %v501, %v509
    %vm511 = vcmp.eq.f32.partialorder %v501, inf
    %v512 = vsel %vm511, %v501, %v510
    %vm513 = vcmp.eq.f32.partialorder %v501, 0.0
    %v514 = vand.u32 %v501, 2147483648
    %v515 = vsel %vm513, %v514, %v512
    %v516 = vmax.f32 %v508, 1e-08
    %v517 = vmax.f32 %v515, 1e-08
    %v518 = vrcp.pop %v516
    %v519 = vmul.f32 %v484, %v518
    %v520 = vrcp.pop %v517
    %v521 = vmul.f32 %v489, %v520
    %v522 = vld [vmem:[%s9] sm:$0x1]
    %v523 = vld [vmem:[#allocation2] sm:$0x1]
    %v524 = vld [vmem:[#allocation3] sm:$0x1]
    %v525 = vmul.f32 %v524, %v524
    %v526 = vld [vmem:[#allocation9] sm:$0x1]
    %v527 = vlaneseq
    %v528 = vshrl.u32 %v527, 7
    %v529 = vsub.s32 0, %v528
    %v530 = vrot.slane %v526, %v529
    %vm531 = vcmask 64512
    %v533 = vsel %vm531, %v287, 0
    %v536 = vsel %vm531, %v292, 0
    %v539 = vsel %vm531, %v407, 0
    %541 = vmatprep.subr.mxu0 0.0
    %542 = vmatpush1.xpose.msra.mxu0 %v539
    %543 = vmatprep.subr.mxu0 0.0
    %544 = vmatpush1.xpose.msra.mxu0 0.0
    %545 = vmatprep.subr.mxu0 0.0
    %546 = vmatpush1.xpose.msra.mxu0 0.0
    %547 = vmatprep.subr.mxu0 0.0
    %548 = vmatpush1.xpose.msra.mxu0 0.0
    %549 = vmatprep.subr.mxu0 0.0
    %550 = vmatpush1.xpose.msra.mxu0 0.0
    %551 = vmatprep.subr.mxu0 0.0
    %552 = vmatpush1.xpose.msra.mxu0 0.0
    %553 = vmatprep.subr.mxu0 0.0
    %554 = vmatpush1.xpose.msra.mxu0 0.0
    %555 = vmatprep.subr.mxu0 0.0
    %556 = vmatpush1.xpose.msra.mxu0 0.0
    %557 = vmatprep.subr.mxu0 0.0
    %558 = vmatpush1.xpose.msra.mxu0 0.0
    %559 = vmatprep.subr.mxu0 0.0
    %560 = vmatpush1.xpose.msra.mxu0 0.0
    %561 = vmatprep.subr.mxu0 0.0
    %562 = vmatpush1.xpose.msra.mxu0 0.0
    %563 = vmatprep.subr.mxu0 0.0
    %564 = vmatpush1.xpose.msra.mxu0 0.0
    %565 = vmatprep.subr.mxu0 0.0
    %566 = vmatpush1.xpose.msra.mxu0 0.0
    %567 = vmatprep.subr.mxu0 0.0
    %568 = vmatpush1.xpose.msra.mxu0 0.0
    %569 = vmatprep.subr.mxu0 0.0
    %570 = vmatpush1.xpose.msra.mxu0 0.0
    %571 = vmatprep.subr.mxu0 0.0
    %572 = vmatpush1.xpose.msra.mxu0 0.0
    %573 = vmatprep.subr.mxu0 0.0
    %574 = vmatpush1.xpose.msra.mxu0 0.0
    %575 = vmatprep.subr.mxu0 0.0
    %576 = vmatpush1.xpose.msra.mxu0 0.0
    %577 = vmatprep.subr.mxu0 0.0
    %578 = vmatpush1.xpose.msra.mxu0 0.0
    %579 = vmatprep.subr.mxu0 0.0
    %580 = vmatpush1.xpose.msra.mxu0 0.0
    %581 = vmatprep.subr.mxu0 0.0
    %582 = vmatpush1.xpose.msra.mxu0 0.0
    %583 = vmatprep.subr.mxu0 0.0
    %584 = vmatpush1.xpose.msra.mxu0 0.0
    %585 = vmatprep.subr.mxu0 0.0
    %586 = vmatpush1.xpose.msra.mxu0 0.0
    %587 = vmatprep.subr.mxu0 0.0
    %588 = vmatpush1.xpose.msra.mxu0 0.0
    %589 = vmatprep.subr.mxu0 0.0
    %590 = vmatpush1.xpose.msra.mxu0 0.0
    %591 = vmatprep.subr.mxu0 0.0
    %592 = vmatpush1.xpose.msra.mxu0 0.0
    %593 = vmatprep.subr.mxu0 0.0
    %594 = vmatpush1.xpose.msra.mxu0 0.0
    %595 = vmatprep.subr.mxu0 0.0
    %596 = vmatpush1.xpose.msra.mxu0 0.0
    %597 = vmatprep.subr.mxu0 0.0
    %598 = vmatpush1.xpose.msra.mxu0 0.0
    %599 = vmatprep.subr.mxu0 0.0
    %600 = vmatpush1.xpose.msra.mxu0 0.0
    %601 = vmatprep.subr.mxu0 0.0
    %602 = vmatpush1.xpose.msra.mxu0 0.0
    %603 = vmatprep.subr.mxu0 0.0
    %604 = vmatpush1.xpose.msra.mxu0 0.0
    %605 = vmatprep.mubr.f32.mxu0 0.0
    %606 = vmatmul.mubr.f32.gmra.mrb[0].mxu0 %v533
    %v607 = vpop.f32.mrb[0].mxu0
    %v608 = vadd.f32 %v530, %v607
    %v609 = vpop.f32.mrb[0].mxu0
    %610 = vmatprep.mubr.f32.mxu0 0.0
    %611 = vmatmul.mubr.f32.gmra.mrb[0].mxu0 %v536
    %v612 = vpop.f32.mrb[0].mxu0
    %v613 = vadd.f32 %v530, %v612
    %v614 = vpop.f32.mrb[0].mxu0
    %615 = vdwg.mxu0
    %v616 = vsel %vm531, %v608, -inf
    %617 = vmax.xlane.f32.xlu0 %v616
    %v618 = vpop.xlane.xlu0 %617
    %v619 = vsel %vm531, %v613, -inf
    %620 = vmax.xlane.f32.xlu0 %v619
    %v621 = vpop.xlane.xlu0 %620
    %v622 = vsub.f32 %v608, %v618
    %v623 = vsub.f32 %v613, %v621
    %v624 = vmul.f32 %v622, 1.442695
    %v625 = vpow.pop %v624
    %v626 = vmul.f32 %v623, 1.442695
    %v627 = vpow.pop %v626
    %v628 = vsel %vm531, %v625, 0.0
    %629 = vadd.xlane.f32.xlu0 %v628
    %v630 = vpop.xlane.xlu0 %629
    %v631 = vsel %vm531, %v627, 0.0
    %632 = vadd.xlane.f32.xlu0 %v631
    %v633 = vpop.xlane.xlu0 %632
    %v634 = vrcp.pop %v630
    %v635 = vmul.f32 %v625, %v634
    %v636 = vrcp.pop %v633
    %v637 = vmul.f32 %v627, %v636
    %638 = vrot.lane.b32.xlu0 %v287, 120
    %v639 = vpop.permute.xlu0 %638
    %640 = vrot.lane.b32.xlu0 %v292, 120
    %v641 = vpop.permute.xlu0 %640
    %642 = vrot.lane.b32.xlu0 %v407, 120
    %v643 = vpop.permute.xlu0 %642
    %v644 = vsel %vm531, %v639, 0
    %v646 = vsel %vm531, %v641, 0
    %v648 = vsel %vm531, %v643, 0
    %650 = vmatprep.subr.mxu0 0.0
    %651 = vmatpush1.xpose.msra.mxu0 %v648
    %652 = vmatprep.subr.mxu0 0.0
    %653 = vmatpush1.xpose.msra.mxu0 0.0
    %654 = vmatprep.subr.mxu0 0.0
    %655 = vmatpush1.xpose.msra.mxu0 0.0
    %656 = vmatprep.subr.mxu0 0.0
    %657 = vmatpush1.xpose.msra.mxu0 0.0
    %658 = vmatprep.subr.mxu0 0.0
    %659 = vmatpush1.xpose.msra.mxu0 0.0
    %660 = vmatprep.subr.mxu0 0.0
    %661 = vmatpush1.xpose.msra.mxu0 0.0
    %662 = vmatprep.subr.mxu0 0.0
    %663 = vmatpush1.xpose.msra.mxu0 0.0
    %664 = vmatprep.subr.mxu0 0.0
    %665 = vmatpush1.xpose.msra.mxu0 0.0
    %666 = vmatprep.subr.mxu0 0.0
    %667 = vmatpush1.xpose.msra.mxu0 0.0
    %668 = vmatprep.subr.mxu0 0.0
    %669 = vmatpush1.xpose.msra.mxu0 0.0
    %670 = vmatprep.subr.mxu0 0.0
    %671 = vmatpush1.xpose.msra.mxu0 0.0
    %672 = vmatprep.subr.mxu0 0.0
    %673 = vmatpush1.xpose.msra.mxu0 0.0
    %674 = vmatprep.subr.mxu0 0.0
    %675 = vmatpush1.xpose.msra.mxu0 0.0
    %676 = vmatprep.subr.mxu0 0.0
    %677 = vmatpush1.xpose.msra.mxu0 0.0
    %678 = vmatprep.subr.mxu0 0.0
    %679 = vmatpush1.xpose.msra.mxu0 0.0
    %680 = vmatprep.subr.mxu0 0.0
    %681 = vmatpush1.xpose.msra.mxu0 0.0
    %682 = vmatprep.subr.mxu0 0.0
    %683 = vmatpush1.xpose.msra.mxu0 0.0
    %684 = vmatprep.subr.mxu0 0.0
    %685 = vmatpush1.xpose.msra.mxu0 0.0
    %686 = vmatprep.subr.mxu0 0.0
    %687 = vmatpush1.xpose.msra.mxu0 0.0
    %688 = vmatprep.subr.mxu0 0.0
    %689 = vmatpush1.xpose.msra.mxu0 0.0
    %690 = vmatprep.subr.mxu0 0.0
    %691 = vmatpush1.xpose.msra.mxu0 0.0
    %692 = vmatprep.subr.mxu0 0.0
    %693 = vmatpush1.xpose.msra.mxu0 0.0
    %694 = vmatprep.subr.mxu0 0.0
    %695 = vmatpush1.xpose.msra.mxu0 0.0
    %696 = vmatprep.subr.mxu0 0.0
    %697 = vmatpush1.xpose.msra.mxu0 0.0
    %698 = vmatprep.subr.mxu0 0.0
    %699 = vmatpush1.xpose.msra.mxu0 0.0
    %700 = vmatprep.subr.mxu0 0.0
    %701 = vmatpush1.xpose.msra.mxu0 0.0
    %702 = vmatprep.subr.mxu0 0.0
    %703 = vmatpush1.xpose.msra.mxu0 0.0
    %704 = vmatprep.subr.mxu0 0.0
    %705 = vmatpush1.xpose.msra.mxu0 0.0
    %706 = vmatprep.subr.mxu0 0.0
    %707 = vmatpush1.xpose.msra.mxu0 0.0
    %708 = vmatprep.subr.mxu0 0.0
    %709 = vmatpush1.xpose.msra.mxu0 0.0
    %710 = vmatprep.subr.mxu0 0.0
    %711 = vmatpush1.xpose.msra.mxu0 0.0
    %712 = vmatprep.subr.mxu0 0.0
    %713 = vmatpush1.xpose.msra.mxu0 0.0
    %714 = vmatprep.mubr.f32.mxu0 0.0
    %715 = vmatmul.mubr.f32.gmra.mrb[0].mxu0 %v644
    %v716 = vpop.f32.mrb[0].mxu0
    %v717 = vadd.f32 %v530, %v716
    %v718 = vpop.f32.mrb[0].mxu0
    %719 = vmatprep.mubr.f32.mxu0 0.0
    %720 = vmatmul.mubr.f32.gmra.mrb[0].mxu0 %v646
    %v721 = vpop.f32.mrb[0].mxu0
    %v722 = vadd.f32 %v530, %v721
    %v723 = vpop.f32.mrb[0].mxu0
    %724 = vdwg.mxu0
    %v725 = vsel %vm531, %v717, -inf
    %726 = vmax.xlane.f32.xlu0 %v725
    %v727 = vpop.xlane.xlu0 %726
    %v728 = vsel %vm531, %v722, -inf
    %729 = vmax.xlane.f32.xlu0 %v728
    %v730 = vpop.xlane.xlu0 %729
    %v731 = vsub.f32 %v717, %v727
    %v732 = vsub.f32 %v722, %v730
    %v733 = vmul.f32 %v731, 1.442695
    %v734 = vpow.pop %v733
    %v735 = vmul.f32 %v732, 1.442695
    %v736 = vpow.pop %v735
    %v737 = vsel %vm531, %v734, 0.0
    %738 = vadd.xlane.f32.xlu0 %v737
    %v739 = vpop.xlane.xlu0 %738
    %v740 = vsel %vm531, %v736, 0.0
    %741 = vadd.xlane.f32.xlu0 %v740
    %v742 = vpop.xlane.xlu0 %741
    %v743 = vrcp.pop %v739
    %v744 = vmul.f32 %v734, %v743
    %v745 = vrcp.pop %v742
    %v746 = vmul.f32 %v736, %v745
    %748 = vrot.lane.b32.xlu0 %v409, 96
    %v749 = vpop.permute.xlu0 %748
    %v752 = vsel %vm531, %v744, 0
    %v755 = vsel %vm531, %v746, 0
    %757 = vmatprep.subr.mxu0 0.0
    %758 = vmatpush1.msra.mxu0 %v749
    %759 = vmatprep.subr.mxu0 0.0
    %760 = vmatpush1.msra.mxu0 0.0
    %761 = vmatprep.subr.mxu0 0.0
    %762 = vmatpush1.msra.mxu0 0.0
    %763 = vmatprep.subr.mxu0 0.0
    %764 = vmatpush1.msra.mxu0 0.0
    %765 = vmatprep.subr.mxu0 0.0
    %766 = vmatpush1.msra.mxu0 0.0
    %767 = vmatprep.subr.mxu0 0.0
    %768 = vmatpush1.msra.mxu0 0.0
    %769 = vmatprep.subr.mxu0 0.0
    %770 = vmatpush1.msra.mxu0 0.0
    %771 = vmatprep.subr.mxu0 0.0
    %772 = vmatpush1.msra.mxu0 0.0
    %773 = vmatprep.subr.mxu0 0.0
    %774 = vmatpush1.msra.mxu0 0.0
    %775 = vmatprep.subr.mxu0 0.0
    %776 = vmatpush1.msra.mxu0 0.0
    %777 = vmatprep.subr.mxu0 0.0
    %778 = vmatpush1.msra.mxu0 0.0
    %779 = vmatprep.subr.mxu0 0.0
    %780 = vmatpush1.msra.mxu0 0.0
    %781 = vmatprep.subr.mxu0 0.0
    %782 = vmatpush1.msra.mxu0 0.0
    %783 = vmatprep.subr.mxu0 0.0
    %784 = vmatpush1.msra.mxu0 0.0
    %785 = vmatprep.subr.mxu0 0.0
    %786 = vmatpush1.msra.mxu0 0.0
    %787 = vmatprep.subr.mxu0 0.0
    %788 = vmatpush1.msra.mxu0 0.0
    %789 = vmatprep.subr.mxu0 0.0
    %790 = vmatpush1.msra.mxu0 0.0
    %791 = vmatprep.subr.mxu0 0.0
    %792 = vmatpush1.msra.mxu0 0.0
    %793 = vmatprep.subr.mxu0 0.0
    %794 = vmatpush1.msra.mxu0 0.0
    %795 = vmatprep.subr.mxu0 0.0
    %796 = vmatpush1.msra.mxu0 0.0
    %797 = vmatprep.subr.mxu0 0.0
    %798 = vmatpush1.msra.mxu0 0.0
    %799 = vmatprep.subr.mxu0 0.0
    %800 = vmatpush1.msra.mxu0 0.0
    %801 = vmatprep.subr.mxu0 0.0
    %802 = vmatpush1.msra.mxu0 0.0
    %803 = vmatprep.subr.mxu0 0.0
    %804 = vmatpush1.msra.mxu0 0.0
    %805 = vmatprep.subr.mxu0 0.0
    %806 = vmatpush1.msra.mxu0 0.0
    %807 = vmatprep.subr.mxu0 0.0
    %808 = vmatpush1.msra.mxu0 0.0
    %809 = vmatprep.subr.mxu0 0.0
    %810 = vmatpush1.msra.mxu0 0.0
    %811 = vmatprep.subr.mxu0 0.0
    %812 = vmatpush1.msra.mxu0 0.0
    %813 = vmatprep.subr.mxu0 0.0
    %814 = vmatpush1.msra.mxu0 0.0
    %815 = vmatprep.subr.mxu0 0.0
    %816 = vmatpush1.msra.mxu0 0.0
    %817 = vmatprep.subr.mxu0 0.0
    %818 = vmatpush1.msra.mxu0 0.0
    %819 = vmatprep.subr.mxu0 0.0
    %820 = vmatpush1.msra.mxu0 0.0
    %821 = vmatprep.mubr.f32.mxu0 0.0
    %822 = vmatmul.mubr.f32.gmra.mrb[0].mxu0 %v752
    %v823 = vpop.f32.mrb[0].mxu0
    %v824 = vadd.f32 0.0, %v823
    %v825 = vpop.f32.mrb[0].mxu0
    %826 = vmatprep.mubr.f32.mxu0 0.0
    %827 = vmatmul.mubr.f32.gmra.mrb[0].mxu0 %v755
    %v828 = vpop.f32.mrb[0].mxu0
    %v829 = vadd.f32 0.0, %v828
    %v830 = vpop.f32.mrb[0].mxu0
    %831 = vdwg.mxu0
    %v833 = vsel %vm531, %v635, 0
    %v836 = vsel %vm531, %v637, 0
    %838 = vmatprep.subr.mxu0 0.0
    %839 = vmatpush1.msra.mxu0 %v409
    %840 = vmatprep.subr.mxu0 0.0
    %841 = vmatpush1.msra.mxu0 0.0
    %842 = vmatprep.subr.mxu0 0.0
    %843 = vmatpush1.msra.mxu0 0.0
    %844 = vmatprep.subr.mxu0 0.0
    %845 = vmatpush1.msra.mxu0 0.0
    %846 = vmatprep.subr.mxu0 0.0
    %847 = vmatpush1.msra.mxu0 0.0
    %848 = vmatprep.subr.mxu0 0.0
    %849 = vmatpush1.msra.mxu0 0.0
    %850 = vmatprep.subr.mxu0 0.0
    %851 = vmatpush1.msra.mxu0 0.0
    %852 = vmatprep.subr.mxu0 0.0
    %853 = vmatpush1.msra.mxu0 0.0
    %854 = vmatprep.subr.mxu0 0.0
    %855 = vmatpush1.msra.mxu0 0.0
    %856 = vmatprep.subr.mxu0 0.0
    %857 = vmatpush1.msra.mxu0 0.0
    %858 = vmatprep.subr.mxu0 0.0
    %859 = vmatpush1.msra.mxu0 0.0
    %860 = vmatprep.subr.mxu0 0.0
    %861 = vmatpush1.msra.mxu0 0.0
    %862 = vmatprep.subr.mxu0 0.0
    %863 = vmatpush1.msra.mxu0 0.0
    %864 = vmatprep.subr.mxu0 0.0
    %865 = vmatpush1.msra.mxu0 0.0
    %866 = vmatprep.subr.mxu0 0.0
    %867 = vmatpush1.msra.mxu0 0.0
    %868 = vmatprep.subr.mxu0 0.0
    %869 = vmatpush1.msra.mxu0 0.0
    %870 = vmatprep.subr.mxu0 0.0
    %871 = vmatpush1.msra.mxu0 0.0
    %872 = vmatprep.subr.mxu0 0.0
    %873 = vmatpush1.msra.mxu0 0.0
    %874 = vmatprep.subr.mxu0 0.0
    %875 = vmatpush1.msra.mxu0 0.0
    %876 = vmatprep.subr.mxu0 0.0
    %877 = vmatpush1.msra.mxu0 0.0
    %878 = vmatprep.subr.mxu0 0.0
    %879 = vmatpush1.msra.mxu0 0.0
    %880 = vmatprep.subr.mxu0 0.0
    %881 = vmatpush1.msra.mxu0 0.0
    %882 = vmatprep.subr.mxu0 0.0
    %883 = vmatpush1.msra.mxu0 0.0
    %884 = vmatprep.subr.mxu0 0.0
    %885 = vmatpush1.msra.mxu0 0.0
    %886 = vmatprep.subr.mxu0 0.0
    %887 = vmatpush1.msra.mxu0 0.0
    %888 = vmatprep.subr.mxu0 0.0
    %889 = vmatpush1.msra.mxu0 0.0
    %890 = vmatprep.subr.mxu0 0.0
    %891 = vmatpush1.msra.mxu0 0.0
    %892 = vmatprep.subr.mxu0 0.0
    %893 = vmatpush1.msra.mxu0 0.0
    %894 = vmatprep.subr.mxu0 0.0
    %895 = vmatpush1.msra.mxu0 0.0
    %896 = vmatprep.subr.mxu0 0.0
    %897 = vmatpush1.msra.mxu0 0.0
    %898 = vmatprep.subr.mxu0 0.0
    %899 = vmatpush1.msra.mxu0 0.0
    %900 = vmatprep.subr.mxu0 0.0
    %901 = vmatpush1.msra.mxu0 0.0
    %902 = vmatprep.mubr.f32.mxu0 0.0
    %903 = vmatmul.mubr.f32.gmra.mrb[0].mxu0 %v833
    %v904 = vpop.f32.mrb[0].mxu0
    %v905 = vadd.f32 %v824, %v904
    %v906 = vpop.f32.mrb[0].mxu0
    %907 = vmatprep.mubr.f32.mxu0 0.0
    %908 = vmatmul.mubr.f32.gmra.mrb[0].mxu0 %v836
    %v909 = vpop.f32.mrb[0].mxu0
    %v910 = vadd.f32 %v829, %v909
    %v911 = vpop.f32.mrb[0].mxu0
    %912 = vdwg.mxu0
    %913 = vrot.lane.b32.xlu0 %v287, 112
    %v914 = vpop.permute.xlu0 %913
    %915 = vrot.lane.b32.xlu0 %v292, 112
    %v916 = vpop.permute.xlu0 %915
    %917 = vrot.lane.b32.xlu0 %v407, 112
    %v918 = vpop.permute.xlu0 %917
    %v919 = vsel %vm531, %v914, 0
    %v921 = vsel %vm531, %v916, 0
    %v923 = vsel %vm531, %v918, 0
    %925 = vmatprep.subr.mxu0 0.0
    %926 = vmatpush1.xpose.msra.mxu0 %v923
    %927 = vmatprep.subr.mxu0 0.0
    %928 = vmatpush1.xpose.msra.mxu0 0.0
    %929 = vmatprep.subr.mxu0 0.0
    %930 = vmatpush1.xpose.msra.mxu0 0.0
    %931 = vmatprep.subr.mxu0 0.0
    %932 = vmatpush1.xpose.msra.mxu0 0.0
    %933 = vmatprep.subr.mxu0 0.0
    %934 = vmatpush1.xpose.msra.mxu0 0.0
    %935 = vmatprep.subr.mxu0 0.0
    %936 = vmatpush1.xpose.msra.mxu0 0.0
    %937 = vmatprep.subr.mxu0 0.0
    %938 = vmatpush1.xpose.msra.mxu0 0.0
    %939 = vmatprep.subr.mxu0 0.0
    %940 = vmatpush1.xpose.msra.mxu0 0.0
    %941 = vmatprep.subr.mxu0 0.0
    %942 = vmatpush1.xpose.msra.mxu0 0.0
    %943 = vmatprep.subr.mxu0 0.0
    %944 = vmatpush1.xpose.msra.mxu0 0.0
    %945 = vmatprep.subr.mxu0 0.0
    %946 = vmatpush1.xpose.msra.mxu0 0.0
    %947 = vmatprep.subr.mxu0 0.0
    %948 = vmatpush1.xpose.msra.mxu0 0.0
    %949 = vmatprep.subr.mxu0 0.0
    %950 = vmatpush1.xpose.msra.mxu0 0.0
    %951 = vmatprep.subr.mxu0 0.0
    %952 = vmatpush1.xpose.msra.mxu0 0.0
    %953 = vmatprep.subr.mxu0 0.0
    %954 = vmatpush1.xpose.msra.mxu0 0.0
    %955 = vmatprep.subr.mxu0 0.0
    %956 = vmatpush1.xpose.msra.mxu0 0.0
    %957 = vmatprep.subr.mxu0 0.0
    %958 = vmatpush1.xpose.msra.mxu0 0.0
    %959 = vmatprep.subr.mxu0 0.0
    %960 = vmatpush1.xpose.msra.mxu0 0.0
    %961 = vmatprep.subr.mxu0 0.0
    %962 = vmatpush1.xpose.msra.mxu0 0.0
    %963 = vmatprep.subr.mxu0 0.0
    %964 = vmatpush1.xpose.msra.mxu0 0.0
    %965 = vmatprep.subr.mxu0 0.0
    %966 = vmatpush1.xpose.msra.mxu0 0.0
    %967 = vmatprep.subr.mxu0 0.0
    %968 = vmatpush1.xpose.msra.mxu0 0.0
    %969 = vmatprep.subr.mxu0 0.0
    %970 = vmatpush1.xpose.msra.mxu0 0.0
    %971 = vmatprep.subr.mxu0 0.0
    %972 = vmatpush1.xpose.msra.mxu0 0.0
    %973 = vmatprep.subr.mxu0 0.0
    %974 = vmatpush1.xpose.msra.mxu0 0.0
    %975 = vmatprep.subr.mxu0 0.0
    %976 = vmatpush1.xpose.msra.mxu0 0.0
    %977 = vmatprep.subr.mxu0 0.0
    %978 = vmatpush1.xpose.msra.mxu0 0.0
    %979 = vmatprep.subr.mxu0 0.0
    %980 = vmatpush1.xpose.msra.mxu0 0.0
    %981 = vmatprep.subr.mxu0 0.0
    %982 = vmatpush1.xpose.msra.mxu0 0.0
    %983 = vmatprep.subr.mxu0 0.0
    %984 = vmatpush1.xpose.msra.mxu0 0.0
    %985 = vmatprep.subr.mxu0 0.0
    %986 = vmatpush1.xpose.msra.mxu0 0.0
    %987 = vmatprep.subr.mxu0 0.0
    %988 = vmatpush1.xpose.msra.mxu0 0.0
    %989 = vmatprep.mubr.f32.mxu0 0.0
    %990 = vmatmul.mubr.f32.gmra.mrb[0].mxu0 %v919
    %v991 = vpop.f32.mrb[0].mxu0
    %v992 = vadd.f32 %v530, %v991
    %v993 = vpop.f32.mrb[0].mxu0
    %994 = vmatprep.mubr.f32.mxu0 0.0
    %995 = vmatmul.mubr.f32.gmra.mrb[0].mxu0 %v921
    %v996 = vpop.f32.mrb[0].mxu0
    %v997 = vadd.f32 %v530, %v996
    %v998 = vpop.f32.mrb[0].mxu0
    %999 = vdwg.mxu0
    %v1000 = vsel %vm531, %v992, -inf
    %1001 = vmax.xlane.f32.xlu0 %v1000
    %v1002 = vpop.xlane.xlu0 %1001
    %v1003 = vsel %vm531, %v997, -inf
    %1004 = vmax.xlane.f32.xlu0 %v1003
    %v1005 = vpop.xlane.xlu0 %1004
    %v1006 = vsub.f32 %v992, %v1002
    %v1007 = vsub.f32 %v997, %v1005
    %v1008 = vmul.f32 %v1006, 1.442695
    %v1009 = vpow.pop %v1008
    %v1010 = vmul.f32 %v1007, 1.442695
    %v1011 = vpow.pop %v1010
    %v1012 = vsel %vm531, %v1009, 0.0
    %1013 = vadd.xlane.f32.xlu0 %v1012
    %v1014 = vpop.xlane.xlu0 %1013
    %v1015 = vsel %vm531, %v1011, 0.0
    %1016 = vadd.xlane.f32.xlu0 %v1015
    %v1017 = vpop.xlane.xlu0 %1016
    %v1018 = vrcp.pop %v1014
    %v1019 = vmul.f32 %v1009, %v1018
    %v1020 = vrcp.pop %v1017
    %v1021 = vmul.f32 %v1011, %v1020
    %1022 = vrot.lane.b32.xlu0 %v409, 64
    %v1023 = vpop.permute.xlu0 %1022
    %v1026 = vsel %vm531, %v1019, 0
    %v1029 = vsel %vm531, %v1021, 0
    %1031 = vmatprep.subr.mxu0 0.0
    %1032 = vmatpush1.msra.mxu0 %v1023
    %1033 = vmatprep.subr.mxu0 0.0
    %1034 = vmatpush1.msra.mxu0 0.0
    %1035 = vmatprep.subr.mxu0 0.0
    %1036 = vmatpush1.msra.mxu0 0.0
    %1037 = vmatprep.subr.mxu0 0.0
    %1038 = vmatpush1.msra.mxu0 0.0
    %1039 = vmatprep.subr.mxu0 0.0
    %1040 = vmatpush1.msra.mxu0 0.0
    %1041 = vmatprep.subr.mxu0 0.0
    %1042 = vmatpush1.msra.mxu0 0.0
    %1043 = vmatprep.subr.mxu0 0.0
    %1044 = vmatpush1.msra.mxu0 0.0
    %1045 = vmatprep.subr.mxu0 0.0
    %1046 = vmatpush1.msra.mxu0 0.0
    %1047 = vmatprep.subr.mxu0 0.0
    %1048 = vmatpush1.msra.mxu0 0.0
    %1049 = vmatprep.subr.mxu0 0.0
    %1050 = vmatpush1.msra.mxu0 0.0
    %1051 = vmatprep.subr.mxu0 0.0
    %1052 = vmatpush1.msra.mxu0 0.0
    %1053 = vmatprep.subr.mxu0 0.0
    %1054 = vmatpush1.msra.mxu0 0.0
    %1055 = vmatprep.subr.mxu0 0.0
    %1056 = vmatpush1.msra.mxu0 0.0
    %1057 = vmatprep.subr.mxu0 0.0
    %1058 = vmatpush1.msra.mxu0 0.0
    %1059 = vmatprep.subr.mxu0 0.0
    %1060 = vmatpush1.msra.mxu0 0.0
    %1061 = vmatprep.subr.mxu0 0.0
    %1062 = vmatpush1.msra.mxu0 0.0
    %1063 = vmatprep.subr.mxu0 0.0
    %1064 = vmatpush1.msra.mxu0 0.0
    %1065 = vmatprep.subr.mxu0 0.0
    %1066 = vmatpush1.msra.mxu0 0.0
    %1067 = vmatprep.subr.mxu0 0.0
    %1068 = vmatpush1.msra.mxu0 0.0
    %1069 = vmatprep.subr.mxu0 0.0
    %1070 = vmatpush1.msra.mxu0 0.0
    %1071 = vmatprep.subr.mxu0 0.0
    %1072 = vmatpush1.msra.mxu0 0.0
    %1073 = vmatprep.subr.mxu0 0.0
    %1074 = vmatpush1.msra.mxu0 0.0
    %1075 = vmatprep.subr.mxu0 0.0
    %1076 = vmatpush1.msra.mxu0 0.0
    %1077 = vmatprep.subr.mxu0 0.0
    %1078 = vmatpush1.msra.mxu0 0.0
    %1079 = vmatprep.subr.mxu0 0.0
    %1080 = vmatpush1.msra.mxu0 0.0
    %1081 = vmatprep.subr.mxu0 0.0
    %1082 = vmatpush1.msra.mxu0 0.0
    %1083 = vmatprep.subr.mxu0 0.0
    %1084 = vmatpush1.msra.mxu0 0.0
    %1085 = vmatprep.subr.mxu0 0.0
    %1086 = vmatpush1.msra.mxu0 0.0
    %1087 = vmatprep.subr.mxu0 0.0
    %1088 = vmatpush1.msra.mxu0 0.0
    %1089 = vmatprep.subr.mxu0 0.0
    %1090 = vmatpush1.msra.mxu0 0.0
    %1091 = vmatprep.subr.mxu0 0.0
    %1092 = vmatpush1.msra.mxu0 0.0
    %1093 = vmatprep.subr.mxu0 0.0
    %1094 = vmatpush1.msra.mxu0 0.0
    %1095 = vmatprep.mubr.f32.mxu0 0.0
    %1096 = vmatmul.mubr.f32.gmra.mrb[0].mxu0 %v1026
    %v1097 = vpop.f32.mrb[0].mxu0
    %v1098 = vadd.f32 0.0, %v1097
    %v1099 = vpop.f32.mrb[0].mxu0
    %1100 = vmatprep.mubr.f32.mxu0 0.0
    %1101 = vmatmul.mubr.f32.gmra.mrb[0].mxu0 %v1029
    %v1102 = vpop.f32.mrb[0].mxu0
    %v1103 = vadd.f32 0.0, %v1102
    %v1104 = vpop.f32.mrb[0].mxu0
    %1105 = vdwg.mxu0
    %v1106 = vadd.f32 %v905, %v1098
    %v1107 = vadd.f32 %v910, %v1103
    %1108 = vrot.lane.b32.xlu0 %v287, 104
    %v1109 = vpop.permute.xlu0 %1108
    %1110 = vrot.lane.b32.xlu0 %v292, 104
    %v1111 = vpop.permute.xlu0 %1110
    %1112 = vrot.lane.b32.xlu0 %v407, 104
    %v1113 = vpop.permute.xlu0 %1112
    %v1114 = vsel %vm531, %v1109, 0
    %v1116 = vsel %vm531, %v1111, 0
    %v1118 = vsel %vm531, %v1113, 0
    %1120 = vmatprep.subr.mxu0 0.0
    %1121 = vmatpush1.xpose.msra.mxu0 %v1118
    %1122 = vmatprep.subr.mxu0 0.0
    %1123 = vmatpush1.xpose.msra.mxu0 0.0
    %1124 = vmatprep.subr.mxu0 0.0
    %1125 = vmatpush1.xpose.msra.mxu0 0.0
    %1126 = vmatprep.subr.mxu0 0.0
    %1127 = vmatpush1.xpose.msra.mxu0 0.0
    %1128 = vmatprep.subr.mxu0 0.0
    %1129 = vmatpush1.xpose.msra.mxu0 0.0
    %1130 = vmatprep.subr.mxu0 0.0
    %1131 = vmatpush1.xpose.msra.mxu0 0.0
    %1132 = vmatprep.subr.mxu0 0.0
    %1133 = vmatpush1.xpose.msra.mxu0 0.0
    %1134 = vmatprep.subr.mxu0 0.0
    %1135 = vmatpush1.xpose.msra.mxu0 0.0
    %1136 = vmatprep.subr.mxu0 0.0
    %1137 = vmatpush1.xpose.msra.mxu0 0.0
    %1138 = vmatprep.subr.mxu0 0.0
    %1139 = vmatpush1.xpose.msra.mxu0 0.0
    %1140 = vmatprep.subr.mxu0 0.0
    %1141 = vmatpush1.xpose.msra.mxu0 0.0
    %1142 = vmatprep.subr.mxu0 0.0
    %1143 = vmatpush1.xpose.msra.mxu0 0.0
    %1144 = vmatprep.subr.mxu0 0.0
    %1145 = vmatpush1.xpose.msra.mxu0 0.0
    %1146 = vmatprep.subr.mxu0 0.0
    %1147 = vmatpush1.xpose.msra.mxu0 0.0
    %1148 = vmatprep.subr.mxu0 0.0
    %1149 = vmatpush1.xpose.msra.mxu0 0.0
    %1150 = vmatprep.subr.mxu0 0.0
    %1151 = vmatpush1.xpose.msra.mxu0 0.0
    %1152 = vmatprep.subr.mxu0 0.0
    %1153 = vmatpush1.xpose.msra.mxu0 0.0
    %1154 = vmatprep.subr.mxu0 0.0
    %1155 = vmatpush1.xpose.msra.mxu0 0.0
    %1156 = vmatprep.subr.mxu0 0.0
    %1157 = vmatpush1.xpose.msra.mxu0 0.0
    %1158 = vmatprep.subr.mxu0 0.0
    %1159 = vmatpush1.xpose.msra.mxu0 0.0
    %1160 = vmatprep.subr.mxu0 0.0
    %1161 = vmatpush1.xpose.msra.mxu0 0.0
    %1162 = vmatprep.subr.mxu0 0.0
    %1163 = vmatpush1.xpose.msra.mxu0 0.0
    %1164 = vmatprep.subr.mxu0 0.0
    %1165 = vmatpush1.xpose.msra.mxu0 0.0
    %1166 = vmatprep.subr.mxu0 0.0
    %1167 = vmatpush1.xpose.msra.mxu0 0.0
    %1168 = vmatprep.subr.mxu0 0.0
    %1169 = vmatpush1.xpose.msra.mxu0 0.0
    %1170 = vmatprep.subr.mxu0 0.0
    %1171 = vmatpush1.xpose.msra.mxu0 0.0
    %1172 = vmatprep.subr.mxu0 0.0
    %1173 = vmatpush1.xpose.msra.mxu0 0.0
    %1174 = vmatprep.subr.mxu0 0.0
    %1175 = vmatpush1.xpose.msra.mxu0 0.0
    %1176 = vmatprep.subr.mxu0 0.0
    %1177 = vmatpush1.xpose.msra.mxu0 0.0
    %1178 = vmatprep.subr.mxu0 0.0
    %1179 = vmatpush1.xpose.msra.mxu0 0.0
    %1180 = vmatprep.subr.mxu0 0.0
    %1181 = vmatpush1.xpose.msra.mxu0 0.0
    %1182 = vmatprep.subr.mxu0 0.0
    %1183 = vmatpush1.xpose.msra.mxu0 0.0
    %1184 = vmatprep.mubr.f32.mxu0 0.0
    %1185 = vmatmul.mubr.f32.gmra.mrb[0].mxu0 %v1114
    %v1186 = vpop.f32.mrb[0].mxu0
    %v1187 = vadd.f32 %v530, %v1186
    %v1188 = vpop.f32.mrb[0].mxu0
    %1189 = vmatprep.mubr.f32.mxu0 0.0
    %1190 = vmatmul.mubr.f32.gmra.mrb[0].mxu0 %v1116
    %v1191 = vpop.f32.mrb[0].mxu0
    %v1192 = vadd.f32 %v530, %v1191
    %v1193 = vpop.f32.mrb[0].mxu0
    %1194 = vdwg.mxu0
    %v1195 = vsel %vm531, %v1187, -inf
    %1196 = vmax.xlane.f32.xlu0 %v1195
    %v1197 = vpop.xlane.xlu0 %1196
    %v1198 = vsel %vm531, %v1192, -inf
    %1199 = vmax.xlane.f32.xlu0 %v1198
    %v1200 = vpop.xlane.xlu0 %1199
    %v1201 = vsub.f32 %v1187, %v1197
    %v1202 = vsub.f32 %v1192, %v1200
    %v1203 = vmul.f32 %v1201, 1.442695
    %v1204 = vpow.pop %v1203
    %v1205 = vmul.f32 %v1202, 1.442695
    %v1206 = vpow.pop %v1205
    %v1207 = vsel %vm531, %v1204, 0.0
    %1208 = vadd.xlane.f32.xlu0 %v1207
    %v1209 = vpop.xlane.xlu0 %1208
    %v1210 = vsel %vm531, %v1206, 0.0
    %1211 = vadd.xlane.f32.xlu0 %v1210
    %v1212 = vpop.xlane.xlu0 %1211
    %v1213 = vrcp.pop %v1209
    %v1214 = vmul.f32 %v1204, %v1213
    %v1215 = vrcp.pop %v1212
    %v1216 = vmul.f32 %v1206, %v1215
    %1217 = vrot.lane.b32.xlu0 %v409, 32
    %v1218 = vpop.permute.xlu0 %1217
    %v1221 = vsel %vm531, %v1214, 0
    %v1224 = vsel %vm531, %v1216, 0
    %1226 = vmatprep.subr.mxu0 0.0
    %1227 = vmatpush1.msra.mxu0 %v1218
    %1228 = vmatprep.subr.mxu0 0.0
    %1229 = vmatpush1.msra.mxu0 0.0
    %1230 = vmatprep.subr.mxu0 0.0
    %1231 = vmatpush1.msra.mxu0 0.0
    %1232 = vmatprep.subr.mxu0 0.0
    %1233 = vmatpush1.msra.mxu0 0.0
    %1234 = vmatprep.subr.mxu0 0.0
    %1235 = vmatpush1.msra.mxu0 0.0
    %1236 = vmatprep.subr.mxu0 0.0
    %1237 = vmatpush1.msra.mxu0 0.0
    %1238 = vmatprep.subr.mxu0 0.0
    %1239 = vmatpush1.msra.mxu0 0.0
    %1240 = vmatprep.subr.mxu0 0.0
    %1241 = vmatpush1.msra.mxu0 0.0
    %1242 = vmatprep.subr.mxu0 0.0
    %1243 = vmatpush1.msra.mxu0 0.0
    %1244 = vmatprep.subr.mxu0 0.0
    %1245 = vmatpush1.msra.mxu0 0.0
    %1246 = vmatprep.subr.mxu0 0.0
    %1247 = vmatpush1.msra.mxu0 0.0
    %1248 = vmatprep.subr.mxu0 0.0
    %1249 = vmatpush1.msra.mxu0 0.0
    %1250 = vmatprep.subr.mxu0 0.0
    %1251 = vmatpush1.msra.mxu0 0.0
    %1252 = vmatprep.subr.mxu0 0.0
    %1253 = vmatpush1.msra.mxu0 0.0
    %1254 = vmatprep.subr.mxu0 0.0
    %1255 = vmatpush1.msra.mxu0 0.0
    %1256 = vmatprep.subr.mxu0 0.0
    %1257 = vmatpush1.msra.mxu0 0.0
    %1258 = vmatprep.subr.mxu0 0.0
    %1259 = vmatpush1.msra.mxu0 0.0
    %1260 = vmatprep.subr.mxu0 0.0
    %1261 = vmatpush1.msra.mxu0 0.0
    %1262 = vmatprep.subr.mxu0 0.0
    %1263 = vmatpush1.msra.mxu0 0.0
    %1264 = vmatprep.subr.mxu0 0.0
    %1265 = vmatpush1.msra.mxu0 0.0
    %1266 = vmatprep.subr.mxu0 0.0
    %1267 = vmatpush1.msra.mxu0 0.0
    %1268 = vmatprep.subr.mxu0 0.0
    %1269 = vmatpush1.msra.mxu0 0.0
    %1270 = vmatprep.subr.mxu0 0.0
    %1271 = vmatpush1.msra.mxu0 0.0
    %1272 = vmatprep.subr.mxu0 0.0
    %1273 = vmatpush1.msra.mxu0 0.0
    %1274 = vmatprep.subr.mxu0 0.0
    %1275 = vmatpush1.msra.mxu0 0.0
    %1276 = vmatprep.subr.mxu0 0.0
    %1277 = vmatpush1.msra.mxu0 0.0
    %1278 = vmatprep.subr.mxu0 0.0
    %1279 = vmatpush1.msra.mxu0 0.0
    %1280 = vmatprep.subr.mxu0 0.0
    %1281 = vmatpush1.msra.mxu0 0.0
    %1282 = vmatprep.subr.mxu0 0.0
    %1283 = vmatpush1.msra.mxu0 0.0
    %1284 = vmatprep.subr.mxu0 0.0
    %1285 = vmatpush1.msra.mxu0 0.0
    %1286 = vmatprep.subr.mxu0 0.0
    %1287 = vmatpush1.msra.mxu0 0.0
    %1288 = vmatprep.subr.mxu0 0.0
    %1289 = vmatpush1.msra.mxu0 0.0
    %1290 = vmatprep.mubr.f32.mxu0 0.0
    %1291 = vmatmul.mubr.f32.gmra.mrb[0].mxu0 %v1221
    %v1292 = vpop.f32.mrb[0].mxu0
    %v1293 = vadd.f32 0.0, %v1292
    %v1294 = vpop.f32.mrb[0].mxu0
    %1295 = vmatprep.mubr.f32.mxu0 0.0
    %1296 = vmatmul.mubr.f32.gmra.mrb[0].mxu0 %v1224
    %v1297 = vpop.f32.mrb[0].mxu0
    %v1298 = vadd.f32 0.0, %v1297
    %v1299 = vpop.f32.mrb[0].mxu0
    %1300 = vdwg.mxu0
    %v1301 = vadd.f32 %v1106, %v1293
    %v1302 = vadd.f32 %v1107, %v1298
    %v1304 = vlaneseq
    %v1305 = vshrl.u32 %v1304, 7
    %v1306 = vsub.s32 0, %v1305
    %v1307 = vrot.slane %v522, %v1306
    %v1309 = vadd.f32 %v1301, %v1307
    %v1310 = vadd.f32 %v1302, %v1307
    %v1311 = vmul.f32 %v1309, %v1309
    %v1312 = vmul.f32 %v1310, %v1310
    %v1313 = vsel %vm150, %v1311, 0.0
    %1314 = vadd.xlane.f32.xlu0 %v1313
    %v1315 = vpop.xlane.xlu0 %1314
    %v1316 = vsel %vm150, %v1312, 0.0
    %1317 = vadd.xlane.f32.xlu0 %v1316
    %v1318 = vpop.xlane.xlu0 %1317
    %v1319 = vrsqrt.pop %v1315
    %v1320 = vmul.f32 %v1315, %v1319
    %vm1321 = vcmp.eq.f32.partialorder %v1315, inf
    %v1322 = vsel %vm1321, %v1315, %v1320
    %vm1323 = vcmp.eq.f32.partialorder %v1315, 0.0
    %v1324 = vand.u32 %v1315, 2147483648
    %v1325 = vsel %vm1323, %v1324, %v1322
    %v1326 = vrsqrt.pop %v1318
    %v1327 = vmul.f32 %v1318, %v1326
    %vm1328 = vcmp.eq.f32.partialorder %v1318, inf
    %v1329 = vsel %vm1328, %v1318, %v1327
    %vm1330 = vcmp.eq.f32.partialorder %v1318, 0.0
    %v1331 = vand.u32 %v1318, 2147483648
    %v1332 = vsel %vm1330, %v1331, %v1329
    %v1333 = vmax.f32 %v1325, 1e-08
    %v1334 = vmax.f32 %v1332, 1e-08
    %v1335 = vrcp.pop %v1333
    %v1336 = vmul.f32 %v1309, %v1335
    %v1337 = vrcp.pop %v1334
    %v1338 = vmul.f32 %v1310, %v1337
    %v1340 = vsel %vm150, %v519, 0
    %v1343 = vsel %vm150, %v1336, 0
    %v1346 = vsel %vm150, %v1338, 0
    %1348 = vmatprep.subr.mxu0 0.0
    %1349 = vmatpush1.xpose.msra.mxu0 %v1343
    %1350 = vmatprep.subr.mxu0 0.0
    %1351 = vmatpush1.xpose.msra.mxu0 %v1346
    %1352 = vmatprep.subr.mxu0 0.0
    %1353 = vmatpush1.xpose.msra.mxu0 0.0
    %1354 = vmatprep.subr.mxu0 0.0
    %1355 = vmatpush1.xpose.msra.mxu0 0.0
    %1356 = vmatprep.subr.mxu0 0.0
    %1357 = vmatpush1.xpose.msra.mxu0 0.0
    %1358 = vmatprep.subr.mxu0 0.0
    %1359 = vmatpush1.xpose.msra.mxu0 0.0
    %1360 = vmatprep.subr.mxu0 0.0
    %1361 = vmatpush1.xpose.msra.mxu0 0.0
    %1362 = vmatprep.subr.mxu0 0.0
    %1363 = vmatpush1.xpose.msra.mxu0 0.0
    %1364 = vmatprep.subr.mxu0 0.0
    %1365 = vmatpush1.xpose.msra.mxu0 0.0
    %1366 = vmatprep.subr.mxu0 0.0
    %1367 = vmatpush1.xpose.msra.mxu0 0.0
    %1368 = vmatprep.subr.mxu0 0.0
    %1369 = vmatpush1.xpose.msra.mxu0 0.0
    %1370 = vmatprep.subr.mxu0 0.0
    %1371 = vmatpush1.xpose.msra.mxu0 0.0
    %1372 = vmatprep.subr.mxu0 0.0
    %1373 = vmatpush1.xpose.msra.mxu0 0.0
    %1374 = vmatprep.subr.mxu0 0.0
    %1375 = vmatpush1.xpose.msra.mxu0 0.0
    %1376 = vmatprep.subr.mxu0 0.0
    %1377 = vmatpush1.xpose.msra.mxu0 0.0
    %1378 = vmatprep.subr.mxu0 0.0
    %1379 = vmatpush1.xpose.msra.mxu0 0.0
    %1380 = vmatprep.subr.mxu0 0.0
    %1381 = vmatpush1.xpose.msra.mxu0 0.0
    %1382 = vmatprep.subr.mxu0 0.0
    %1383 = vmatpush1.xpose.msra.mxu0 0.0
    %1384 = vmatprep.subr.mxu0 0.0
    %1385 = vmatpush1.xpose.msra.mxu0 0.0
    %1386 = vmatprep.subr.mxu0 0.0
    %1387 = vmatpush1.xpose.msra.mxu0 0.0
    %1388 = vmatprep.subr.mxu0 0.0
    %1389 = vmatpush1.xpose.msra.mxu0 0.0
    %1390 = vmatprep.subr.mxu0 0.0
    %1391 = vmatpush1.xpose.msra.mxu0 0.0
    %1392 = vmatprep.subr.mxu0 0.0
    %1393 = vmatpush1.xpose.msra.mxu0 0.0
    %1394 = vmatprep.subr.mxu0 0.0
    %1395 = vmatpush1.xpose.msra.mxu0 0.0
    %1396 = vmatprep.subr.mxu0 0.0
    %1397 = vmatpush1.xpose.msra.mxu0 0.0
    %1398 = vmatprep.subr.mxu0 0.0
    %1399 = vmatpush1.xpose.msra.mxu0 0.0
    %1400 = vmatprep.subr.mxu0 0.0
    %1401 = vmatpush1.xpose.msra.mxu0 0.0
    %1402 = vmatprep.subr.mxu0 0.0
    %1403 = vmatpush1.xpose.msra.mxu0 0.0
    %1404 = vmatprep.subr.mxu0 0.0
    %1405 = vmatpush1.xpose.msra.mxu0 0.0
    %1406 = vmatprep.subr.mxu0 0.0
    %1407 = vmatpush1.xpose.msra.mxu0 0.0
    %1408 = vmatprep.subr.mxu0 0.0
    %1409 = vmatpush1.xpose.msra.mxu0 0.0
    %1410 = vmatprep.subr.mxu0 0.0
    %1411 = vmatpush1.xpose.msra.mxu0 0.0
    %1412 = vmatprep.mubr.f32.mxu0 0.0
    %1413 = vmatmul.mubr.f32.gmra.mrb[0].mxu0 %v1340
    %v1414 = vpop.f32.mrb[0].mxu0
    %v1415 = vadd.f32 0.0, %v1414
    %v1416 = vpop.f32.mrb[0].mxu0
    %1417 = vdwg.mxu0
    %v1418 = vsub.f32 1.0, %v1415
    %v1419 = vmul.f32 %v1418, -0.5
    %v1420 = vmul.f32 %v1419, %v1418
    %v1422 = vlaneseq
    %v1423 = vshrl.u32 %v1422, 7
    %v1424 = vsub.s32 0, %v1423
    %v1425 = vrot.slane %v525, %v1424
    %1426 = vset.pattern.permute.xlu0 0
    %1427 = vperm.xlu0 %1426, %v1425
    %v1428 = vpop.permute.xlu0 %1427
    %v1430 = vrcp.pop %v1428
    %v1431 = vmul.f32 %v1420, %v1430
    %v1432 = vmul.f32 %v1431, 1.442695
    %v1433 = vpow.pop %v1432
    %v1435 = vlaneseq
    %v1436 = vshrl.u32 %v1435, 7
    %v1437 = vsub.s32 0, %v1436
    %v1438 = vrot.slane %v523, %v1437
    %1439 = vset.pattern.permute.xlu0 0
    %1440 = vperm.xlu0 %1439, %v1438
    %v1441 = vpop.permute.xlu0 %1440
    %v1443 = vmul.f32 %v1441, %v1433
    %v1444 = vld [vmem:[#allocation9 + $0x1] sm:$0x1]
    %v1445 = vlaneseq
    %v1446 = vshrl.u32 %v1445, 7
    %v1447 = vsub.s32 0, %v1446
    %v1448 = vrot.slane %v1444, %v1447
    %v1450 = vsel %vm531, %v297, 0
    %v1453 = vsel %vm531, %v302, 0
    %v1456 = vsel %vm531, %v413, 0
    %1458 = vmatprep.subr.mxu0 0.0
    %1459 = vmatpush1.xpose.msra.mxu0 %v1456
    %1460 = vmatprep.subr.mxu0 0.0
    %1461 = vmatpush1.xpose.msra.mxu0 0.0
    %1462 = vmatprep.subr.mxu0 0.0
    %1463 = vmatpush1.xpose.msra.mxu0 0.0
    %1464 = vmatprep.subr.mxu0 0.0
    %1465 = vmatpush1.xpose.msra.mxu0 0.0
    %1466 = vmatprep.subr.mxu0 0.0
    %1467 = vmatpush1.xpose.msra.mxu0 0.0
    %1468 = vmatprep.subr.mxu0 0.0
    %1469 = vmatpush1.xpose.msra.mxu0 0.0
    %1470 = vmatprep.subr.mxu0 0.0
    %1471 = vmatpush1.xpose.msra.mxu0 0.0
    %1472 = vmatprep.subr.mxu0 0.0
    %1473 = vmatpush1.xpose.msra.mxu0 0.0
    %1474 = vmatprep.subr.mxu0 0.0
    %1475 = vmatpush1.xpose.msra.mxu0 0.0
    %1476 = vmatprep.subr.mxu0 0.0
    %1477 = vmatpush1.xpose.msra.mxu0 0.0
    %1478 = vmatprep.subr.mxu0 0.0
    %1479 = vmatpush1.xpose.msra.mxu0 0.0
    %1480 = vmatprep.subr.mxu0 0.0
    %1481 = vmatpush1.xpose.msra.mxu0 0.0
    %1482 = vmatprep.subr.mxu0 0.0
    %1483 = vmatpush1.xpose.msra.mxu0 0.0
    %1484 = vmatprep.subr.mxu0 0.0
    %1485 = vmatpush1.xpose.msra.mxu0 0.0
    %1486 = vmatprep.subr.mxu0 0.0
    %1487 = vmatpush1.xpose.msra.mxu0 0.0
    %1488 = vmatprep.subr.mxu0 0.0
    %1489 = vmatpush1.xpose.msra.mxu0 0.0
    %1490 = vmatprep.subr.mxu0 0.0
    %1491 = vmatpush1.xpose.msra.mxu0 0.0
    %1492 = vmatprep.subr.mxu0 0.0
    %1493 = vmatpush1.xpose.msra.mxu0 0.0
    %1494 = vmatprep.subr.mxu0 0.0
    %1495 = vmatpush1.xpose.msra.mxu0 0.0
    %1496 = vmatprep.subr.mxu0 0.0
    %1497 = vmatpush1.xpose.msra.mxu0 0.0
    %1498 = vmatprep.subr.mxu0 0.0
    %1499 = vmatpush1.xpose.msra.mxu0 0.0
    %1500 = vmatprep.subr.mxu0 0.0
    %1501 = vmatpush1.xpose.msra.mxu0 0.0
    %1502 = vmatprep.subr.mxu0 0.0
    %1503 = vmatpush1.xpose.msra.mxu0 0.0
    %1504 = vmatprep.subr.mxu0 0.0
    %1505 = vmatpush1.xpose.msra.mxu0 0.0
    %1506 = vmatprep.subr.mxu0 0.0
    %1507 = vmatpush1.xpose.msra.mxu0 0.0
    %1508 = vmatprep.subr.mxu0 0.0
    %1509 = vmatpush1.xpose.msra.mxu0 0.0
    %1510 = vmatprep.subr.mxu0 0.0
    %1511 = vmatpush1.xpose.msra.mxu0 0.0
    %1512 = vmatprep.subr.mxu0 0.0
    %1513 = vmatpush1.xpose.msra.mxu0 0.0
    %1514 = vmatprep.subr.mxu0 0.0
    %1515 = vmatpush1.xpose.msra.mxu0 0.0
    %1516 = vmatprep.subr.mxu0 0.0
    %1517 = vmatpush1.xpose.msra.mxu0 0.0
    %1518 = vmatprep.subr.mxu0 0.0
    %1519 = vmatpush1.xpose.msra.mxu0 0.0
    %1520 = vmatprep.subr.mxu0 0.0
    %1521 = vmatpush1.xpose.msra.mxu0 0.0
    %1522 = vmatprep.mubr.f32.mxu0 0.0
    %1523 = vmatmul.mubr.f32.gmra.mrb[0].mxu0 %v1450
    %v1524 = vpop.f32.mrb[0].mxu0
    %v1525 = vadd.f32 %v1448, %v1524
    %v1526 = vpop.f32.mrb[0].mxu0
    %1527 = vmatprep.mubr.f32.mxu0 0.0
    %1528 = vmatmul.mubr.f32.gmra.mrb[0].mxu0 %v1453
    %v1529 = vpop.f32.mrb[0].mxu0
    %v1530 = vadd.f32 %v1448, %v1529
    %v1531 = vpop.f32.mrb[0].mxu0
    %1532 = vdwg.mxu0
    %v1533 = vsel %vm531, %v1525, -inf
    %1534 = vmax.xlane.f32.xlu0 %v1533
    %v1535 = vpop.xlane.xlu0 %1534
    %v1536 = vsel %vm531, %v1530, -inf
    %1537 = vmax.xlane.f32.xlu0 %v1536
    %v1538 = vpop.xlane.xlu0 %1537
    %v1539 = vsub.f32 %v1525, %v1535
    %v1540 = vsub.f32 %v1530, %v1538
    %v1541 = vmul.f32 %v1539, 1.442695
    %v1542 = vpow.pop %v1541
    %v1543 = vmul.f32 %v1540, 1.442695
    %v1544 = vpow.pop %v1543
    %v1545 = vsel %vm531, %v1542, 0.0
    %1546 = vadd.xlane.f32.xlu0 %v1545
    %v1547 = vpop.xlane.xlu0 %1546
    %v1548 = vsel %vm531, %v1544, 0.0
    %1549 = vadd.xlane.f32.xlu0 %v1548
    %v1550 = vpop.xlane.xlu0 %1549
    %v1551 = vrcp.pop %v1547
    %v1552 = vmul.f32 %v1542, %v1551
    %v1553 = vrcp.pop %v1550
    %v1554 = vmul.f32 %v1544, %v1553
    %1555 = vrot.lane.b32.xlu0 %v297, 120
    %v1556 = vpop.permute.xlu0 %1555
    %1557 = vrot.lane.b32.xlu0 %v302, 120
    %v1558 = vpop.permute.xlu0 %1557
    %1559 = vrot.lane.b32.xlu0 %v413, 120
    %v1560 = vpop.permute.xlu0 %1559
    %v1561 = vsel %vm531, %v1556, 0
    %v1563 = vsel %vm531, %v1558, 0
    %v1565 = vsel %vm531, %v1560, 0
    %1567 = vmatprep.subr.mxu0 0.0
    %1568 = vmatpush1.xpose.msra.mxu0 %v1565
    %1569 = vmatprep.subr.mxu0 0.0
    %1570 = vmatpush1.xpose.msra.mxu0 0.0
    %1571 = vmatprep.subr.mxu0 0.0
    %1572 = vmatpush1.xpose.msra.mxu0 0.0
    %1573 = vmatprep.subr.mxu0 0.0
    %1574 = vmatpush1.xpose.msra.mxu0 0.0
    %1575 = vmatprep.subr.mxu0 0.0
    %1576 = vmatpush1.xpose.msra.mxu0 0.0
    %1577 = vmatprep.subr.mxu0 0.0
    %1578 = vmatpush1.xpose.msra.mxu0 0.0
    %1579 = vmatprep.subr.mxu0 0.0
    %1580 = vmatpush1.xpose.msra.mxu0 0.0
    %1581 = vmatprep.subr.mxu0 0.0
    %1582 = vmatpush1.xpose.msra.mxu0 0.0
    %1583 = vmatprep.subr.mxu0 0.0
    %1584 = vmatpush1.xpose.msra.mxu0 0.0
    %1585 = vmatprep.subr.mxu0 0.0
    %1586 = vmatpush1.xpose.msra.mxu0 0.0
    %1587 = vmatprep.subr.mxu0 0.0
    %1588 = vmatpush1.xpose.msra.mxu0 0.0
    %1589 = vmatprep.subr.mxu0 0.0
    %1590 = vmatpush1.xpose.msra.mxu0 0.0
    %1591 = vmatprep.subr.mxu0 0.0
    %1592 = vmatpush1.xpose.msra.mxu0 0.0
    %1593 = vmatprep.subr.mxu0 0.0
    %1594 = vmatpush1.xpose.msra.mxu0 0.0
    %1595 = vmatprep.subr.mxu0 0.0
    %1596 = vmatpush1.xpose.msra.mxu0 0.0
    %1597 = vmatprep.subr.mxu0 0.0
    %1598 = vmatpush1.xpose.msra.mxu0 0.0
    %1599 = vmatprep.subr.mxu0 0.0
    %1600 = vmatpush1.xpose.msra.mxu0 0.0
    %1601 = vmatprep.subr.mxu0 0.0
    %1602 = vmatpush1.xpose.msra.mxu0 0.0
    %1603 = vmatprep.subr.mxu0 0.0
    %1604 = vmatpush1.xpose.msra.mxu0 0.0
    %1605 = vmatprep.subr.mxu0 0.0
    %1606 = vmatpush1.xpose.msra.mxu0 0.0
    %1607 = vmatprep.subr.mxu0 0.0
    %1608 = vmatpush1.xpose.msra.mxu0 0.0
    %1609 = vmatprep.subr.mxu0 0.0
    %1610 = vmatpush1.xpose.msra.mxu0 0.0
    %1611 = vmatprep.subr.mxu0 0.0
    %1612 = vmatpush1.xpose.msra.mxu0 0.0
    %1613 = vmatprep.subr.mxu0 0.0
    %1614 = vmatpush1.xpose.msra.mxu0 0.0
    %1615 = vmatprep.subr.mxu0 0.0
    %1616 = vmatpush1.xpose.msra.mxu0 0.0
    %1617 = vmatprep.subr.mxu0 0.0
    %1618 = vmatpush1.xpose.msra.mxu0 0.0
    %1619 = vmatprep.subr.mxu0 0.0
    %1620 = vmatpush1.xpose.msra.mxu0 0.0
    %1621 = vmatprep.subr.mxu0 0.0
    %1622 = vmatpush1.xpose.msra.mxu0 0.0
    %1623 = vmatprep.subr.mxu0 0.0
    %1624 = vmatpush1.xpose.msra.mxu0 0.0
    %1625 = vmatprep.subr.mxu0 0.0
    %1626 = vmatpush1.xpose.msra.mxu0 0.0
    %1627 = vmatprep.subr.mxu0 0.0
    %1628 = vmatpush1.xpose.msra.mxu0 0.0
    %1629 = vmatprep.subr.mxu0 0.0
    %1630 = vmatpush1.xpose.msra.mxu0 0.0
    %1631 = vmatprep.mubr.f32.mxu0 0.0
    %1632 = vmatmul.mubr.f32.gmra.mrb[0].mxu0 %v1561
    %v1633 = vpop.f32.mrb[0].mxu0
    %v1634 = vadd.f32 %v1448, %v1633
    %v1635 = vpop.f32.mrb[0].mxu0
    %1636 = vmatprep.mubr.f32.mxu0 0.0
    %1637 = vmatmul.mubr.f32.gmra.mrb[0].mxu0 %v1563
    %v1638 = vpop.f32.mrb[0].mxu0
    %v1639 = vadd.f32 %v1448, %v1638
    %v1640 = vpop.f32.mrb[0].mxu0
    %1641 = vdwg.mxu0
    %v1642 = vsel %vm531, %v1634, -inf
    %1643 = vmax.xlane.f32.xlu0 %v1642
    %v1644 = vpop.xlane.xlu0 %1643
    %v1645 = vsel %vm531, %v1639, -inf
    %1646 = vmax.xlane.f32.xlu0 %v1645
    %v1647 = vpop.xlane.xlu0 %1646
    %v1648 = vsub.f32 %v1634, %v1644
    %v1649 = vsub.f32 %v1639, %v1647
    %v1650 = vmul.f32 %v1648, 1.442695
    %v1651 = vpow.pop %v1650
    %v1652 = vmul.f32 %v1649, 1.442695
    %v1653 = vpow.pop %v1652
    %v1654 = vsel %vm531, %v1651, 0.0
    %1655 = vadd.xlane.f32.xlu0 %v1654
    %v1656 = vpop.xlane.xlu0 %1655
    %v1657 = vsel %vm531, %v1653, 0.0
    %1658 = vadd.xlane.f32.xlu0 %v1657
    %v1659 = vpop.xlane.xlu0 %1658
    %v1660 = vrcp.pop %v1656
    %v1661 = vmul.f32 %v1651, %v1660
    %v1662 = vrcp.pop %v1659
    %v1663 = vmul.f32 %v1653, %v1662
    %1665 = vrot.lane.b32.xlu0 %v415, 96
    %v1666 = vpop.permute.xlu0 %1665
    %v1669 = vsel %vm531, %v1661, 0
    %v1672 = vsel %vm531, %v1663, 0
    %1674 = vmatprep.subr.mxu0 0.0
    %1675 = vmatpush1.msra.mxu0 %v1666
    %1676 = vmatprep.subr.mxu0 0.0
    %1677 = vmatpush1.msra.mxu0 0.0
    %1678 = vmatprep.subr.mxu0 0.0
    %1679 = vmatpush1.msra.mxu0 0.0
    %1680 = vmatprep.subr.mxu0 0.0
    %1681 = vmatpush1.msra.mxu0 0.0
    %1682 = vmatprep.subr.mxu0 0.0
    %1683 = vmatpush1.msra.mxu0 0.0
    %1684 = vmatprep.subr.mxu0 0.0
    %1685 = vmatpush1.msra.mxu0 0.0
    %1686 = vmatprep.subr.mxu0 0.0
    %1687 = vmatpush1.msra.mxu0 0.0
    %1688 = vmatprep.subr.mxu0 0.0
    %1689 = vmatpush1.msra.mxu0 0.0
    %1690 = vmatprep.subr.mxu0 0.0
    %1691 = vmatpush1.msra.mxu0 0.0
    %1692 = vmatprep.subr.mxu0 0.0
    %1693 = vmatpush1.msra.mxu0 0.0
    %1694 = vmatprep.subr.mxu0 0.0
    %1695 = vmatpush1.msra.mxu0 0.0
    %1696 = vmatprep.subr.mxu0 0.0
    %1697 = vmatpush1.msra.mxu0 0.0
    %1698 = vmatprep.subr.mxu0 0.0
    %1699 = vmatpush1.msra.mxu0 0.0
    %1700 = vmatprep.subr.mxu0 0.0
    %1701 = vmatpush1.msra.mxu0 0.0
    %1702 = vmatprep.subr.mxu0 0.0
    %1703 = vmatpush1.msra.mxu0 0.0
    %1704 = vmatprep.subr.mxu0 0.0
    %1705 = vmatpush1.msra.mxu0 0.0
    %1706 = vmatprep.subr.mxu0 0.0
    %1707 = vmatpush1.msra.mxu0 0.0
    %1708 = vmatprep.subr.mxu0 0.0
    %1709 = vmatpush1.msra.mxu0 0.0
    %1710 = vmatprep.subr.mxu0 0.0
    %1711 = vmatpush1.msra.mxu0 0.0
    %1712 = vmatprep.subr.mxu0 0.0
    %1713 = vmatpush1.msra.mxu0 0.0
    %1714 = vmatprep.subr.mxu0 0.0
    %1715 = vmatpush1.msra.mxu0 0.0
    %1716 = vmatprep.subr.mxu0 0.0
    %1717 = vmatpush1.msra.mxu0 0.0
    %1718 = vmatprep.subr.mxu0 0.0
    %1719 = vmatpush1.msra.mxu0 0.0
    %1720 = vmatprep.subr.mxu0 0.0
    %1721 = vmatpush1.msra.mxu0 0.0
    %1722 = vmatprep.subr.mxu0 0.0
    %1723 = vmatpush1.msra.mxu0 0.0
    %1724 = vmatprep.subr.mxu0 0.0
    %1725 = vmatpush1.msra.mxu0 0.0
    %1726 = vmatprep.subr.mxu0 0.0
    %1727 = vmatpush1.msra.mxu0 0.0
    %1728 = vmatprep.subr.mxu0 0.0
    %1729 = vmatpush1.msra.mxu0 0.0
    %1730 = vmatprep.subr.mxu0 0.0
    %1731 = vmatpush1.msra.mxu0 0.0
    %1732 = vmatprep.subr.mxu0 0.0
    %1733 = vmatpush1.msra.mxu0 0.0
    %1734 = vmatprep.subr.mxu0 0.0
    %1735 = vmatpush1.msra.mxu0 0.0
    %1736 = vmatprep.subr.mxu0 0.0
    %1737 = vmatpush1.msra.mxu0 0.0
    %1738 = vmatprep.mubr.f32.mxu0 0.0
    %1739 = vmatmul.mubr.f32.gmra.mrb[0].mxu0 %v1669
    %v1740 = vpop.f32.mrb[0].mxu0
    %v1741 = vadd.f32 0.0, %v1740
    %v1742 = vpop.f32.mrb[0].mxu0
    %1743 = vmatprep.mubr.f32.mxu0 0.0
    %1744 = vmatmul.mubr.f32.gmra.mrb[0].mxu0 %v1672
    %v1745 = vpop.f32.mrb[0].mxu0
    %v1746 = vadd.f32 0.0, %v1745
    %v1747 = vpop.f32.mrb[0].mxu0
    %1748 = vdwg.mxu0
    %v1750 = vsel %vm531, %v1552, 0
    %v1753 = vsel %vm531, %v1554, 0
    %1755 = vmatprep.subr.mxu0 0.0
    %1756 = vmatpush1.msra.mxu0 %v415
    %1757 = vmatprep.subr.mxu0 0.0
    %1758 = vmatpush1.msra.mxu0 0.0
    %1759 = vmatprep.subr.mxu0 0.0
    %1760 = vmatpush1.msra.mxu0 0.0
    %1761 = vmatprep.subr.mxu0 0.0
    %1762 = vmatpush1.msra.mxu0 0.0
    %1763 = vmatprep.subr.mxu0 0.0
    %1764 = vmatpush1.msra.mxu0 0.0
    %1765 = vmatprep.subr.mxu0 0.0
    %1766 = vmatpush1.msra.mxu0 0.0
    %1767 = vmatprep.subr.mxu0 0.0
    %1768 = vmatpush1.msra.mxu0 0.0
    %1769 = vmatprep.subr.mxu0 0.0
    %1770 = vmatpush1.msra.mxu0 0.0
    %1771 = vmatprep.subr.mxu0 0.0
    %1772 = vmatpush1.msra.mxu0 0.0
    %1773 = vmatprep.subr.mxu0 0.0
    %1774 = vmatpush1.msra.mxu0 0.0
    %1775 = vmatprep.subr.mxu0 0.0
    %1776 = vmatpush1.msra.mxu0 0.0
    %1777 = vmatprep.subr.mxu0 0.0
    %1778 = vmatpush1.msra.mxu0 0.0
    %1779 = vmatprep.subr.mxu0 0.0
    %1780 = vmatpush1.msra.mxu0 0.0
    %1781 = vmatprep.subr.mxu0 0.0
    %1782 = vmatpush1.msra.mxu0 0.0
    %1783 = vmatprep.subr.mxu0 0.0
    %1784 = vmatpush1.msra.mxu0 0.0
    %1785 = vmatprep.subr.mxu0 0.0
    %1786 = vmatpush1.msra.mxu0 0.0
    %1787 = vmatprep.subr.mxu0 0.0
    %1788 = vmatpush1.msra.mxu0 0.0
    %1789 = vmatprep.subr.mxu0 0.0
    %1790 = vmatpush1.msra.mxu0 0.0
    %1791 = vmatprep.subr.mxu0 0.0
    %1792 = vmatpush1.msra.mxu0 0.0
    %1793 = vmatprep.subr.mxu0 0.0
    %1794 = vmatpush1.msra.mxu0 0.0
    %1795 = vmatprep.subr.mxu0 0.0
    %1796 = vmatpush1.msra.mxu0 0.0
    %1797 = vmatprep.subr.mxu0 0.0
    %1798 = vmatpush1.msra.mxu0 0.0
    %1799 = vmatprep.subr.mxu0 0.0
    %1800 = vmatpush1.msra.mxu0 0.0
    %1801 = vmatprep.subr.mxu0 0.0
    %1802 = vmatpush1.msra.mxu0 0.0
    %1803 = vmatprep.subr.mxu0 0.0
    %1804 = vmatpush1.msra.mxu0 0.0
    %1805 = vmatprep.subr.mxu0 0.0
    %1806 = vmatpush1.msra.mxu0 0.0
    %1807 = vmatprep.subr.mxu0 0.0
    %1808 = vmatpush1.msra.mxu0 0.0
    %1809 = vmatprep.subr.mxu0 0.0
    %1810 = vmatpush1.msra.mxu0 0.0
    %1811 = vmatprep.subr.mxu0 0.0
    %1812 = vmatpush1.msra.mxu0 0.0
    %1813 = vmatprep.subr.mxu0 0.0
    %1814 = vmatpush1.msra.mxu0 0.0
    %1815 = vmatprep.subr.mxu0 0.0
    %1816 = vmatpush1.msra.mxu0 0.0
    %1817 = vmatprep.subr.mxu0 0.0
    %1818 = vmatpush1.msra.mxu0 0.0
    %1819 = vmatprep.mubr.f32.mxu0 0.0
    %1820 = vmatmul.mubr.f32.gmra.mrb[0].mxu0 %v1750
    %v1821 = vpop.f32.mrb[0].mxu0
    %v1822 = vadd.f32 %v1741, %v1821
    %v1823 = vpop.f32.mrb[0].mxu0
    %1824 = vmatprep.mubr.f32.mxu0 0.0
    %1825 = vmatmul.mubr.f32.gmra.mrb[0].mxu0 %v1753
    %v1826 = vpop.f32.mrb[0].mxu0
    %v1827 = vadd.f32 %v1746, %v1826
    %v1828 = vpop.f32.mrb[0].mxu0
    %1829 = vdwg.mxu0
    %1830 = vrot.lane.b32.xlu0 %v297, 112
    %v1831 = vpop.permute.xlu0 %1830
    %1832 = vrot.lane.b32.xlu0 %v302, 112
    %v1833 = vpop.permute.xlu0 %1832
    %1834 = vrot.lane.b32.xlu0 %v413, 112
    %v1835 = vpop.permute.xlu0 %1834
    %v1836 = vsel %vm531, %v1831, 0
    %v1838 = vsel %vm531, %v1833, 0
    %v1840 = vsel %vm531, %v1835, 0
    %1842 = vmatprep.subr.mxu0 0.0
    %1843 = vmatpush1.xpose.msra.mxu0 %v1840
    %1844 = vmatprep.subr.mxu0 0.0
    %1845 = vmatpush1.xpose.msra.mxu0 0.0
    %1846 = vmatprep.subr.mxu0 0.0
    %1847 = vmatpush1.xpose.msra.mxu0 0.0
    %1848 = vmatprep.subr.mxu0 0.0
    %1849 = vmatpush1.xpose.msra.mxu0 0.0
    %1850 = vmatprep.subr.mxu0 0.0
    %1851 = vmatpush1.xpose.msra.mxu0 0.0
    %1852 = vmatprep.subr.mxu0 0.0
    %1853 = vmatpush1.xpose.msra.mxu0 0.0
    %1854 = vmatprep.subr.mxu0 0.0
    %1855 = vmatpush1.xpose.msra.mxu0 0.0
    %1856 = vmatprep.subr.mxu0 0.0
    %1857 = vmatpush1.xpose.msra.mxu0 0.0
    %1858 = vmatprep.subr.mxu0 0.0
    %1859 = vmatpush1.xpose.msra.mxu0 0.0
    %1860 = vmatprep.subr.mxu0 0.0
    %1861 = vmatpush1.xpose.msra.mxu0 0.0
    %1862 = vmatprep.subr.mxu0 0.0
    %1863 = vmatpush1.xpose.msra.mxu0 0.0
    %1864 = vmatprep.subr.mxu0 0.0
    %1865 = vmatpush1.xpose.msra.mxu0 0.0
    %1866 = vmatprep.subr.mxu0 0.0
    %1867 = vmatpush1.xpose.msra.mxu0 0.0
    %1868 = vmatprep.subr.mxu0 0.0
    %1869 = vmatpush1.xpose.msra.mxu0 0.0
    %1870 = vmatprep.subr.mxu0 0.0
    %1871 = vmatpush1.xpose.msra.mxu0 0.0
    %1872 = vmatprep.subr.mxu0 0.0
    %1873 = vmatpush1.xpose.msra.mxu0 0.0
    %1874 = vmatprep.subr.mxu0 0.0
    %1875 = vmatpush1.xpose.msra.mxu0 0.0
    %1876 = vmatprep.subr.mxu0 0.0
    %1877 = vmatpush1.xpose.msra.mxu0 0.0
    %1878 = vmatprep.subr.mxu0 0.0
    %1879 = vmatpush1.xpose.msra.mxu0 0.0
    %1880 = vmatprep.subr.mxu0 0.0
    %1881 = vmatpush1.xpose.msra.mxu0 0.0
    %1882 = vmatprep.subr.mxu0 0.0
    %1883 = vmatpush1.xpose.msra.mxu0 0.0
    %1884 = vmatprep.subr.mxu0 0.0
    %1885 = vmatpush1.xpose.msra.mxu0 0.0
    %1886 = vmatprep.subr.mxu0 0.0
    %1887 = vmatpush1.xpose.msra.mxu0 0.0
    %1888 = vmatprep.subr.mxu0 0.0
    %1889 = vmatpush1.xpose.msra.mxu0 0.0
    %1890 = vmatprep.subr.mxu0 0.0
    %1891 = vmatpush1.xpose.msra.mxu0 0.0
    %1892 = vmatprep.subr.mxu0 0.0
    %1893 = vmatpush1.xpose.msra.mxu0 0.0
    %1894 = vmatprep.subr.mxu0 0.0
    %1895 = vmatpush1.xpose.msra.mxu0 0.0
    %1896 = vmatprep.subr.mxu0 0.0
    %1897 = vmatpush1.xpose.msra.mxu0 0.0
    %1898 = vmatprep.subr.mxu0 0.0
    %1899 = vmatpush1.xpose.msra.mxu0 0.0
    %1900 = vmatprep.subr.mxu0 0.0
    %1901 = vmatpush1.xpose.msra.mxu0 0.0
    %1902 = vmatprep.subr.mxu0 0.0
    %1903 = vmatpush1.xpose.msra.mxu0 0.0
    %1904 = vmatprep.subr.mxu0 0.0
    %1905 = vmatpush1.xpose.msra.mxu0 0.0
    %1906 = vmatprep.mubr.f32.mxu0 0.0
    %1907 = vmatmul.mubr.f32.gmra.mrb[0].mxu0 %v1836
    %v1908 = vpop.f32.mrb[0].mxu0
    %v1909 = vadd.f32 %v1448, %v1908
    %v1910 = vpop.f32.mrb[0].mxu0
    %1911 = vmatprep.mubr.f32.mxu0 0.0
    %1912 = vmatmul.mubr.f32.gmra.mrb[0].mxu0 %v1838
    %v1913 = vpop.f32.mrb[0].mxu0
    %v1914 = vadd.f32 %v1448, %v1913
    %v1915 = vpop.f32.mrb[0].mxu0
    %1916 = vdwg.mxu0
    %v1917 = vsel %vm531, %v1909, -inf
    %1918 = vmax.xlane.f32.xlu0 %v1917
    %v1919 = vpop.xlane.xlu0 %1918
    %v1920 = vsel %vm531, %v1914, -inf
    %1921 = vmax.xlane.f32.xlu0 %v1920
    %v1922 = vpop.xlane.xlu0 %1921
    %v1923 = vsub.f32 %v1909, %v1919
    %v1924 = vsub.f32 %v1914, %v1922
    %v1925 = vmul.f32 %v1923, 1.442695
    %v1926 = vpow.pop %v1925
    %v1927 = vmul.f32 %v1924, 1.442695
    %v1928 = vpow.pop %v1927
    %v1929 = vsel %vm531, %v1926, 0.0
    %1930 = vadd.xlane.f32.xlu0 %v1929
    %v1931 = vpop.xlane.xlu0 %1930
    %v1932 = vsel %vm531, %v1928, 0.0
    %1933 = vadd.xlane.f32.xlu0 %v1932
    %v1934 = vpop.xlane.xlu0 %1933
    %v1935 = vrcp.pop %v1931
    %v1936 = vmul.f32 %v1926, %v1935
    %v1937 = vrcp.pop %v1934
    %v1938 = vmul.f32 %v1928, %v1937
    %1939 = vrot.lane.b32.xlu0 %v415, 64
    %v1940 = vpop.permute.xlu0 %1939
    %v1943 = vsel %vm531, %v1936, 0
    %v1946 = vsel %vm531, %v1938, 0
    %1948 = vmatprep.subr.mxu0 0.0
    %1949 = vmatpush1.msra.mxu0 %v1940
    %1950 = vmatprep.subr.mxu0 0.0
    %1951 = vmatpush1.msra.mxu0 0.0
    %1952 = vmatprep.subr.mxu0 0.0
    %1953 = vmatpush1.msra.mxu0 0.0
    %1954 = vmatprep.subr.mxu0 0.0
    %1955 = vmatpush1.msra.mxu0 0.0
    %1956 = vmatprep.subr.mxu0 0.0
    %1957 = vmatpush1.msra.mxu0 0.0
    %1958 = vmatprep.subr.mxu0 0.0
    %1959 = vmatpush1.msra.mxu0 0.0
    %1960 = vmatprep.subr.mxu0 0.0
    %1961 = vmatpush1.msra.mxu0 0.0
    %1962 = vmatprep.subr.mxu0 0.0
    %1963 = vmatpush1.msra.mxu0 0.0
    %1964 = vmatprep.subr.mxu0 0.0
    %1965 = vmatpush1.msra.mxu0 0.0
    %1966 = vmatprep.subr.mxu0 0.0
    %1967 = vmatpush1.msra.mxu0 0.0
    %1968 = vmatprep.subr.mxu0 0.0
    %1969 = vmatpush1.msra.mxu0 0.0
    %1970 = vmatprep.subr.mxu0 0.0
    %1971 = vmatpush1.msra.mxu0 0.0
    %1972 = vmatprep.subr.mxu0 0.0
    %1973 = vmatpush1.msra.mxu0 0.0
    %1974 = vmatprep.subr.mxu0 0.0
    %1975 = vmatpush1.msra.mxu0 0.0
    %1976 = vmatprep.subr.mxu0 0.0
    %1977 = vmatpush1.msra.mxu0 0.0
    %1978 = vmatprep.subr.mxu0 0.0
    %1979 = vmatpush1.msra.mxu0 0.0
    %1980 = vmatprep.subr.mxu0 0.0
    %1981 = vmatpush1.msra.mxu0 0.0
    %1982 = vmatprep.subr.mxu0 0.0
    %1983 = vmatpush1.msra.mxu0 0.0
    %1984 = vmatprep.subr.mxu0 0.0
    %1985 = vmatpush1.msra.mxu0 0.0
    %1986 = vmatprep.subr.mxu0 0.0
    %1987 = vmatpush1.msra.mxu0 0.0
    %1988 = vmatprep.subr.mxu0 0.0
    %1989 = vmatpush1.msra.mxu0 0.0
    %1990 = vmatprep.subr.mxu0 0.0
    %1991 = vmatpush1.msra.mxu0 0.0
    %1992 = vmatprep.subr.mxu0 0.0
    %1993 = vmatpush1.msra.mxu0 0.0
    %1994 = vmatprep.subr.mxu0 0.0
    %1995 = vmatpush1.msra.mxu0 0.0
    %1996 = vmatprep.subr.mxu0 0.0
    %1997 = vmatpush1.msra.mxu0 0.0
    %1998 = vmatprep.subr.mxu0 0.0
    %1999 = vmatpush1.msra.mxu0 0.0
    %2000 = vmatprep.subr.mxu0 0.0
    %2001 = vmatpush1.msra.mxu0 0.0
    %2002 = vmatprep.subr.mxu0 0.0
    %2003 = vmatpush1.msra.mxu0 0.0
    %2004 = vmatprep.subr.mxu0 0.0
    %2005 = vmatpush1.msra.mxu0 0.0
    %2006 = vmatprep.subr.mxu0 0.0
    %2007 = vmatpush1.msra.mxu0 0.0
    %2008 = vmatprep.subr.mxu0 0.0
    %2009 = vmatpush1.msra.mxu0 0.0
    %2010 = vmatprep.subr.mxu0 0.0
    %2011 = vmatpush1.msra.mxu0 0.0
    %2012 = vmatprep.mubr.f32.mxu0 0.0
    %2013 = vmatmul.mubr.f32.gmra.mrb[0].mxu0 %v1943
    %v2014 = vpop.f32.mrb[0].mxu0
    %v2015 = vadd.f32 0.0, %v2014
    %v2016 = vpop.f32.mrb[0].mxu0
    %2017 = vmatprep.mubr.f32.mxu0 0.0
    %2018 = vmatmul.mubr.f32.gmra.mrb[0].mxu0 %v1946
    %v2019 = vpop.f32.mrb[0].mxu0
    %v2020 = vadd.f32 0.0, %v2019
    %v2021 = vpop.f32.mrb[0].mxu0
    %2022 = vdwg.mxu0
    %v2023 = vadd.f32 %v1822, %v2015
    %v2024 = vadd.f32 %v1827, %v2020
    %2025 = vrot.lane.b32.xlu0 %v297, 104
    %v2026 = vpop.permute.xlu0 %2025
    %2027 = vrot.lane.b32.xlu0 %v302, 104
    %v2028 = vpop.permute.xlu0 %2027
    %2029 = vrot.lane.b32.xlu0 %v413, 104
    %v2030 = vpop.permute.xlu0 %2029
    %v2031 = vsel %vm531, %v2026, 0
    %v2033 = vsel %vm531, %v2028, 0
    %v2035 = vsel %vm531, %v2030, 0
    %2037 = vmatprep.subr.mxu0 0.0
    %2038 = vmatpush1.xpose.msra.mxu0 %v2035
    %2039 = vmatprep.subr.mxu0 0.0
    %2040 = vmatpush1.xpose.msra.mxu0 0.0
    %2041 = vmatprep.subr.mxu0 0.0
    %2042 = vmatpush1.xpose.msra.mxu0 0.0
    %2043 = vmatprep.subr.mxu0 0.0
    %2044 = vmatpush1.xpose.msra.mxu0 0.0
    %2045 = vmatprep.subr.mxu0 0.0
    %2046 = vmatpush1.xpose.msra.mxu0 0.0
    %2047 = vmatprep.subr.mxu0 0.0
    %2048 = vmatpush1.xpose.msra.mxu0 0.0
    %2049 = vmatprep.subr.mxu0 0.0
    %2050 = vmatpush1.xpose.msra.mxu0 0.0
    %2051 = vmatprep.subr.mxu0 0.0
    %2052 = vmatpush1.xpose.msra.mxu0 0.0
    %2053 = vmatprep.subr.mxu0 0.0
    %2054 = vmatpush1.xpose.msra.mxu0 0.0
    %2055 = vmatprep.subr.mxu0 0.0
    %2056 = vmatpush1.xpose.msra.mxu0 0.0
    %2057 = vmatprep.subr.mxu0 0.0
    %2058 = vmatpush1.xpose.msra.mxu0 0.0
    %2059 = vmatprep.subr.mxu0 0.0
    %2060 = vmatpush1.xpose.msra.mxu0 0.0
    %2061 = vmatprep.subr.mxu0 0.0
    %2062 = vmatpush1.xpose.msra.mxu0 0.0
    %2063 = vmatprep.subr.mxu0 0.0
    %2064 = vmatpush1.xpose.msra.mxu0 0.0
    %2065 = vmatprep.subr.mxu0 0.0
    %2066 = vmatpush1.xpose.msra.mxu0 0.0
    %2067 = vmatprep.subr.mxu0 0.0
    %2068 = vmatpush1.xpose.msra.mxu0 0.0
    %2069 = vmatprep.subr.mxu0 0.0
    %2070 = vmatpush1.xpose.msra.mxu0 0.0
    %2071 = vmatprep.subr.mxu0 0.0
    %2072 = vmatpush1.xpose.msra.mxu0 0.0
    %2073 = vmatprep.subr.mxu0 0.0
    %2074 = vmatpush1.xpose.msra.mxu0 0.0
    %2075 = vmatprep.subr.mxu0 0.0
    %2076 = vmatpush1.xpose.msra.mxu0 0.0
    %2077 = vmatprep.subr.mxu0 0.0
    %2078 = vmatpush1.xpose.msra.mxu0 0.0
    %2079 = vmatprep.subr.mxu0 0.0
    %2080 = vmatpush1.xpose.msra.mxu0 0.0
    %2081 = vmatprep.subr.mxu0 0.0
    %2082 = vmatpush1.xpose.msra.mxu0 0.0
    %2083 = vmatprep.subr.mxu0 0.0
    %2084 = vmatpush1.xpose.msra.mxu0 0.0
    %2085 = vmatprep.subr.mxu0 0.0
    %2086 = vmatpush1.xpose.msra.mxu0 0.0
    %2087 = vmatprep.subr.mxu0 0.0
    %2088 = vmatpush1.xpose.msra.mxu0 0.0
    %2089 = vmatprep.subr.mxu0 0.0
    %2090 = vmatpush1.xpose.msra.mxu0 0.0
    %2091 = vmatprep.subr.mxu0 0.0
    %2092 = vmatpush1.xpose.msra.mxu0 0.0
    %2093 = vmatprep.subr.mxu0 0.0
    %2094 = vmatpush1.xpose.msra.mxu0 0.0
    %2095 = vmatprep.subr.mxu0 0.0
    %2096 = vmatpush1.xpose.msra.mxu0 0.0
    %2097 = vmatprep.subr.mxu0 0.0
    %2098 = vmatpush1.xpose.msra.mxu0 0.0
    %2099 = vmatprep.subr.mxu0 0.0
    %2100 = vmatpush1.xpose.msra.mxu0 0.0
    %2101 = vmatprep.mubr.f32.mxu0 0.0
    %2102 = vmatmul.mubr.f32.gmra.mrb[0].mxu0 %v2031
    %v2103 = vpop.f32.mrb[0].mxu0
    %v2104 = vadd.f32 %v1448, %v2103
    %v2105 = vpop.f32.mrb[0].mxu0
    %2106 = vmatprep.mubr.f32.mxu0 0.0
    %2107 = vmatmul.mubr.f32.gmra.mrb[0].mxu0 %v2033
    %v2108 = vpop.f32.mrb[0].mxu0
    %v2109 = vadd.f32 %v1448, %v2108
    %v2110 = vpop.f32.mrb[0].mxu0
    %2111 = vdwg.mxu0
    %v2112 = vsel %vm531, %v2104, -inf
    %2113 = vmax.xlane.f32.xlu0 %v2112
    %v2114 = vpop.xlane.xlu0 %2113
    %v2115 = vsel %vm531, %v2109, -inf
    %2116 = vmax.xlane.f32.xlu0 %v2115
    %v2117 = vpop.xlane.xlu0 %2116
    %v2118 = vsub.f32 %v2104, %v2114
    %v2119 = vsub.f32 %v2109, %v2117
    %v2120 = vmul.f32 %v2118, 1.442695
    %v2121 = vpow.pop %v2120
    %v2122 = vmul.f32 %v2119, 1.442695
    %v2123 = vpow.pop %v2122
    %v2124 = vsel %vm531, %v2121, 0.0
    %2125 = vadd.xlane.f32.xlu0 %v2124
    %v2126 = vpop.xlane.xlu0 %2125
    %v2127 = vsel %vm531, %v2123, 0.0
    %2128 = vadd.xlane.f32.xlu0 %v2127
    %v2129 = vpop.xlane.xlu0 %2128
    %v2130 = vrcp.pop %v2126
    %v2131 = vmul.f32 %v2121, %v2130
    %v2132 = vrcp.pop %v2129
    %v2133 = vmul.f32 %v2123, %v2132
    %2134 = vrot.lane.b32.xlu0 %v415, 32
    %v2135 = vpop.permute.xlu0 %2134
    %v2138 = vsel %vm531, %v2131, 0
    %v2141 = vsel %vm531, %v2133, 0
    %2143 = vmatprep.subr.mxu0 0.0
    %2144 = vmatpush1.msra.mxu0 %v2135
    %2145 = vmatprep.subr.mxu0 0.0
    %2146 = vmatpush1.msra.mxu0 0.0
    %2147 = vmatprep.subr.mxu0 0.0
    %2148 = vmatpush1.msra.mxu0 0.0
    %2149 = vmatprep.subr.mxu0 0.0
    %2150 = vmatpush1.msra.mxu0 0.0
    %2151 = vmatprep.subr.mxu0 0.0
    %2152 = vmatpush1.msra.mxu0 0.0
    %2153 = vmatprep.subr.mxu0 0.0
    %2154 = vmatpush1.msra.mxu0 0.0
    %2155 = vmatprep.subr.mxu0 0.0
    %2156 = vmatpush1.msra.mxu0 0.0
    %2157 = vmatprep.subr.mxu0 0.0
    %2158 = vmatpush1.msra.mxu0 0.0
    %2159 = vmatprep.subr.mxu0 0.0
    %2160 = vmatpush1.msra.mxu0 0.0
    %2161 = vmatprep.subr.mxu0 0.0
    %2162 = vmatpush1.msra.mxu0 0.0
    %2163 = vmatprep.subr.mxu0 0.0
    %2164 = vmatpush1.msra.mxu0 0.0
    %2165 = vmatprep.subr.mxu0 0.0
    %2166 = vmatpush1.msra.mxu0 0.0
    %2167 = vmatprep.subr.mxu0 0.0
    %2168 = vmatpush1.msra.mxu0 0.0
    %2169 = vmatprep.subr.mxu0 0.0
    %2170 = vmatpush1.msra.mxu0 0.0
    %2171 = vmatprep.subr.mxu0 0.0
    %2172 = vmatpush1.msra.mxu0 0.0
    %2173 = vmatprep.subr.mxu0 0.0
    %2174 = vmatpush1.msra.mxu0 0.0
    %2175 = vmatprep.subr.mxu0 0.0
    %2176 = vmatpush1.msra.mxu0 0.0
    %2177 = vmatprep.subr.mxu0 0.0
    %2178 = vmatpush1.msra.mxu0 0.0
    %2179 = vmatprep.subr.mxu0 0.0
    %2180 = vmatpush1.msra.mxu0 0.0
    %2181 = vmatprep.subr.mxu0 0.0
    %2182 = vmatpush1.msra.mxu0 0.0
    %2183 = vmatprep.subr.mxu0 0.0
    %2184 = vmatpush1.msra.mxu0 0.0
    %2185 = vmatprep.subr.mxu0 0.0
    %2186 = vmatpush1.msra.mxu0 0.0
    %2187 = vmatprep.subr.mxu0 0.0
    %2188 = vmatpush1.msra.mxu0 0.0
    %2189 = vmatprep.subr.mxu0 0.0
    %2190 = vmatpush1.msra.mxu0 0.0
    %2191 = vmatprep.subr.mxu0 0.0
    %2192 = vmatpush1.msra.mxu0 0.0
    %2193 = vmatprep.subr.mxu0 0.0
    %2194 = vmatpush1.msra.mxu0 0.0
    %2195 = vmatprep.subr.mxu0 0.0
    %2196 = vmatpush1.msra.mxu0 0.0
    %2197 = vmatprep.subr.mxu0 0.0
    %2198 = vmatpush1.msra.mxu0 0.0
    %2199 = vmatprep.subr.mxu0 0.0
    %2200 = vmatpush1.msra.mxu0 0.0
    %2201 = vmatprep.subr.mxu0 0.0
    %2202 = vmatpush1.msra.mxu0 0.0
    %2203 = vmatprep.subr.mxu0 0.0
    %2204 = vmatpush1.msra.mxu0 0.0
    %2205 = vmatprep.subr.mxu0 0.0
    %2206 = vmatpush1.msra.mxu0 0.0
    %2207 = vmatprep.mubr.f32.mxu0 0.0
    %2208 = vmatmul.mubr.f32.gmra.mrb[0].mxu0 %v2138
    %v2209 = vpop.f32.mrb[0].mxu0
    %v2210 = vadd.f32 0.0, %v2209
    %v2211 = vpop.f32.mrb[0].mxu0
    %2212 = vmatprep.mubr.f32.mxu0 0.0
    %2213 = vmatmul.mubr.f32.gmra.mrb[0].mxu0 %v2141
    %v2214 = vpop.f32.mrb[0].mxu0
    %v2215 = vadd.f32 0.0, %v2214
    %v2216 = vpop.f32.mrb[0].mxu0
    %2217 = vdwg.mxu0
    %v2218 = vadd.f32 %v2023, %v2210
    %v2219 = vadd.f32 %v2024, %v2215
    %v2220 = vadd.f32 %v2218, %v1307
    %v2221 = vadd.f32 %v2219, %v1307
    %v2222 = vmul.f32 %v2220, %v2220
    %v2223 = vmul.f32 %v2221, %v2221
    %v2224 = vsel %vm150, %v2222, 0.0
    %2225 = vadd.xlane.f32.xlu0 %v2224
    %v2226 = vpop.xlane.xlu0 %2225
    %v2227 = vsel %vm150, %v2223, 0.0
    %2228 = vadd.xlane.f32.xlu0 %v2227
    %v2229 = vpop.xlane.xlu0 %2228
    %v2230 = vrsqrt.pop %v2226
    %v2231 = vmul.f32 %v2226, %v2230
    %vm2232 = vcmp.eq.f32.partialorder %v2226, inf
    %v2233 = vsel %vm2232, %v2226, %v2231
    %vm2234 = vcmp.eq.f32.partialorder %v2226, 0.0
    %v2235 = vand.u32 %v2226, 2147483648
    %v2236 = vsel %vm2234, %v2235, %v2233
    %v2237 = vrsqrt.pop %v2229
    %v2238 = vmul.f32 %v2229, %v2237
    %vm2239 = vcmp.eq.f32.partialorder %v2229, inf
    %v2240 = vsel %vm2239, %v2229, %v2238
    %vm2241 = vcmp.eq.f32.partialorder %v2229, 0.0
    %v2242 = vand.u32 %v2229, 2147483648
    %v2243 = vsel %vm2241, %v2242, %v2240
    %v2244 = vmax.f32 %v2236, 1e-08
    %v2245 = vmax.f32 %v2243, 1e-08
    %v2246 = vrcp.pop %v2244
    %v2247 = vmul.f32 %v2220, %v2246
    %v2248 = vrcp.pop %v2245
    %v2249 = vmul.f32 %v2221, %v2248
    %v2251 = vsel %vm150, %v521, 0
    %v2254 = vsel %vm150, %v2247, 0
    %v2257 = vsel %vm150, %v2249, 0
    %2259 = vmatprep.subr.mxu0 0.0
    %2260 = vmatpush1.xpose.msra.mxu0 %v2254
    %2261 = vmatprep.subr.mxu0 0.0
    %2262 = vmatpush1.xpose.msra.mxu0 %v2257
    %2263 = vmatprep.subr.mxu0 0.0
    %2264 = vmatpush1.xpose.msra.mxu0 0.0
    %2265 = vmatprep.subr.mxu0 0.0
    %2266 = vmatpush1.xpose.msra.mxu0 0.0
    %2267 = vmatprep.subr.mxu0 0.0
    %2268 = vmatpush1.xpose.msra.mxu0 0.0
    %2269 = vmatprep.subr.mxu0 0.0
    %2270 = vmatpush1.xpose.msra.mxu0 0.0
    %2271 = vmatprep.subr.mxu0 0.0
    %2272 = vmatpush1.xpose.msra.mxu0 0.0
    %2273 = vmatprep.subr.mxu0 0.0
    %2274 = vmatpush1.xpose.msra.mxu0 0.0
    %2275 = vmatprep.subr.mxu0 0.0
    %2276 = vmatpush1.xpose.msra.mxu0 0.0
    %2277 = vmatprep.subr.mxu0 0.0
    %2278 = vmatpush1.xpose.msra.mxu0 0.0
    %2279 = vmatprep.subr.mxu0 0.0
    %2280 = vmatpush1.xpose.msra.mxu0 0.0
    %2281 = vmatprep.subr.mxu0 0.0
    %2282 = vmatpush1.xpose.msra.mxu0 0.0
    %2283 = vmatprep.subr.mxu0 0.0
    %2284 = vmatpush1.xpose.msra.mxu0 0.0
    %2285 = vmatprep.subr.mxu0 0.0
    %2286 = vmatpush1.xpose.msra.mxu0 0.0
    %2287 = vmatprep.subr.mxu0 0.0
    %2288 = vmatpush1.xpose.msra.mxu0 0.0
    %2289 = vmatprep.subr.mxu0 0.0
    %2290 = vmatpush1.xpose.msra.mxu0 0.0
    %2291 = vmatprep.subr.mxu0 0.0
    %2292 = vmatpush1.xpose.msra.mxu0 0.0
    %2293 = vmatprep.subr.mxu0 0.0
    %2294 = vmatpush1.xpose.msra.mxu0 0.0
    %2295 = vmatprep.subr.mxu0 0.0
    %2296 = vmatpush1.xpose.msra.mxu0 0.0
    %2297 = vmatprep.subr.mxu0 0.0
    %2298 = vmatpush1.xpose.msra.mxu0 0.0
    %2299 = vmatprep.subr.mxu0 0.0
    %2300 = vmatpush1.xpose.msra.mxu0 0.0
    %2301 = vmatprep.subr.mxu0 0.0
    %2302 = vmatpush1.xpose.msra.mxu0 0.0
    %2303 = vmatprep.subr.mxu0 0.0
    %2304 = vmatpush1.xpose.msra.mxu0 0.0
    %2305 = vmatprep.subr.mxu0 0.0
    %2306 = vmatpush1.xpose.msra.mxu0 0.0
    %2307 = vmatprep.subr.mxu0 0.0
    %2308 = vmatpush1.xpose.msra.mxu0 0.0
    %2309 = vmatprep.subr.mxu0 0.0
    %2310 = vmatpush1.xpose.msra.mxu0 0.0
    %2311 = vmatprep.subr.mxu0 0.0
    %2312 = vmatpush1.xpose.msra.mxu0 0.0
    %2313 = vmatprep.subr.mxu0 0.0
    %2314 = vmatpush1.xpose.msra.mxu0 0.0
    %2315 = vmatprep.subr.mxu0 0.0
    %2316 = vmatpush1.xpose.msra.mxu0 0.0
    %2317 = vmatprep.subr.mxu0 0.0
    %2318 = vmatpush1.xpose.msra.mxu0 0.0
    %2319 = vmatprep.subr.mxu0 0.0
    %2320 = vmatpush1.xpose.msra.mxu0 0.0
    %2321 = vmatprep.subr.mxu0 0.0
    %2322 = vmatpush1.xpose.msra.mxu0 0.0
    %2323 = vmatprep.mubr.f32.mxu0 0.0
    %2324 = vmatmul.mubr.f32.gmra.mrb[0].mxu0 %v2251
    %v2325 = vpop.f32.mrb[0].mxu0
    %v2326 = vadd.f32 0.0, %v2325
    %v2327 = vpop.f32.mrb[0].mxu0
    %2328 = vdwg.mxu0
    %v2329 = vsub.f32 1.0, %v2326
    %v2330 = vmul.f32 %v2329, -0.5
    %v2331 = vmul.f32 %v2330, %v2329
    %v2332 = vmul.f32 %v2331, %v1430
    %v2333 = vmul.f32 %v2332, 1.442695
    %v2334 = vpow.pop %v2333
    %v2335 = vmul.f32 %v1441, %v2334
    %v2336 = vld [vmem:[#allocation13] sm:$0xff]
    %v2337 = vld [vmem:[#allocation13 + $0x8] sm:$0xff]
    %v2338 = vld [vmem:[#allocation13 + $0x10] sm:$0xff]
    %v2339 = vld [vmem:[#allocation13 + $0x18] sm:$0xff]
    %v2340 = vld [vmem:[#allocation13 + $0x20] sm:$0xff]
    %v2341 = vld [vmem:[#allocation13 + $0x28] sm:$0xff]
    %v2342 = vld [vmem:[#allocation13 + $0x30] sm:$0xff]
    %v2343 = vld [vmem:[#allocation13 + $0x38] sm:$0xff]
    %vm2344 = vcmask 130048
    %v2346 = vsel %vm2344, %v1443, 0
    %v2349 = vsel %vm2344, %v2335, 0
    %2351 = vmatprep.subr.mxu0 %v2337
    %2352 = vmatpush1.msra.mxu0 %v2336
    %2353 = vmatprep.subr.mxu0 %v2341
    %2354 = vmatpush1.msra.mxu0 %v2340
    %2355 = vmatprep.subr.mxu0 0.0
    %2356 = vmatpush1.msra.mxu0 0.0
    %2357 = vmatprep.subr.mxu0 0.0
    %2358 = vmatpush1.msra.mxu0 0.0
    %2359 = vmatprep.subr.mxu0 0.0
    %2360 = vmatpush1.msra.mxu0 0.0
    %2361 = vmatprep.subr.mxu0 0.0
    %2362 = vmatpush1.msra.mxu0 0.0
    %2363 = vmatprep.subr.mxu0 0.0
    %2364 = vmatpush1.msra.mxu0 0.0
    %2365 = vmatprep.subr.mxu0 0.0
    %2366 = vmatpush1.msra.mxu0 0.0
    %2367 = vmatprep.subr.mxu0 0.0
    %2368 = vmatpush1.msra.mxu0 0.0
    %2369 = vmatprep.subr.mxu0 0.0
    %2370 = vmatpush1.msra.mxu0 0.0
    %2371 = vmatprep.subr.mxu0 0.0
    %2372 = vmatpush1.msra.mxu0 0.0
    %2373 = vmatprep.subr.mxu0 0.0
    %2374 = vmatpush1.msra.mxu0 0.0
    %2375 = vmatprep.subr.mxu0 0.0
    %2376 = vmatpush1.msra.mxu0 0.0
    %2377 = vmatprep.subr.mxu0 0.0
    %2378 = vmatpush1.msra.mxu0 0.0
    %2379 = vmatprep.subr.mxu0 0.0
    %2380 = vmatpush1.msra.mxu0 0.0
    %2381 = vmatprep.subr.mxu0 0.0
    %2382 = vmatpush1.msra.mxu0 0.0
    %2383 = vmatprep.subr.mxu0 0.0
    %2384 = vmatpush1.msra.mxu0 0.0
    %2385 = vmatprep.subr.mxu0 0.0
    %2386 = vmatpush1.msra.mxu0 0.0
    %2387 = vmatprep.subr.mxu0 0.0
    %2388 = vmatpush1.msra.mxu0 0.0
    %2389 = vmatprep.subr.mxu0 0.0
    %2390 = vmatpush1.msra.mxu0 0.0
    %2391 = vmatprep.subr.mxu0 0.0
    %2392 = vmatpush1.msra.mxu0 0.0
    %2393 = vmatprep.subr.mxu0 0.0
    %2394 = vmatpush1.msra.mxu0 0.0
    %2395 = vmatprep.subr.mxu0 0.0
    %2396 = vmatpush1.msra.mxu0 0.0
    %2397 = vmatprep.subr.mxu0 0.0
    %2398 = vmatpush1.msra.mxu0 0.0
    %2399 = vmatprep.subr.mxu0 0.0
    %2400 = vmatpush1.msra.mxu0 0.0
    %2401 = vmatprep.subr.mxu0 0.0
    %2402 = vmatpush1.msra.mxu0 0.0
    %2403 = vmatprep.subr.mxu0 0.0
    %2404 = vmatpush1.msra.mxu0 0.0
    %2405 = vmatprep.subr.mxu0 0.0
    %2406 = vmatpush1.msra.mxu0 0.0
    %2407 = vmatprep.subr.mxu0 0.0
    %2408 = vmatpush1.msra.mxu0 0.0
    %2409 = vmatprep.subr.mxu0 0.0
    %2410 = vmatpush1.msra.mxu0 0.0
    %2411 = vmatprep.subr.mxu0 0.0
    %2412 = vmatpush1.msra.mxu0 0.0
    %2413 = vmatprep.subr.mxu0 0.0
    %2414 = vmatpush1.msra.mxu0 0.0
    %2415 = vmatprep.mubr.f32.mxu0 0.0
    %2416 = vmatmul.mubr.f32.gmra.mrb[0].mxu0 %v2346
    %v2417 = vpop.f32.mrb[0].mxu0
    %v2418 = vadd.f32 0.0, %v2417
    %v2419 = vpop.f32.mrb[0].mxu0
    %v2420 = vadd.f32 0.0, %v2419
    %2421 = vmatprep.mubr.f32.mxu0 0.0
    %2422 = vmatmul.mubr.f32.gmra.mrb[0].mxu0 %v2349
    %v2423 = vpop.f32.mrb[0].mxu0
    %v2424 = vadd.f32 0.0, %v2423
    %v2425 = vpop.f32.mrb[0].mxu0
    %v2426 = vadd.f32 0.0, %v2425
    %2427 = vdwg.mxu0
    %2428 = vmatprep.subr.mxu0 %v2339
    %2429 = vmatpush1.msra.mxu0 %v2338
    %2430 = vmatprep.subr.mxu0 %v2343
    %2431 = vmatpush1.msra.mxu0 %v2342
    %2432 = vmatprep.subr.mxu0 0.0
    %2433 = vmatpush1.msra.mxu0 0.0
    %2434 = vmatprep.subr.mxu0 0.0
    %2435 = vmatpush1.msra.mxu0 0.0
    %2436 = vmatprep.subr.mxu0 0.0
    %2437 = vmatpush1.msra.mxu0 0.0
    %2438 = vmatprep.subr.mxu0 0.0
    %2439 = vmatpush1.msra.mxu0 0.0
    %2440 = vmatprep.subr.mxu0 0.0
    %2441 = vmatpush1.msra.mxu0 0.0
    %2442 = vmatprep.subr.mxu0 0.0
    %2443 = vmatpush1.msra.mxu0 0.0
    %2444 = vmatprep.subr.mxu0 0.0
    %2445 = vmatpush1.msra.mxu0 0.0
    %2446 = vmatprep.subr.mxu0 0.0
    %2447 = vmatpush1.msra.mxu0 0.0
    %2448 = vmatprep.subr.mxu0 0.0
    %2449 = vmatpush1.msra.mxu0 0.0
    %2450 = vmatprep.subr.mxu0 0.0
    %2451 = vmatpush1.msra.mxu0 0.0
    %2452 = vmatprep.subr.mxu0 0.0
    %2453 = vmatpush1.msra.mxu0 0.0
    %2454 = vmatprep.subr.mxu0 0.0
    %2455 = vmatpush1.msra.mxu0 0.0
    %2456 = vmatprep.subr.mxu0 0.0
    %2457 = vmatpush1.msra.mxu0 0.0
    %2458 = vmatprep.subr.mxu0 0.0
    %2459 = vmatpush1.msra.mxu0 0.0
    %2460 = vmatprep.subr.mxu0 0.0
    %2461 = vmatpush1.msra.mxu0 0.0
    %2462 = vmatprep.subr.mxu0 0.0
    %2463 = vmatpush1.msra.mxu0 0.0
    %2464 = vmatprep.subr.mxu0 0.0
    %2465 = vmatpush1.msra.mxu0 0.0
    %2466 = vmatprep.subr.mxu0 0.0
    %2467 = vmatpush1.msra.mxu0 0.0
    %2468 = vmatprep.subr.mxu0 0.0
    %2469 = vmatpush1.msra.mxu0 0.0
    %2470 = vmatprep.subr.mxu0 0.0
    %2471 = vmatpush1.msra.mxu0 0.0
    %2472 = vmatprep.subr.mxu0 0.0
    %2473 = vmatpush1.msra.mxu0 0.0
    %2474 = vmatprep.subr.mxu0 0.0
    %2475 = vmatpush1.msra.mxu0 0.0
    %2476 = vmatprep.subr.mxu0 0.0
    %2477 = vmatpush1.msra.mxu0 0.0
    %2478 = vmatprep.subr.mxu0 0.0
    %2479 = vmatpush1.msra.mxu0 0.0
    %2480 = vmatprep.subr.mxu0 0.0
    %2481 = vmatpush1.msra.mxu0 0.0
    %2482 = vmatprep.subr.mxu0 0.0
    %2483 = vmatpush1.msra.mxu0 0.0
    %2484 = vmatprep.subr.mxu0 0.0
    %2485 = vmatpush1.msra.mxu0 0.0
    %2486 = vmatprep.subr.mxu0 0.0
    %2487 = vmatpush1.msra.mxu0 0.0
    %2488 = vmatprep.subr.mxu0 0.0
    %2489 = vmatpush1.msra.mxu0 0.0
    %2490 = vmatprep.subr.mxu0 0.0
    %2491 = vmatpush1.msra.mxu0 0.0
    %2492 = vmatprep.mubr.f32.mxu0 0.0
    %2493 = vmatmul.mubr.f32.gmra.mrb[0].mxu0 %v2346
    %v2494 = vpop.f32.mrb[0].mxu0
    %v2495 = vadd.f32 0.0, %v2494
    %v2496 = vpop.f32.mrb[0].mxu0
    %v2497 = vadd.f32 0.0, %v2496
    %2498 = vmatprep.mubr.f32.mxu0 0.0
    %2499 = vmatmul.mubr.f32.gmra.mrb[0].mxu0 %v2349
    %v2500 = vpop.f32.mrb[0].mxu0
    %v2501 = vadd.f32 0.0, %v2500
    %v2502 = vpop.f32.mrb[0].mxu0
    %v2503 = vadd.f32 0.0, %v2502
    %2504 = vdwg.mxu0
    %2505 = vst [vmem:[#allocation15] sm:$0xff] %v2418
    %2506 = vst [vmem:[#allocation15 + $0x8] sm:$0xff] %v2420
    %2507 = vst [vmem:[#allocation15 + $0x10] sm:$0xff] %v2495
    %2508 = vst [vmem:[#allocation15 + $0x18] sm:$0xff] %v2497
    %2509 = vst [vmem:[#allocation15 + $0x20] sm:$0xff] %v2424
    %2510 = vst [vmem:[#allocation15 + $0x28] sm:$0xff] %v2426
    %2511 = vst [vmem:[#allocation15 + $0x30] sm:$0xff] %v2501
    %2512 = vst [vmem:[#allocation15 + $0x38] sm:$0xff] %v2503
    // Predicated region
    $region78: #{tpu_custom_call.1} parent=1 // pred_check
      _
    $region79: #{tpu_custom_call.1} parent=1 // pred_check_branch
      %2514 = sbr.rel (0) target = $region81
    $region80: #{tpu_custom_call.1} parent=1 // pred_region
      %s2516 = ssub.s32 1024, 1024
      %2517 = vsyncadd [#allocation6], %s2516
      %s2518 = sshll.u32 [#allocation15], 4
      %s2519 = int_to_ptr.vmem [resolvable:$true] %s2518
      %2524 = dma.vmem_to_hbm [thread:$0]  %s2519, 1024, %s13, [#allocation6], 512, 512, 32
    $region81: #{tpu_custom_call.1} parent=1 // pred_fallthru
      _
    // Predicated region
    $region82: #{tpu_custom_call.1} parent=1 // pred_check
      _
    $region83: #{tpu_custom_call.1} parent=1 // pred_check_branch
      %2526 = sbr.rel (0) target = $region85
    $region84: #{tpu_custom_call.1} parent=1 // pred_region
      %s2528 = ssub.s32 256, 256
      %2529 = vsyncadd [#allocation17], %s2528
      %s2530 = sshll.u32 [#allocation16], 4
      %s2531 = int_to_ptr.vmem [resolvable:$true] %s2530
      %2536 = dma.vmem_to_hbm [thread:$0]  %s2531, 256, %s14, [#allocation17], 128, 128, 8
    $region85: #{tpu_custom_call.1} parent=1 // pred_fallthru
      _
    // Predicated region
    $region86: #{tpu_custom_call.1} parent=1 // pred_check
      _
    $region87: #{tpu_custom_call.1} parent=1 // pred_check_branch
      %2538 = sbr.rel (0) target = $region89
    $region88: #{tpu_custom_call.1} parent=1 // pred_region
      %2539 = dma.done [#allocation6], 1024
    $region89: #{tpu_custom_call.1} parent=1 // pred_fallthru
      _
    // Predicated region
    $region90: #{tpu_custom_call.1} parent=1 // pred_check
      _
    $region91: #{tpu_custom_call.1} parent=1 // pred_check_branch
      %2541 = sbr.rel (0) target = $region93
    $region92: #{tpu_custom_call.1} parent=1 // pred_region
      %2542 = dma.done [#allocation17], 256
    $region93: #{tpu_custom_call.1} parent=1 // pred_fallthru
      _
    %2543 = vsyncpa [#allocation5], 1
    %2544 = vsyncpa [#allocation8], 1
    %2545 = vsyncpa [#allocation11], 1
    %2546 = vsyncpa [#allocation14], 1
    %2547 = vsyncpa [#allocation6], 1
    %2548 = vsyncpa [#allocation17], 1

</llo_original>
